<compile_context>
chip_gen: v6e
topology: v6e:2x2x1
jax: 0.10.0
libtpu: 0.0.40
codegen_flags: <defaults>
</compile_context>

<pallas_src>
import functools
import math

import jax
import jax.numpy as jnp
from jax.experimental import pallas as pl
from jax.experimental.pallas import tpu as pltpu


# ----------------------------------------------------------------------------- #
# helpers
# ----------------------------------------------------------------------------- #
def _vmem_specs(n):
    return [pl.BlockSpec(memory_space=pltpu.MemorySpace.VMEM) for _ in range(n)]


# ----------------------------------------------------------------------------- #
# Kernel 1: fused Weights model + reduction Linear + weighted scatter-add
# ----------------------------------------------------------------------------- #
def pallas_weights_scatter(bert, gamma_w, gamma_b, weights_w, phrase_id, phrase):
    """out[p, :] = sum_{n: phrase_id[n]==p} w[n] * relu(bert @ gamma_w + gamma_b)[n, :]
       with w[n] = exp(bert@weights_w)[n] / sum_{m: phrase_id[m]==phrase_id[n]} exp(...)[m]."""
    N, _ = bert.shape
    F2 = gamma_w.shape[1]
    pid_row = phrase_id.reshape(1, N).astype(jnp.int32)
    pid_col = phrase_id.reshape(N, 1).astype(jnp.int32)

    def kernel(bert_ref, gw_ref, gb_ref, ww_ref, prow_ref, pcol_ref, o_ref):
        bert_v = bert_ref[...]                                                    # (N, in1)
        logit = jnp.exp(jnp.dot(bert_v, ww_ref[...],
                                preferred_element_type=jnp.float32))              # (N, 1)
        # per-word partition: denom[n] = sum_m [pid[m]==pid[n]] * logit[m]
        eq = (pcol_ref[...] == prow_ref[...]).astype(jnp.float32)                 # (N, N)
        denom = jnp.dot(eq, logit, preferred_element_type=jnp.float32)            # (N, 1)
        word_w = logit / denom                                                    # (N, 1)
        red = jnp.maximum(jnp.dot(bert_v, gw_ref[...],
                                  preferred_element_type=jnp.float32) + gb_ref[...], 0.0)
        # scatter-add over phrase ids as a one-hot matmul (one-hot built in-kernel)
        iota_p = jax.lax.broadcasted_iota(jnp.int32, (phrase, N), 0)
        onehot = (iota_p == prow_ref[...]).astype(jnp.float32)                    # (phrase, N)
        o_ref[...] = jnp.dot(onehot, word_w * red, preferred_element_type=jnp.float32)

    return pl.pallas_call(
        kernel,
        out_shape=jax.ShapeDtypeStruct((phrase, F2), jnp.float32),
        in_specs=_vmem_specs(6),
        out_specs=pl.BlockSpec(memory_space=pltpu.MemorySpace.VMEM),
    )(bert, gamma_w, gamma_b, weights_w, pid_row, pid_col)


# ----------------------------------------------------------------------------- #
# Kernel 2/3: one fused Transformer layer, batched over the two towers
# ----------------------------------------------------------------------------- #
def transformer_layer(x, mask3, tw, heads, *, x_stacked):
    """x: (D, m, F) shared input (layer 1) or (2, D, m, F) per-tower (layer 2).
       mask3: (D, 1, m) float, 1.0 = padded key.  tw: tower-stacked weights.
       Returns (2, D, m, F)."""
    if x_stacked:
        _, D, m, F = x.shape
    else:
        D, m, F = x.shape
    O = tw["wf1"].shape[2]
    dk = F // heads
    inv_sqrt = 1.0 / math.sqrt(dk)
    eps = 1e-5

    def kernel(msk_ref, x_ref, wqkg_ref, wo_ref, lng_ref, lnb_ref,
               wf1_ref, wf2_ref, o_ref):
        xv = x_ref[...]                                                           # (m, F)
        key_masked = msk_ref[...] > 0.5                                           # (1, m)
        # fused Q|K|G projection: one (m,F) @ (F,3F) matmul
        qkg = jnp.dot(xv, wqkg_ref[...], preferred_element_type=jnp.float32)      # (m, 3F)
        wo = wo_ref[...]                                                          # (F, F)
        attn = jnp.zeros((m, F), jnp.float32)
        for h in range(heads):                                                    # unrolled
            q = qkg[:, h * dk:(h + 1) * dk]
            k = qkg[:, F + h * dk:F + (h + 1) * dk]
            g = qkg[:, 2 * F + h * dk:2 * F + (h + 1) * dk]
            s = jax.lax.dot_general(q, k, (((1,), (1,)), ((), ())),
                                    preferred_element_type=jnp.float32) * inv_sqrt  # (m, m)
            s = jnp.where(key_masked, jnp.float32(-1000000000.0), s)
            s = s - jnp.max(s, axis=-1, keepdims=True)
            p = jnp.exp(s)
            p = p / jnp.sum(p, axis=-1, keepdims=True)
            o_h = jnp.dot(p, g, preferred_element_type=jnp.float32)               # (m, dk)
            # concat-over-heads @ Wo  ==  sum_h o_h @ Wo[h*dk:(h+1)*dk, :]
            attn = attn + jnp.dot(o_h, wo[h * dk:(h + 1) * dk, :],
                                  preferred_element_type=jnp.float32)
        h1 = xv + attn                                                            # residual
        mu = jnp.mean(h1, axis=-1, keepdims=True)
        var = jnp.mean((h1 - mu) * (h1 - mu), axis=-1, keepdims=True)
        normed = (h1 - mu) * jax.lax.rsqrt(var + eps) * lng_ref[...] + lnb_ref[...]
        ff1 = jnp.maximum(jnp.dot(normed, wf1_ref[...],
                                  preferred_element_type=jnp.float32), 0.0)
        o_ref[...] = h1 + jnp.dot(ff1, wf2_ref[...], preferred_element_type=jnp.float32)

    if x_stacked:
        x_spec = pl.BlockSpec((None, None, m, F), lambda t, b: (t, b, 0, 0))
    else:
        x_spec = pl.BlockSpec((None, m, F), lambda t, b: (b, 0, 0))

    return pl.pallas_call(
        kernel,
        out_shape=jax.ShapeDtypeStruct((2, D, m, F), jnp.float32),
        grid_spec=pltpu.PrefetchScalarGridSpec(
            num_scalar_prefetch=0,
            grid=(2, D),                                     # (tower, image)
            in_specs=[
                pl.BlockSpec((None, 1, m), lambda t, b: (b, 0, 0)),      # key mask
                x_spec,                                                   # features
                pl.BlockSpec((None, F, 3 * F), lambda t, b: (t, 0, 0)),   # Wq|Wk|Wg
                pl.BlockSpec((None, F, F), lambda t, b: (t, 0, 0)),       # Wo
                pl.BlockSpec((None, 1, F), lambda t, b: (t, 0, 0)),       # LN2 gamma
                pl.BlockSpec((None, 1, F), lambda t, b: (t, 0, 0)),       # LN2 beta
                pl.BlockSpec((None, F, O), lambda t, b: (t, 0, 0)),       # Wf1
                pl.BlockSpec((None, O, F), lambda t, b: (t, 0, 0)),       # Wf2
            ],
            out_specs=pl.BlockSpec((None, None, m, F), lambda t, b: (t, b, 0, 0)),
        ),
        compiler_params=pltpu.CompilerParams(
            dimension_semantics=("parallel", "parallel")),
    )(mask3, x, tw["wqkg"], tw["wo"], tw["ln_g"], tw["ln_b"], tw["wf1"], tw["wf2"])


def stack_towers(pa, pb):
    """Stack the two towers' layer weights along a leading tower axis and fuse
    Wq|Wk|Wg into one (F, 3F) projection per tower."""
    def qkg(p):
        return jnp.concatenate([p["wq"], p["wk"], p["wg"]], axis=1)
    return {
        "wqkg": jnp.stack([qkg(pa), qkg(pb)], axis=0),            # (2, F, 3F)
        "wo":   jnp.stack([pa["wo"], pb["wo"]], axis=0),          # (2, F, F)
        "ln_g": jnp.stack([pa["ln2_g"], pb["ln2_g"]], axis=0),    # (2, 1, F)
        "ln_b": jnp.stack([pa["ln2_b"], pb["ln2_b"]], axis=0),
        "wf1":  jnp.stack([pa["wf1"], pb["wf1"]], axis=0),        # (2, F, O)
        "wf2":  jnp.stack([pa["wf2"], pb["wf2"]], axis=0),        # (2, O, F)
    }


# ----------------------------------------------------------------------------- #
# Kernel 4: fused DMF head
# ----------------------------------------------------------------------------- #
def pallas_dmf(x1, x2, dist, p):
    P, _ = x1.shape
    od = p["w21a"].shape[0]
    classes = p["w21a"].shape[1]
    # stack the C=2 gamma11 / gamma12 linears into single matmuls
    w11 = jnp.concatenate([p["w11_0"], p["w11_1"]], axis=1)       # (F, 2*od)
    b11 = jnp.concatenate([p["b11_0"], p["b11_1"]], axis=1)       # (1, 2*od)
    w12 = jnp.concatenate([p["w12_0"], p["w12_1"]], axis=1)
    b12 = jnp.concatenate([p["b12_0"], p["b12_1"]], axis=1)

    def kernel(x1r, x2r, dr, w11r, b11r, w12r, b12r, w21ar, w21br, b21r, w22r, o_ref):
        d = dr[...]                                                               # (P, 1)
        y11 = jnp.dot(x1r[...], w11r[...], preferred_element_type=jnp.float32) + b11r[...]
        ff1 = jnp.maximum(d * y11[:, :od] + (1.0 - d) * y11[:, od:], 0.0)
        y12 = jnp.dot(x2r[...], w12r[...], preferred_element_type=jnp.float32) + b12r[...]
        ff2 = jnp.maximum(d * y12[:, :od] + (1.0 - d) * y12[:, od:], 0.0)
        o_ref[...] = (jnp.dot(ff1, w21ar[...], preferred_element_type=jnp.float32)
                      + jnp.dot(ff2, w21br[...], preferred_element_type=jnp.float32)
                      + jnp.dot(ff1 * ff2, w22r[...], preferred_element_type=jnp.float32)
                      + b21r[...])

    return pl.pallas_call(
        kernel,
        out_shape=jax.ShapeDtypeStruct((P, classes), jnp.float32),
        in_specs=_vmem_specs(11),
        out_specs=pl.BlockSpec(memory_space=pltpu.MemorySpace.VMEM),
    )(x1, x2, dist, w11, b11, w12, b12, p["w21a"], p["w21b"], p["b21"], p["w22"])


# ----------------------------------------------------------------------------- #
# Module forward (glue around the 4 Pallas kernels)
# ----------------------------------------------------------------------------- #
@functools.partial(jax.jit,
                   static_argnames=("heads", "D", "N", "phrase", "max_pt", "max_m"))
def joint_forward(params, bert_feature, feature_phrase, distance, phrase_id,
                  phrase_box, pt_id, phrase_index, unique_phrase, zeros,
                  *, heads, D, N, phrase, max_pt, max_m):
    F2 = params["gamma_w"].shape[1]

    # Embedding h_features: computed but never used downstream (as in the reference).
    _h_features = params["theta_h"][pt_id]

    # fused reduction-linear + softmax-over-phrase weights + scatter-add
    hidden_weights = pallas_weights_scatter(
        bert_feature, params["gamma_w"], params["gamma_b"], params["weights_w"],
        phrase_id, phrase)                                                        # (phrase, F2)

    hidden_feature = jnp.concatenate([hidden_weights, zeros], axis=0)[phrase_box]  # (D, max_m, F2)
    mask3 = (phrase_box == phrase).astype(jnp.float32)[:, None, :]                 # (D, 1, max_m)

    # two independent towers, two layers each: one fused pallas_call per layer,
    # tower axis in the grid (engages both TensorCores on v7x)
    layer1 = stack_towers(params["t21_1"], params["t22_1"])
    layer2 = stack_towers(params["t21_2"], params["t22_2"])
    y1 = transformer_layer(hidden_feature, mask3, layer1, heads, x_stacked=False)  # (2,D,m,F2)
    y2 = transformer_layer(y1, mask3, layer2, heads, x_stacked=True)               # (2,D,m,F2)

    flat = y2.reshape(2, D * max_m, F2)
    x1 = flat[0][phrase_index][feature_phrase[:, 0]]
    x2 = flat[1][phrase_index][feature_phrase[:, 1]]

    return pallas_dmf(x1, x2, distance, params["dmf"])


# ----------------------------------------------------------------------------- #
# Deterministic parameter / input construction
# ----------------------------------------------------------------------------- #
def _keygen(key):
    while True:
        key, sub = jax.random.split(key)
        yield sub


def xavier(kg, fan_in, fan_out):
    std = math.sqrt(2.0 / (fan_in + fan_out))
    return jax.random.normal(next(kg), (fan_in, fan_out), jnp.float32) * std


def make_params(kg, in1, in2, out_features, out_dim, classes, max_pt):
    def transformer_params():
        return {
            "wq": xavier(kg, in2, in2), "wk": xavier(kg, in2, in2),
            "wg": xavier(kg, in2, in2), "wo": xavier(kg, in2, in2),
            "ln2_g": jnp.ones((1, in2), jnp.float32),
            "ln2_b": jnp.zeros((1, in2), jnp.float32),
            "wf1": xavier(kg, in2, out_features),
            "wf2": xavier(kg, out_features, in2),
        }

    def bias(n):
        return 0.01 * jax.random.normal(next(kg), (1, n), jnp.float32)

    dmf = {
        "w11_0": xavier(kg, in2, out_dim), "b11_0": bias(out_dim),
        "w11_1": xavier(kg, in2, out_dim), "b11_1": bias(out_dim),
        "w12_0": xavier(kg, in2, out_dim), "b12_0": bias(out_dim),
        "w12_1": xavier(kg, in2, out_dim), "b12_1": bias(out_dim),
        "w21a": xavier(kg, out_dim, classes),       # first half of gamma21 (acts on ff1)
        "w21b": xavier(kg, out_dim, classes),       # second half of gamma21 (acts on ff2)
        "b21": bias(classes),
        "w22": xavier(kg, out_dim, classes),
    }

    return {
        "gamma_w": xavier(kg, in1, in2),
        "gamma_b": bias(in2),
        "theta_h": xavier(kg, max_pt, in2),
        "weights_w": xavier(kg, in1, 1),
        "t21_1": transformer_params(), "t21_2": transformer_params(),
        "t22_1": transformer_params(), "t22_2": transformer_params(),
        "dmf": dmf,
    }


if __name__ == "__main__":
    # hyperparameters (small, consistent with the module)
    heads, in_features1, in_features2 = 2, 48, 32
    out_features, out_dim, classes, max_pt, C = 64, 16, 3, 10, 2
    D, max_m = 2, 8          # number of "images" x max phrases per image
    N = 12                   # number of words
    phrase = 6               # number of unique phrases
    P = 5                    # number of phrase pairs fed to DMF
    L = 8                    # number of selected rows via phrase_index

    kg = _keygen(jax.random.PRNGKey(0))
    params = make_params(kg, in_features1, in_features2,
                         out_features, out_dim, classes, max_pt)

    bert_feature = jax.random.normal(next(kg), (N, in_features1), jnp.float32)
    phrase_id = jax.random.randint(next(kg), (N,), 0, phrase, jnp.int32)
    phrase_box = jax.random.randint(next(kg), (D, max_m), 0, phrase + 1, jnp.int32)  # == phrase -> padding
    pt_id = jax.random.randint(next(kg), (N,), 0, max_pt, jnp.int32)
    phrase_index = jax.random.randint(next(kg), (L,), 0, D * max_m, jnp.int32)
    feature_phrase = jax.random.randint(next(kg), (P, 2), 0, L, jnp.int32)
    distance = jax.random.uniform(next(kg), (P, 1), jnp.float32)
    unique_phrase = jnp.arange(phrase, dtype=jnp.int32)
    zeros = jnp.zeros((1, in_features2), jnp.float32)

    logit = joint_forward(params, bert_feature, feature_phrase, distance, phrase_id,
                          phrase_box, pt_id, phrase_index, unique_phrase, zeros,
                          heads=heads, D=D, N=N, phrase=phrase,
                          max_pt=max_pt, max_m=max_m)
    logit = jax.block_until_ready(logit)
    assert logit.shape == (P, classes) and logit.dtype == jnp.float32
    print("KERNEL_OK")
</pallas_src>

<mosaic_0001>
module attributes {stable_mosaic.version = 11 : i64} {
  func.func @kernel(%arg0: i32, %arg1: i32, %arg2: memref<1x1x8xf32, #tpu.memory_space<vmem>>, %arg3: memref<1x8x32xf32, #tpu.memory_space<vmem>>, %arg4: memref<1x32x96xf32, #tpu.memory_space<vmem>>, %arg5: memref<1x32x32xf32, #tpu.memory_space<vmem>>, %arg6: memref<1x1x32xf32, #tpu.memory_space<vmem>>, %arg7: memref<1x1x32xf32, #tpu.memory_space<vmem>>, %arg8: memref<1x32x64xf32, #tpu.memory_space<vmem>>, %arg9: memref<1x64x32xf32, #tpu.memory_space<vmem>>, %arg10: memref<1x1x8x32xf32, #tpu.memory_space<vmem>>) attributes {dimension_semantics = [#tpu.dimension_semantics<parallel>, #tpu.dimension_semantics<parallel>], iteration_bounds = array<i64: 2, 2>, scalar_prefetch = 0 : i64, scratch_operands = 0 : i64, tpu.core_type = #tpu.core_type<tc>, window_params = [{transform_indices = @transform_0, window_bounds = array<i64: 1, 1, 8>}, {transform_indices = @transform_1, window_bounds = array<i64: 1, 8, 32>}, {transform_indices = @transform_2, window_bounds = array<i64: 1, 32, 96>}, {transform_indices = @transform_3, window_bounds = array<i64: 1, 32, 32>}, {transform_indices = @transform_4, window_bounds = array<i64: 1, 1, 32>}, {transform_indices = @transform_5, window_bounds = array<i64: 1, 1, 32>}, {transform_indices = @transform_6, window_bounds = array<i64: 1, 32, 64>}, {transform_indices = @transform_7, window_bounds = array<i64: 1, 64, 32>}, {transform_indices = @transform_8, window_bounds = array<i64: 1, 1, 8, 32>}]} {
    %c0 = arith.constant 0 : index
    %c0_0 = arith.constant 0 : index
    %c0_1 = arith.constant 0 : index
    %0 = vector.load %arg3[%c0, %c0_0, %c0_1] : memref<1x8x32xf32, #tpu.memory_space<vmem>>, vector<1x8x32xf32>
    %1 = vector.shape_cast %0 : vector<1x8x32xf32> to vector<8x32xf32>
    %c0_2 = arith.constant 0 : index
    %c0_3 = arith.constant 0 : index
    %c0_4 = arith.constant 0 : index
    %2 = vector.load %arg2[%c0_2, %c0_3, %c0_4] : memref<1x1x8xf32, #tpu.memory_space<vmem>>, vector<1x1x8xf32>
    %3 = vector.shape_cast %2 : vector<1x1x8xf32> to vector<1x8xf32>
    %cst = arith.constant 5.000000e-01 : f32
    %4 = vector.broadcast %cst : f32 to vector<1x8xf32>
    %5 = arith.cmpf ogt, %3, %4 : vector<1x8xf32>
    %c0_5 = arith.constant 0 : index
    %c0_6 = arith.constant 0 : index
    %c0_7 = arith.constant 0 : index
    %6 = vector.load %arg4[%c0_5, %c0_6, %c0_7] : memref<1x32x96xf32, #tpu.memory_space<vmem>>, vector<1x32x96xf32>
    %7 = vector.shape_cast %6 : vector<1x32x96xf32> to vector<32x96xf32>
    %cst_8 = arith.constant dense<0.000000e+00> : vector<8x96xf32>
    %8 = tpu.matmul %1, %7, %cst_8 {dimension_numbers = #tpu.dot_dimension_numbers<[1], [0], [0], [1], [0, 0, 1, 1], [], []>} : vector<8x32xf32>, vector<32x96xf32>, vector<8x96xf32> -> vector<8x96xf32>
    %c0_9 = arith.constant 0 : index
    %c0_10 = arith.constant 0 : index
    %c0_11 = arith.constant 0 : index
    %9 = vector.load %arg5[%c0_9, %c0_10, %c0_11] : memref<1x32x32xf32, #tpu.memory_space<vmem>>, vector<1x32x32xf32>
    %10 = vector.shape_cast %9 : vector<1x32x32xf32> to vector<32x32xf32>
    %cst_12 = arith.constant 0.000000e+00 : f32
    %11 = vector.broadcast %cst_12 : f32 to vector<8x32xf32>
    %12 = vector.extract_strided_slice %8 {offsets = [0, 0], sizes = [8, 16], strides = [1, 1]} : vector<8x96xf32> to vector<8x16xf32>
    %13 = vector.extract_strided_slice %8 {offsets = [0, 32], sizes = [8, 16], strides = [1, 1]} : vector<8x96xf32> to vector<8x16xf32>
    %14 = vector.extract_strided_slice %8 {offsets = [0, 64], sizes = [8, 16], strides = [1, 1]} : vector<8x96xf32> to vector<8x16xf32>
    %cst_13 = arith.constant dense<0.000000e+00> : vector<8x8xf32>
    %15 = tpu.matmul %12, %13, %cst_13 {dimension_numbers = #tpu.dot_dimension_numbers<[1], [1], [0], [0], [0, 0, 1, 0], [], []>} : vector<8x16xf32>, vector<8x16xf32>, vector<8x8xf32> -> vector<8x8xf32>
    %cst_14 = arith.constant 2.500000e-01 : f32
    %16 = vector.broadcast %cst_14 : f32 to vector<8x8xf32>
    %17 = arith.mulf %15, %16 : vector<8x8xf32>
    %cst_15 = arith.constant -1.000000e+09 : f32
    %18 = vector.shape_cast %5 : vector<1x8xi1> to vector<1x8xi1>
    %19 = vector.broadcast %18 : vector<1x8xi1> to vector<8x8xi1>
    %20 = vector.broadcast %cst_15 : f32 to vector<8x8xf32>
    %21 = arith.select %19, %20, %17 : vector<8x8xi1>, vector<8x8xf32>
    %cst_16 = arith.constant dense<0xFF800000> : vector<8xf32>
    %22 = vector.multi_reduction <maximumf>, %21, %cst_16 [1] : vector<8x8xf32> to vector<8xf32>
    %23 = vector.shape_cast %22 : vector<8xf32> to vector<8x1xf32>
    %24 = vector.broadcast %23 : vector<8x1xf32> to vector<8x8xf32>
    %25 = arith.subf %21, %24 : vector<8x8xf32>
    %26 = math.exp %25 : vector<8x8xf32>
    %cst_17 = arith.constant dense<0.000000e+00> : vector<8xf32>
    %27 = vector.multi_reduction <add>, %26, %cst_17 [1] : vector<8x8xf32> to vector<8xf32>
    %28 = vector.shape_cast %27 : vector<8xf32> to vector<8x1xf32>
    %29 = vector.broadcast %28 : vector<8x1xf32> to vector<8x8xf32>
    %30 = arith.divf %26, %29 : vector<8x8xf32>
    %cst_18 = arith.constant dense<0.000000e+00> : vector<8x16xf32>
    %31 = tpu.matmul %30, %14, %cst_18 {dimension_numbers = #tpu.dot_dimension_numbers<[1], [0], [0], [1], [0, 0, 1, 1], [], []>} : vector<8x8xf32>, vector<8x16xf32>, vector<8x16xf32> -> vector<8x16xf32>
    %32 = vector.extract_strided_slice %10 {offsets = [0, 0], sizes = [16, 32], strides = [1, 1]} : vector<32x32xf32> to vector<16x32xf32>
    %cst_19 = arith.constant dense<0.000000e+00> : vector<8x32xf32>
    %33 = tpu.matmul %31, %32, %cst_19 {dimension_numbers = #tpu.dot_dimension_numbers<[1], [0], [0], [1], [0, 0, 1, 1], [], []>} : vector<8x16xf32>, vector<16x32xf32>, vector<8x32xf32> -> vector<8x32xf32>
    %34 = arith.addf %11, %33 : vector<8x32xf32>
    %35 = vector.extract_strided_slice %8 {offsets = [0, 16], sizes = [8, 16], strides = [1, 1]} : vector<8x96xf32> to vector<8x16xf32>
    %36 = vector.extract_strided_slice %8 {offsets = [0, 48], sizes = [8, 16], strides = [1, 1]} : vector<8x96xf32> to vector<8x16xf32>
    %37 = vector.extract_strided_slice %8 {offsets = [0, 80], sizes = [8, 16], strides = [1, 1]} : vector<8x96xf32> to vector<8x16xf32>
    %cst_20 = arith.constant dense<0.000000e+00> : vector<8x8xf32>
    %38 = tpu.matmul %35, %36, %cst_20 {dimension_numbers = #tpu.dot_dimension_numbers<[1], [1], [0], [0], [0, 0, 1, 0], [], []>} : vector<8x16xf32>, vector<8x16xf32>, vector<8x8xf32> -> vector<8x8xf32>
    %cst_21 = arith.constant 2.500000e-01 : f32
    %39 = vector.broadcast %cst_21 : f32 to vector<8x8xf32>
    %40 = arith.mulf %38, %39 : vector<8x8xf32>
    %cst_22 = arith.constant -1.000000e+09 : f32
    %41 = vector.shape_cast %5 : vector<1x8xi1> to vector<1x8xi1>
    %42 = vector.broadcast %41 : vector<1x8xi1> to vector<8x8xi1>
    %43 = vector.broadcast %cst_22 : f32 to vector<8x8xf32>
    %44 = arith.select %42, %43, %40 : vector<8x8xi1>, vector<8x8xf32>
    %cst_23 = arith.constant dense<0xFF800000> : vector<8xf32>
    %45 = vector.multi_reduction <maximumf>, %44, %cst_23 [1] : vector<8x8xf32> to vector<8xf32>
    %46 = vector.shape_cast %45 : vector<8xf32> to vector<8x1xf32>
    %47 = vector.broadcast %46 : vector<8x1xf32> to vector<8x8xf32>
    %48 = arith.subf %44, %47 : vector<8x8xf32>
    %49 = math.exp %48 : vector<8x8xf32>
    %cst_24 = arith.constant dense<0.000000e+00> : vector<8xf32>
    %50 = vector.multi_reduction <add>, %49, %cst_24 [1] : vector<8x8xf32> to vector<8xf32>
    %51 = vector.shape_cast %50 : vector<8xf32> to vector<8x1xf32>
    %52 = vector.broadcast %51 : vector<8x1xf32> to vector<8x8xf32>
    %53 = arith.divf %49, %52 : vector<8x8xf32>
    %cst_25 = arith.constant dense<0.000000e+00> : vector<8x16xf32>
    %54 = tpu.matmul %53, %37, %cst_25 {dimension_numbers = #tpu.dot_dimension_numbers<[1], [0], [0], [1], [0, 0, 1, 1], [], []>} : vector<8x8xf32>, vector<8x16xf32>, vector<8x16xf32> -> vector<8x16xf32>
    %55 = vector.extract_strided_slice %10 {offsets = [16, 0], sizes = [16, 32], strides = [1, 1]} : vector<32x32xf32> to vector<16x32xf32>
    %cst_26 = arith.constant dense<0.000000e+00> : vector<8x32xf32>
    %56 = tpu.matmul %54, %55, %cst_26 {dimension_numbers = #tpu.dot_dimension_numbers<[1], [0], [0], [1], [0, 0, 1, 1], [], []>} : vector<8x16xf32>, vector<16x32xf32>, vector<8x32xf32> -> vector<8x32xf32>
    %57 = arith.addf %34, %56 : vector<8x32xf32>
    %58 = arith.addf %1, %57 : vector<8x32xf32>
    %cst_27 = arith.constant dense<0.000000e+00> : vector<8xf32>
    %59 = vector.multi_reduction <add>, %58, %cst_27 [1] : vector<8x32xf32> to vector<8xf32>
    %60 = vector.shape_cast %59 : vector<8xf32> to vector<8x1xf32>
    %cst_28 = arith.constant 3.200000e+01 : f32
    %61 = vector.broadcast %cst_28 : f32 to vector<8x1xf32>
    %62 = arith.divf %60, %61 : vector<8x1xf32>
    %63 = vector.broadcast %62 : vector<8x1xf32> to vector<8x32xf32>
    %64 = arith.subf %58, %63 : vector<8x32xf32>
    %65 = vector.broadcast %62 : vector<8x1xf32> to vector<8x32xf32>
    %66 = arith.subf %58, %65 : vector<8x32xf32>
    %67 = arith.mulf %64, %66 : vector<8x32xf32>
    %cst_29 = arith.constant dense<0.000000e+00> : vector<8xf32>
    %68 = vector.multi_reduction <add>, %67, %cst_29 [1] : vector<8x32xf32> to vector<8xf32>
    %69 = vector.shape_cast %68 : vector<8xf32> to vector<8x1xf32>
    %cst_30 = arith.constant 3.200000e+01 : f32
    %70 = vector.broadcast %cst_30 : f32 to vector<8x1xf32>
    %71 = arith.divf %69, %70 : vector<8x1xf32>
    %72 = vector.broadcast %62 : vector<8x1xf32> to vector<8x32xf32>
    %73 = arith.subf %58, %72 : vector<8x32xf32>
    %cst_31 = arith.constant 9.99999974E-6 : f32
    %74 = vector.broadcast %cst_31 : f32 to vector<8x1xf32>
    %75 = arith.addf %71, %74 : vector<8x1xf32>
    %76 = math.rsqrt %75 : vector<8x1xf32>
    %77 = vector.broadcast %76 : vector<8x1xf32> to vector<8x32xf32>
    %78 = arith.mulf %73, %77 : vector<8x32xf32>
    %c0_32 = arith.constant 0 : index
    %c0_33 = arith.constant 0 : index
    %c0_34 = arith.constant 0 : index
    %79 = vector.load %arg6[%c0_32, %c0_33, %c0_34] : memref<1x1x32xf32, #tpu.memory_space<vmem>>, vector<1x1x32xf32>
    %80 = vector.shape_cast %79 : vector<1x1x32xf32> to vector<1x32xf32>
    %81 = vector.broadcast %80 : vector<1x32xf32> to vector<8x32xf32>
    %82 = arith.mulf %78, %81 : vector<8x32xf32>
    %c0_35 = arith.constant 0 : index
    %c0_36 = arith.constant 0 : index
    %c0_37 = arith.constant 0 : index
    %83 = vector.load %arg7[%c0_35, %c0_36, %c0_37] : memref<1x1x32xf32, #tpu.memory_space<vmem>>, vector<1x1x32xf32>
    %84 = vector.shape_cast %83 : vector<1x1x32xf32> to vector<1x32xf32>
    %85 = vector.broadcast %84 : vector<1x32xf32> to vector<8x32xf32>
    %86 = arith.addf %82, %85 : vector<8x32xf32>
    %c0_38 = arith.constant 0 : index
    %c0_39 = arith.constant 0 : index
    %c0_40 = arith.constant 0 : index
    %87 = vector.load %arg8[%c0_38, %c0_39, %c0_40] : memref<1x32x64xf32, #tpu.memory_space<vmem>>, vector<1x32x64xf32>
    %88 = vector.shape_cast %87 : vector<1x32x64xf32> to vector<32x64xf32>
    %cst_41 = arith.constant dense<0.000000e+00> : vector<8x64xf32>
    %89 = tpu.matmul %86, %88, %cst_41 {dimension_numbers = #tpu.dot_dimension_numbers<[1], [0], [0], [1], [0, 0, 1, 1], [], []>} : vector<8x32xf32>, vector<32x64xf32>, vector<8x64xf32> -> vector<8x64xf32>
    %cst_42 = arith.constant 0.000000e+00 : f32
    %90 = vector.broadcast %cst_42 : f32 to vector<8x64xf32>
    %91 = arith.maximumf %89, %90 : vector<8x64xf32>
    %c0_43 = arith.constant 0 : index
    %c0_44 = arith.constant 0 : index
    %c0_45 = arith.constant 0 : index
    %92 = vector.load %arg9[%c0_43, %c0_44, %c0_45] : memref<1x64x32xf32, #tpu.memory_space<vmem>>, vector<1x64x32xf32>
    %93 = vector.shape_cast %92 : vector<1x64x32xf32> to vector<64x32xf32>
    %cst_46 = arith.constant dense<0.000000e+00> : vector<8x32xf32>
    %94 = tpu.matmul %91, %93, %cst_46 {dimension_numbers = #tpu.dot_dimension_numbers<[1], [0], [0], [1], [0, 0, 1, 1], [], []>} : vector<8x64xf32>, vector<64x32xf32>, vector<8x32xf32> -> vector<8x32xf32>
    %95 = arith.addf %58, %94 : vector<8x32xf32>
    %c0_47 = arith.constant 0 : index
    %c0_48 = arith.constant 0 : index
    %c0_49 = arith.constant 0 : index
    %c0_50 = arith.constant 0 : index
    %96 = vector.load %arg10[%c0_47, %c0_48, %c0_49, %c0_50] : memref<1x1x8x32xf32, #tpu.memory_space<vmem>>, vector<1x1x8x32xf32>
    %97 = vector.shape_cast %96 : vector<1x1x8x32xf32> to vector<8x32xf32>
    %98 = vector.shape_cast %95 : vector<8x32xf32> to vector<1x1x8x32xf32>
    tpu.vector_store %arg10[%c0_47, %c0_48, %c0_49, %c0_50], %98 {strides = array<i32>} : memref<1x1x8x32xf32, #tpu.memory_space<vmem>>, vector<1x1x8x32xf32>,
    return
  }
  func.func @transform_0(%arg0: i32, %arg1: i32) -> (i32, i32, i32) {
    %c0_i32 = arith.constant 0 : i32
    %c0_i32_0 = arith.constant 0 : i32
    %c0_i32_1 = arith.constant 0 : i32
    return %arg1, %c0_i32, %c0_i32_0 : i32, i32, i32
  }
  func.func @transform_1(%arg0: i32, %arg1: i32) -> (i32, i32, i32) {
    %c0_i32 = arith.constant 0 : i32
    %c0_i32_0 = arith.constant 0 : i32
    %c0_i32_1 = arith.constant 0 : i32
    return %arg1, %c0_i32, %c0_i32_0 : i32, i32, i32
  }
  func.func @transform_2(%arg0: i32, %arg1: i32) -> (i32, i32, i32) {
    %c0_i32 = arith.constant 0 : i32
    %c0_i32_0 = arith.constant 0 : i32
    %c0_i32_1 = arith.constant 0 : i32
    return %arg0, %c0_i32, %c0_i32_0 : i32, i32, i32
  }
  func.func @transform_3(%arg0: i32, %arg1: i32) -> (i32, i32, i32) {
    %c0_i32 = arith.constant 0 : i32
    %c0_i32_0 = arith.constant 0 : i32
    %c0_i32_1 = arith.constant 0 : i32
    return %arg0, %c0_i32, %c0_i32_0 : i32, i32, i32
  }
  func.func @transform_4(%arg0: i32, %arg1: i32) -> (i32, i32, i32) {
    %c0_i32 = arith.constant 0 : i32
    %c0_i32_0 = arith.constant 0 : i32
    %c0_i32_1 = arith.constant 0 : i32
    return %arg0, %c0_i32, %c0_i32_0 : i32, i32, i32
  }
  func.func @transform_5(%arg0: i32, %arg1: i32) -> (i32, i32, i32) {
    %c0_i32 = arith.constant 0 : i32
    %c0_i32_0 = arith.constant 0 : i32
    %c0_i32_1 = arith.constant 0 : i32
    return %arg0, %c0_i32, %c0_i32_0 : i32, i32, i32
  }
  func.func @transform_6(%arg0: i32, %arg1: i32) -> (i32, i32, i32) {
    %c0_i32 = arith.constant 0 : i32
    %c0_i32_0 = arith.constant 0 : i32
    %c0_i32_1 = arith.constant 0 : i32
    return %arg0, %c0_i32, %c0_i32_0 : i32, i32, i32
  }
  func.func @transform_7(%arg0: i32, %arg1: i32) -> (i32, i32, i32) {
    %c0_i32 = arith.constant 0 : i32
    %c0_i32_0 = arith.constant 0 : i32
    %c0_i32_1 = arith.constant 0 : i32
    return %arg0, %c0_i32, %c0_i32_0 : i32, i32, i32
  }
  func.func @transform_8(%arg0: i32, %arg1: i32) -> (i32, i32, i32, i32) {
    %c0_i32 = arith.constant 0 : i32
    %c0_i32_0 = arith.constant 0 : i32
    %c0_i32_1 = arith.constant 0 : i32
    return %arg0, %arg1, %c0_i32, %c0_i32_0 : i32, i32, i32, i32
  }
}

module attributes {stable_mosaic.version = 11 : i64} {
  func.func @kernel(%arg0: memref<12x48xf32, #tpu.memory_space<vmem>>, %arg1: memref<48x32xf32, #tpu.memory_space<vmem>>, %arg2: memref<1x32xf32, #tpu.memory_space<vmem>>, %arg3: memref<48x1xf32, #tpu.memory_space<vmem>>, %arg4: memref<1x12xi32, #tpu.memory_space<vmem>>, %arg5: memref<12x1xi32, #tpu.memory_space<vmem>>, %arg6: memref<6x32xf32, #tpu.memory_space<vmem>>) attributes {dimension_semantics = [], scalar_prefetch = 0 : i64, scratch_operands = 0 : i64, tpu.core_type = #tpu.core_type<tc>} {
    %c0 = arith.constant 0 : index
    %c0_0 = arith.constant 0 : index
    %0 = vector.load %arg0[%c0, %c0_0] : memref<12x48xf32, #tpu.memory_space<vmem>>, vector<12x48xf32>
    %c0_1 = arith.constant 0 : index
    %c0_2 = arith.constant 0 : index
    %1 = vector.load %arg3[%c0_1, %c0_2] : memref<48x1xf32, #tpu.memory_space<vmem>>, vector<48x1xf32>
    %cst = arith.constant dense<0.000000e+00> : vector<12x1xf32>
    %2 = tpu.matmul %0, %1, %cst {dimension_numbers = #tpu.dot_dimension_numbers<[1], [0], [0], [1], [0, 0, 1, 1], [], []>} : vector<12x48xf32>, vector<48x1xf32>, vector<12x1xf32> -> vector<12x1xf32>
    %3 = math.exp %2 : vector<12x1xf32>
    %c0_3 = arith.constant 0 : index
    %c0_4 = arith.constant 0 : index
    %4 = vector.load %arg5[%c0_3, %c0_4] : memref<12x1xi32, #tpu.memory_space<vmem>>, vector<12x1xi32>
    %c0_5 = arith.constant 0 : index
    %c0_6 = arith.constant 0 : index
    %5 = vector.load %arg4[%c0_5, %c0_6] : memref<1x12xi32, #tpu.memory_space<vmem>>, vector<1x12xi32>
    %6 = vector.broadcast %4 : vector<12x1xi32> to vector<12x12xi32>
    %7 = vector.broadcast %5 : vector<1x12xi32> to vector<12x12xi32>
    %8 = arith.cmpi eq, %6, %7 : vector<12x12xi32>
    %9 = arith.extui %8 : vector<12x12xi1> to vector<12x12xi32>
    %10 = arith.sitofp %9 : vector<12x12xi32> to vector<12x12xf32>
    %cst_7 = arith.constant dense<0.000000e+00> : vector<12x1xf32>
    %11 = tpu.matmul %10, %3, %cst_7 {dimension_numbers = #tpu.dot_dimension_numbers<[1], [0], [0], [1], [0, 0, 1, 1], [], []>} : vector<12x12xf32>, vector<12x1xf32>, vector<12x1xf32> -> vector<12x1xf32>
    %12 = arith.divf %3, %11 : vector<12x1xf32>
    %c0_8 = arith.constant 0 : index
    %c0_9 = arith.constant 0 : index
    %13 = vector.load %arg1[%c0_8, %c0_9] : memref<48x32xf32, #tpu.memory_space<vmem>>, vector<48x32xf32>
    %cst_10 = arith.constant dense<0.000000e+00> : vector<12x32xf32>
    %14 = tpu.matmul %0, %13, %cst_10 {dimension_numbers = #tpu.dot_dimension_numbers<[1], [0], [0], [1], [0, 0, 1, 1], [], []>} : vector<12x48xf32>, vector<48x32xf32>, vector<12x32xf32> -> vector<12x32xf32>
    %c0_11 = arith.constant 0 : index
    %c0_12 = arith.constant 0 : index
    %15 = vector.load %arg2[%c0_11, %c0_12] : memref<1x32xf32, #tpu.memory_space<vmem>>, vector<1x32xf32>
    %16 = vector.broadcast %15 : vector<1x32xf32> to vector<12x32xf32>
    %17 = arith.addf %14, %16 : vector<12x32xf32>
    %cst_13 = arith.constant 0.000000e+00 : f32
    %18 = vector.broadcast %cst_13 : f32 to vector<12x32xf32>
    %19 = arith.maximumf %17, %18 : vector<12x32xf32>
    %20 = tpu.iota {dimensions = array<i32: 0>} : vector<6x12xi32>
    %c0_14 = arith.constant 0 : index
    %c0_15 = arith.constant 0 : index
    %21 = vector.load %arg4[%c0_14, %c0_15] : memref<1x12xi32, #tpu.memory_space<vmem>>, vector<1x12xi32>
    %22 = vector.broadcast %21 : vector<1x12xi32> to vector<6x12xi32>
    %23 = arith.cmpi eq, %20, %22 : vector<6x12xi32>
    %24 = arith.extui %23 : vector<6x12xi1> to vector<6x12xi32>
    %25 = arith.sitofp %24 : vector<6x12xi32> to vector<6x12xf32>
    %26 = vector.broadcast %12 : vector<12x1xf32> to vector<12x32xf32>
    %27 = arith.mulf %26, %19 : vector<12x32xf32>
    %cst_16 = arith.constant dense<0.000000e+00> : vector<6x32xf32>
    %28 = tpu.matmul %25, %27, %cst_16 {dimension_numbers = #tpu.dot_dimension_numbers<[1], [0], [0], [1], [0, 0, 1, 1], [], []>} : vector<6x12xf32>, vector<12x32xf32>, vector<6x32xf32> -> vector<6x32xf32>
    %c0_17 = arith.constant 0 : index
    %c0_18 = arith.constant 0 : index
    %29 = vector.load %arg6[%c0_17, %c0_18] : memref<6x32xf32, #tpu.memory_space<vmem>>, vector<6x32xf32>
    tpu.vector_store %arg6[%c0_17, %c0_18], %28 {strides = array<i32>} : memref<6x32xf32, #tpu.memory_space<vmem>>, vector<6x32xf32>,
    return
  }
}

module attributes {stable_mosaic.version = 11 : i64} {
  func.func @kernel(%arg0: i32, %arg1: i32, %arg2: memref<1x1x8xf32, #tpu.memory_space<vmem>>, %arg3: memref<1x1x8x32xf32, #tpu.memory_space<vmem>>, %arg4: memref<1x32x96xf32, #tpu.memory_space<vmem>>, %arg5: memref<1x32x32xf32, #tpu.memory_space<vmem>>, %arg6: memref<1x1x32xf32, #tpu.memory_space<vmem>>, %arg7: memref<1x1x32xf32, #tpu.memory_space<vmem>>, %arg8: memref<1x32x64xf32, #tpu.memory_space<vmem>>, %arg9: memref<1x64x32xf32, #tpu.memory_space<vmem>>, %arg10: memref<1x1x8x32xf32, #tpu.memory_space<vmem>>) attributes {dimension_semantics = [#tpu.dimension_semantics<parallel>, #tpu.dimension_semantics<parallel>], iteration_bounds = array<i64: 2, 2>, scalar_prefetch = 0 : i64, scratch_operands = 0 : i64, tpu.core_type = #tpu.core_type<tc>, window_params = [{transform_indices = @transform_0, window_bounds = array<i64: 1, 1, 8>}, {transform_indices = @transform_1, window_bounds = array<i64: 1, 1, 8, 32>}, {transform_indices = @transform_2, window_bounds = array<i64: 1, 32, 96>}, {transform_indices = @transform_3, window_bounds = array<i64: 1, 32, 32>}, {transform_indices = @transform_4, window_bounds = array<i64: 1, 1, 32>}, {transform_indices = @transform_5, window_bounds = array<i64: 1, 1, 32>}, {transform_indices = @transform_6, window_bounds = array<i64: 1, 32, 64>}, {transform_indices = @transform_7, window_bounds = array<i64: 1, 64, 32>}, {transform_indices = @transform_8, window_bounds = array<i64: 1, 1, 8, 32>}]} {
    %c0 = arith.constant 0 : index
    %c0_0 = arith.constant 0 : index
    %c0_1 = arith.constant 0 : index
    %c0_2 = arith.constant 0 : index
    %0 = vector.load %arg3[%c0, %c0_0, %c0_1, %c0_2] : memref<1x1x8x32xf32, #tpu.memory_space<vmem>>, vector<1x1x8x32xf32>
    %1 = vector.shape_cast %0 : vector<1x1x8x32xf32> to vector<8x32xf32>
    %c0_3 = arith.constant 0 : index
    %c0_4 = arith.constant 0 : index
    %c0_5 = arith.constant 0 : index
    %2 = vector.load %arg2[%c0_3, %c0_4, %c0_5] : memref<1x1x8xf32, #tpu.memory_space<vmem>>, vector<1x1x8xf32>
    %3 = vector.shape_cast %2 : vector<1x1x8xf32> to vector<1x8xf32>
    %cst = arith.constant 5.000000e-01 : f32
    %4 = vector.broadcast %cst : f32 to vector<1x8xf32>
    %5 = arith.cmpf ogt, %3, %4 : vector<1x8xf32>
    %c0_6 = arith.constant 0 : index
    %c0_7 = arith.constant 0 : index
    %c0_8 = arith.constant 0 : index
    %6 = vector.load %arg4[%c0_6, %c0_7, %c0_8] : memref<1x32x96xf32, #tpu.memory_space<vmem>>, vector<1x32x96xf32>
    %7 = vector.shape_cast %6 : vector<1x32x96xf32> to vector<32x96xf32>
    %cst_9 = arith.constant dense<0.000000e+00> : vector<8x96xf32>
    %8 = tpu.matmul %1, %7, %cst_9 {dimension_numbers = #tpu.dot_dimension_numbers<[1], [0], [0], [1], [0, 0, 1, 1], [], []>} : vector<8x32xf32>, vector<32x96xf32>, vector<8x96xf32> -> vector<8x96xf32>
    %c0_10 = arith.constant 0 : index
    %c0_11 = arith.constant 0 : index
    %c0_12 = arith.constant 0 : index
    %9 = vector.load %arg5[%c0_10, %c0_11, %c0_12] : memref<1x32x32xf32, #tpu.memory_space<vmem>>, vector<1x32x32xf32>
    %10 = vector.shape_cast %9 : vector<1x32x32xf32> to vector<32x32xf32>
    %cst_13 = arith.constant 0.000000e+00 : f32
    %11 = vector.broadcast %cst_13 : f32 to vector<8x32xf32>
    %12 = vector.extract_strided_slice %8 {offsets = [0, 0], sizes = [8, 16], strides = [1, 1]} : vector<8x96xf32> to vector<8x16xf32>
    %13 = vector.extract_strided_slice %8 {offsets = [0, 32], sizes = [8, 16], strides = [1, 1]} : vector<8x96xf32> to vector<8x16xf32>
    %14 = vector.extract_strided_slice %8 {offsets = [0, 64], sizes = [8, 16], strides = [1, 1]} : vector<8x96xf32> to vector<8x16xf32>
    %cst_14 = arith.constant dense<0.000000e+00> : vector<8x8xf32>
    %15 = tpu.matmul %12, %13, %cst_14 {dimension_numbers = #tpu.dot_dimension_numbers<[1], [1], [0], [0], [0, 0, 1, 0], [], []>} : vector<8x16xf32>, vector<8x16xf32>, vector<8x8xf32> -> vector<8x8xf32>
    %cst_15 = arith.constant 2.500000e-01 : f32
    %16 = vector.broadcast %cst_15 : f32 to vector<8x8xf32>
    %17 = arith.mulf %15, %16 : vector<8x8xf32>
    %cst_16 = arith.constant -1.000000e+09 : f32
    %18 = vector.shape_cast %5 : vector<1x8xi1> to vector<1x8xi1>
    %19 = vector.broadcast %18 : vector<1x8xi1> to vector<8x8xi1>
    %20 = vector.broadcast %cst_16 : f32 to vector<8x8xf32>
    %21 = arith.select %19, %20, %17 : vector<8x8xi1>, vector<8x8xf32>
    %cst_17 = arith.constant dense<0xFF800000> : vector<8xf32>
    %22 = vector.multi_reduction <maximumf>, %21, %cst_17 [1] : vector<8x8xf32> to vector<8xf32>
    %23 = vector.shape_cast %22 : vector<8xf32> to vector<8x1xf32>
    %24 = vector.broadcast %23 : vector<8x1xf32> to vector<8x8xf32>
    %25 = arith.subf %21, %24 : vector<8x8xf32>
    %26 = math.exp %25 : vector<8x8xf32>
    %cst_18 = arith.constant dense<0.000000e+00> : vector<8xf32>
    %27 = vector.multi_reduction <add>, %26, %cst_18 [1] : vector<8x8xf32> to vector<8xf32>
    %28 = vector.shape_cast %27 : vector<8xf32> to vector<8x1xf32>
    %29 = vector.broadcast %28 : vector<8x1xf32> to vector<8x8xf32>
    %30 = arith.divf %26, %29 : vector<8x8xf32>
    %cst_19 = arith.constant dense<0.000000e+00> : vector<8x16xf32>
    %31 = tpu.matmul %30, %14, %cst_19 {dimension_numbers = #tpu.dot_dimension_numbers<[1], [0], [0], [1], [0, 0, 1, 1], [], []>} : vector<8x8xf32>, vector<8x16xf32>, vector<8x16xf32> -> vector<8x16xf32>
    %32 = vector.extract_strided_slice %10 {offsets = [0, 0], sizes = [16, 32], strides = [1, 1]} : vector<32x32xf32> to vector<16x32xf32>
    %cst_20 = arith.constant dense<0.000000e+00> : vector<8x32xf32>
    %33 = tpu.matmul %31, %32, %cst_20 {dimension_numbers = #tpu.dot_dimension_numbers<[1], [0], [0], [1], [0, 0, 1, 1], [], []>} : vector<8x16xf32>, vector<16x32xf32>, vector<8x32xf32> -> vector<8x32xf32>
    %34 = arith.addf %11, %33 : vector<8x32xf32>
    %35 = vector.extract_strided_slice %8 {offsets = [0, 16], sizes = [8, 16], strides = [1, 1]} : vector<8x96xf32> to vector<8x16xf32>
    %36 = vector.extract_strided_slice %8 {offsets = [0, 48], sizes = [8, 16], strides = [1, 1]} : vector<8x96xf32> to vector<8x16xf32>
    %37 = vector.extract_strided_slice %8 {offsets = [0, 80], sizes = [8, 16], strides = [1, 1]} : vector<8x96xf32> to vector<8x16xf32>
    %cst_21 = arith.constant dense<0.000000e+00> : vector<8x8xf32>
    %38 = tpu.matmul %35, %36, %cst_21 {dimension_numbers = #tpu.dot_dimension_numbers<[1], [1], [0], [0], [0, 0, 1, 0], [], []>} : vector<8x16xf32>, vector<8x16xf32>, vector<8x8xf32> -> vector<8x8xf32>
    %cst_22 = arith.constant 2.500000e-01 : f32
    %39 = vector.broadcast %cst_22 : f32 to vector<8x8xf32>
    %40 = arith.mulf %38, %39 : vector<8x8xf32>
    %cst_23 = arith.constant -1.000000e+09 : f32
    %41 = vector.shape_cast %5 : vector<1x8xi1> to vector<1x8xi1>
    %42 = vector.broadcast %41 : vector<1x8xi1> to vector<8x8xi1>
    %43 = vector.broadcast %cst_23 : f32 to vector<8x8xf32>
    %44 = arith.select %42, %43, %40 : vector<8x8xi1>, vector<8x8xf32>
    %cst_24 = arith.constant dense<0xFF800000> : vector<8xf32>
    %45 = vector.multi_reduction <maximumf>, %44, %cst_24 [1] : vector<8x8xf32> to vector<8xf32>
    %46 = vector.shape_cast %45 : vector<8xf32> to vector<8x1xf32>
    %47 = vector.broadcast %46 : vector<8x1xf32> to vector<8x8xf32>
    %48 = arith.subf %44, %47 : vector<8x8xf32>
    %49 = math.exp %48 : vector<8x8xf32>
    %cst_25 = arith.constant dense<0.000000e+00> : vector<8xf32>
    %50 = vector.multi_reduction <add>, %49, %cst_25 [1] : vector<8x8xf32> to vector<8xf32>
    %51 = vector.shape_cast %50 : vector<8xf32> to vector<8x1xf32>
    %52 = vector.broadcast %51 : vector<8x1xf32> to vector<8x8xf32>
    %53 = arith.divf %49, %52 : vector<8x8xf32>
    %cst_26 = arith.constant dense<0.000000e+00> : vector<8x16xf32>
    %54 = tpu.matmul %53, %37, %cst_26 {dimension_numbers = #tpu.dot_dimension_numbers<[1], [0], [0], [1], [0, 0, 1, 1], [], []>} : vector<8x8xf32>, vector<8x16xf32>, vector<8x16xf32> -> vector<8x16xf32>
    %55 = vector.extract_strided_slice %10 {offsets = [16, 0], sizes = [16, 32], strides = [1, 1]} : vector<32x32xf32> to vector<16x32xf32>
    %cst_27 = arith.constant dense<0.000000e+00> : vector<8x32xf32>
    %56 = tpu.matmul %54, %55, %cst_27 {dimension_numbers = #tpu.dot_dimension_numbers<[1], [0], [0], [1], [0, 0, 1, 1], [], []>} : vector<8x16xf32>, vector<16x32xf32>, vector<8x32xf32> -> vector<8x32xf32>
    %57 = arith.addf %34, %56 : vector<8x32xf32>
    %58 = arith.addf %1, %57 : vector<8x32xf32>
    %cst_28 = arith.constant dense<0.000000e+00> : vector<8xf32>
    %59 = vector.multi_reduction <add>, %58, %cst_28 [1] : vector<8x32xf32> to vector<8xf32>
    %60 = vector.shape_cast %59 : vector<8xf32> to vector<8x1xf32>
    %cst_29 = arith.constant 3.200000e+01 : f32
    %61 = vector.broadcast %cst_29 : f32 to vector<8x1xf32>
    %62 = arith.divf %60, %61 : vector<8x1xf32>
    %63 = vector.broadcast %62 : vector<8x1xf32> to vector<8x32xf32>
    %64 = arith.subf %58, %63 : vector<8x32xf32>
    %65 = vector.broadcast %62 : vector<8x1xf32> to vector<8x32xf32>
    %66 = arith.subf %58, %65 : vector<8x32xf32>
    %67 = arith.mulf %64, %66 : vector<8x32xf32>
    %cst_30 = arith.constant dense<0.000000e+00> : vector<8xf32>
    %68 = vector.multi_reduction <add>, %67, %cst_30 [1] : vector<8x32xf32> to vector<8xf32>
    %69 = vector.shape_cast %68 : vector<8xf32> to vector<8x1xf32>
    %cst_31 = arith.constant 3.200000e+01 : f32
    %70 = vector.broadcast %cst_31 : f32 to vector<8x1xf32>
    %71 = arith.divf %69, %70 : vector<8x1xf32>
    %72 = vector.broadcast %62 : vector<8x1xf32> to vector<8x32xf32>
    %73 = arith.subf %58, %72 : vector<8x32xf32>
    %cst_32 = arith.constant 9.99999974E-6 : f32
    %74 = vector.broadcast %cst_32 : f32 to vector<8x1xf32>
    %75 = arith.addf %71, %74 : vector<8x1xf32>
    %76 = math.rsqrt %75 : vector<8x1xf32>
    %77 = vector.broadcast %76 : vector<8x1xf32> to vector<8x32xf32>
    %78 = arith.mulf %73, %77 : vector<8x32xf32>
    %c0_33 = arith.constant 0 : index
    %c0_34 = arith.constant 0 : index
    %c0_35 = arith.constant 0 : index
    %79 = vector.load %arg6[%c0_33, %c0_34, %c0_35] : memref<1x1x32xf32, #tpu.memory_space<vmem>>, vector<1x1x32xf32>
    %80 = vector.shape_cast %79 : vector<1x1x32xf32> to vector<1x32xf32>
    %81 = vector.broadcast %80 : vector<1x32xf32> to vector<8x32xf32>
    %82 = arith.mulf %78, %81 : vector<8x32xf32>
    %c0_36 = arith.constant 0 : index
    %c0_37 = arith.constant 0 : index
    %c0_38 = arith.constant 0 : index
    %83 = vector.load %arg7[%c0_36, %c0_37, %c0_38] : memref<1x1x32xf32, #tpu.memory_space<vmem>>, vector<1x1x32xf32>
    %84 = vector.shape_cast %83 : vector<1x1x32xf32> to vector<1x32xf32>
    %85 = vector.broadcast %84 : vector<1x32xf32> to vector<8x32xf32>
    %86 = arith.addf %82, %85 : vector<8x32xf32>
    %c0_39 = arith.constant 0 : index
    %c0_40 = arith.constant 0 : index
    %c0_41 = arith.constant 0 : index
    %87 = vector.load %arg8[%c0_39, %c0_40, %c0_41] : memref<1x32x64xf32, #tpu.memory_space<vmem>>, vector<1x32x64xf32>
    %88 = vector.shape_cast %87 : vector<1x32x64xf32> to vector<32x64xf32>
    %cst_42 = arith.constant dense<0.000000e+00> : vector<8x64xf32>
    %89 = tpu.matmul %86, %88, %cst_42 {dimension_numbers = #tpu.dot_dimension_numbers<[1], [0], [0], [1], [0, 0, 1, 1], [], []>} : vector<8x32xf32>, vector<32x64xf32>, vector<8x64xf32> -> vector<8x64xf32>
    %cst_43 = arith.constant 0.000000e+00 : f32
    %90 = vector.broadcast %cst_43 : f32 to vector<8x64xf32>
    %91 = arith.maximumf %89, %90 : vector<8x64xf32>
    %c0_44 = arith.constant 0 : index
    %c0_45 = arith.constant 0 : index
    %c0_46 = arith.constant 0 : index
    %92 = vector.load %arg9[%c0_44, %c0_45, %c0_46] : memref<1x64x32xf32, #tpu.memory_space<vmem>>, vector<1x64x32xf32>
    %93 = vector.shape_cast %92 : vector<1x64x32xf32> to vector<64x32xf32>
    %cst_47 = arith.constant dense<0.000000e+00> : vector<8x32xf32>
    %94 = tpu.matmul %91, %93, %cst_47 {dimension_numbers = #tpu.dot_dimension_numbers<[1], [0], [0], [1], [0, 0, 1, 1], [], []>} : vector<8x64xf32>, vector<64x32xf32>, vector<8x32xf32> -> vector<8x32xf32>
    %95 = arith.addf %58, %94 : vector<8x32xf32>
    %c0_48 = arith.constant 0 : index
    %c0_49 = arith.constant 0 : index
    %c0_50 = arith.constant 0 : index
    %c0_51 = arith.constant 0 : index
    %96 = vector.load %arg10[%c0_48, %c0_49, %c0_50, %c0_51] : memref<1x1x8x32xf32, #tpu.memory_space<vmem>>, vector<1x1x8x32xf32>
    %97 = vector.shape_cast %96 : vector<1x1x8x32xf32> to vector<8x32xf32>
    %98 = vector.shape_cast %95 : vector<8x32xf32> to vector<1x1x8x32xf32>
    tpu.vector_store %arg10[%c0_48, %c0_49, %c0_50, %c0_51], %98 {strides = array<i32>} : memref<1x1x8x32xf32, #tpu.memory_space<vmem>>, vector<1x1x8x32xf32>,
    return
  }
  func.func @transform_0(%arg0: i32, %arg1: i32) -> (i32, i32, i32) {
    %c0_i32 = arith.constant 0 : i32
    %c0_i32_0 = arith.constant 0 : i32
    %c0_i32_1 = arith.constant 0 : i32
    return %arg1, %c0_i32, %c0_i32_0 : i32, i32, i32
  }
  func.func @transform_1(%arg0: i32, %arg1: i32) -> (i32, i32, i32, i32) {
    %c0_i32 = arith.constant 0 : i32
    %c0_i32_0 = arith.constant 0 : i32
    %c0_i32_1 = arith.constant 0 : i32
    return %arg0, %arg1, %c0_i32, %c0_i32_0 : i32, i32, i32, i32
  }
  func.func @transform_2(%arg0: i32, %arg1: i32) -> (i32, i32, i32) {
    %c0_i32 = arith.constant 0 : i32
    %c0_i32_0 = arith.constant 0 : i32
    %c0_i32_1 = arith.constant 0 : i32
    return %arg0, %c0_i32, %c0_i32_0 : i32, i32, i32
  }
  func.func @transform_3(%arg0: i32, %arg1: i32) -> (i32, i32, i32) {
    %c0_i32 = arith.constant 0 : i32
    %c0_i32_0 = arith.constant 0 : i32
    %c0_i32_1 = arith.constant 0 : i32
    return %arg0, %c0_i32, %c0_i32_0 : i32, i32, i32
  }
  func.func @transform_4(%arg0: i32, %arg1: i32) -> (i32, i32, i32) {
    %c0_i32 = arith.constant 0 : i32
    %c0_i32_0 = arith.constant 0 : i32
    %c0_i32_1 = arith.constant 0 : i32
    return %arg0, %c0_i32, %c0_i32_0 : i32, i32, i32
  }
  func.func @transform_5(%arg0: i32, %arg1: i32) -> (i32, i32, i32) {
    %c0_i32 = arith.constant 0 : i32
    %c0_i32_0 = arith.constant 0 : i32
    %c0_i32_1 = arith.constant 0 : i32
    return %arg0, %c0_i32, %c0_i32_0 : i32, i32, i32
  }
  func.func @transform_6(%arg0: i32, %arg1: i32) -> (i32, i32, i32) {
    %c0_i32 = arith.constant 0 : i32
    %c0_i32_0 = arith.constant 0 : i32
    %c0_i32_1 = arith.constant 0 : i32
    return %arg0, %c0_i32, %c0_i32_0 : i32, i32, i32
  }
  func.func @transform_7(%arg0: i32, %arg1: i32) -> (i32, i32, i32) {
    %c0_i32 = arith.constant 0 : i32
    %c0_i32_0 = arith.constant 0 : i32
    %c0_i32_1 = arith.constant 0 : i32
    return %arg0, %c0_i32, %c0_i32_0 : i32, i32, i32
  }
  func.func @transform_8(%arg0: i32, %arg1: i32) -> (i32, i32, i32, i32) {
    %c0_i32 = arith.constant 0 : i32
    %c0_i32_0 = arith.constant 0 : i32
    %c0_i32_1 = arith.constant 0 : i32
    return %arg0, %arg1, %c0_i32, %c0_i32_0 : i32, i32, i32, i32
  }
}

module attributes {stable_mosaic.version = 11 : i64} {
  func.func @kernel(%arg0: memref<5x32xf32, #tpu.memory_space<vmem>>, %arg1: memref<5x32xf32, #tpu.memory_space<vmem>>, %arg2: memref<5x1xf32, #tpu.memory_space<vmem>>, %arg3: memref<32x32xf32, #tpu.memory_space<vmem>>, %arg4: memref<1x32xf32, #tpu.memory_space<vmem>>, %arg5: memref<32x32xf32, #tpu.memory_space<vmem>>, %arg6: memref<1x32xf32, #tpu.memory_space<vmem>>, %arg7: memref<16x3xf32, #tpu.memory_space<vmem>>, %arg8: memref<16x3xf32, #tpu.memory_space<vmem>>, %arg9: memref<1x3xf32, #tpu.memory_space<vmem>>, %arg10: memref<16x3xf32, #tpu.memory_space<vmem>>, %arg11: memref<5x3xf32, #tpu.memory_space<vmem>>) attributes {dimension_semantics = [], scalar_prefetch = 0 : i64, scratch_operands = 0 : i64, tpu.core_type = #tpu.core_type<tc>} {
    %c0 = arith.constant 0 : index
    %c0_0 = arith.constant 0 : index
    %0 = vector.load %arg2[%c0, %c0_0] : memref<5x1xf32, #tpu.memory_space<vmem>>, vector<5x1xf32>
    %c0_1 = arith.constant 0 : index
    %c0_2 = arith.constant 0 : index
    %1 = vector.load %arg0[%c0_1, %c0_2] : memref<5x32xf32, #tpu.memory_space<vmem>>, vector<5x32xf32>
    %c0_3 = arith.constant 0 : index
    %c0_4 = arith.constant 0 : index
    %2 = vector.load %arg3[%c0_3, %c0_4] : memref<32x32xf32, #tpu.memory_space<vmem>>, vector<32x32xf32>
    %cst = arith.constant dense<0.000000e+00> : vector<5x32xf32>
    %3 = tpu.matmul %1, %2, %cst {dimension_numbers = #tpu.dot_dimension_numbers<[1], [0], [0], [1], [0, 0, 1, 1], [], []>} : vector<5x32xf32>, vector<32x32xf32>, vector<5x32xf32> -> vector<5x32xf32>
    %c0_5 = arith.constant 0 : index
    %c0_6 = arith.constant 0 : index
    %4 = vector.load %arg4[%c0_5, %c0_6] : memref<1x32xf32, #tpu.memory_space<vmem>>, vector<1x32xf32>
    %5 = vector.broadcast %4 : vector<1x32xf32> to vector<5x32xf32>
    %6 = arith.addf %3, %5 : vector<5x32xf32>
    %7 = vector.extract_strided_slice %6 {offsets = [0, 0], sizes = [5, 16], strides = [1, 1]} : vector<5x32xf32> to vector<5x16xf32>
    %8 = vector.broadcast %0 : vector<5x1xf32> to vector<5x16xf32>
    %9 = arith.mulf %8, %7 : vector<5x16xf32>
    %cst_7 = arith.constant 1.000000e+00 : f32
    %10 = vector.broadcast %cst_7 : f32 to vector<5x1xf32>
    %11 = arith.subf %10, %0 : vector<5x1xf32>
    %12 = vector.extract_strided_slice %6 {offsets = [0, 16], sizes = [5, 16], strides = [1, 1]} : vector<5x32xf32> to vector<5x16xf32>
    %13 = vector.broadcast %11 : vector<5x1xf32> to vector<5x16xf32>
    %14 = arith.mulf %13, %12 : vector<5x16xf32>
    %15 = arith.addf %9, %14 : vector<5x16xf32>
    %cst_8 = arith.constant 0.000000e+00 : f32
    %16 = vector.broadcast %cst_8 : f32 to vector<5x16xf32>
    %17 = arith.maximumf %15, %16 : vector<5x16xf32>
    %c0_9 = arith.constant 0 : index
    %c0_10 = arith.constant 0 : index
    %18 = vector.load %arg1[%c0_9, %c0_10] : memref<5x32xf32, #tpu.memory_space<vmem>>, vector<5x32xf32>
    %c0_11 = arith.constant 0 : index
    %c0_12 = arith.constant 0 : index
    %19 = vector.load %arg5[%c0_11, %c0_12] : memref<32x32xf32, #tpu.memory_space<vmem>>, vector<32x32xf32>
    %cst_13 = arith.constant dense<0.000000e+00> : vector<5x32xf32>
    %20 = tpu.matmul %18, %19, %cst_13 {dimension_numbers = #tpu.dot_dimension_numbers<[1], [0], [0], [1], [0, 0, 1, 1], [], []>} : vector<5x32xf32>, vector<32x32xf32>, vector<5x32xf32> -> vector<5x32xf32>
    %c0_14 = arith.constant 0 : index
    %c0_15 = arith.constant 0 : index
    %21 = vector.load %arg6[%c0_14, %c0_15] : memref<1x32xf32, #tpu.memory_space<vmem>>, vector<1x32xf32>
    %22 = vector.broadcast %21 : vector<1x32xf32> to vector<5x32xf32>
    %23 = arith.addf %20, %22 : vector<5x32xf32>
    %24 = vector.extract_strided_slice %23 {offsets = [0, 0], sizes = [5, 16], strides = [1, 1]} : vector<5x32xf32> to vector<5x16xf32>
    %25 = vector.broadcast %0 : vector<5x1xf32> to vector<5x16xf32>
    %26 = arith.mulf %25, %24 : vector<5x16xf32>
    %cst_16 = arith.constant 1.000000e+00 : f32
    %27 = vector.broadcast %cst_16 : f32 to vector<5x1xf32>
    %28 = arith.subf %27, %0 : vector<5x1xf32>
    %29 = vector.extract_strided_slice %23 {offsets = [0, 16], sizes = [5, 16], strides = [1, 1]} : vector<5x32xf32> to vector<5x16xf32>
    %30 = vector.broadcast %28 : vector<5x1xf32> to vector<5x16xf32>
    %31 = arith.mulf %30, %29 : vector<5x16xf32>
    %32 = arith.addf %26, %31 : vector<5x16xf32>
    %cst_17 = arith.constant 0.000000e+00 : f32
    %33 = vector.broadcast %cst_17 : f32 to vector<5x16xf32>
    %34 = arith.maximumf %32, %33 : vector<5x16xf32>
    %c0_18 = arith.constant 0 : index
    %c0_19 = arith.constant 0 : index
    %35 = vector.load %arg7[%c0_18, %c0_19] : memref<16x3xf32, #tpu.memory_space<vmem>>, vector<16x3xf32>
    %cst_20 = arith.constant dense<0.000000e+00> : vector<5x3xf32>
    %36 = tpu.matmul %17, %35, %cst_20 {dimension_numbers = #tpu.dot_dimension_numbers<[1], [0], [0], [1], [0, 0, 1, 1], [], []>} : vector<5x16xf32>, vector<16x3xf32>, vector<5x3xf32> -> vector<5x3xf32>
    %c0_21 = arith.constant 0 : index
    %c0_22 = arith.constant 0 : index
    %37 = vector.load %arg8[%c0_21, %c0_22] : memref<16x3xf32, #tpu.memory_space<vmem>>, vector<16x3xf32>
    %cst_23 = arith.constant dense<0.000000e+00> : vector<5x3xf32>
    %38 = tpu.matmul %34, %37, %cst_23 {dimension_numbers = #tpu.dot_dimension_numbers<[1], [0], [0], [1], [0, 0, 1, 1], [], []>} : vector<5x16xf32>, vector<16x3xf32>, vector<5x3xf32> -> vector<5x3xf32>
    %39 = arith.addf %36, %38 : vector<5x3xf32>
    %40 = arith.mulf %17, %34 : vector<5x16xf32>
    %c0_24 = arith.constant 0 : index
    %c0_25 = arith.constant 0 : index
    %41 = vector.load %arg10[%c0_24, %c0_25] : memref<16x3xf32, #tpu.memory_space<vmem>>, vector<16x3xf32>
    %cst_26 = arith.constant dense<0.000000e+00> : vector<5x3xf32>
    %42 = tpu.matmul %40, %41, %cst_26 {dimension_numbers = #tpu.dot_dimension_numbers<[1], [0], [0], [1], [0, 0, 1, 1], [], []>} : vector<5x16xf32>, vector<16x3xf32>, vector<5x3xf32> -> vector<5x3xf32>
    %43 = arith.addf %39, %42 : vector<5x3xf32>
    %c0_27 = arith.constant 0 : index
    %c0_28 = arith.constant 0 : index
    %44 = vector.load %arg9[%c0_27, %c0_28] : memref<1x3xf32, #tpu.memory_space<vmem>>, vector<1x3xf32>
    %45 = vector.broadcast %44 : vector<1x3xf32> to vector<5x3xf32>
    %46 = arith.addf %43, %45 : vector<5x3xf32>
    %c0_29 = arith.constant 0 : index
    %c0_30 = arith.constant 0 : index
    %47 = vector.load %arg11[%c0_29, %c0_30] : memref<5x3xf32, #tpu.memory_space<vmem>>, vector<5x3xf32>
    tpu.vector_store %arg11[%c0_29, %c0_30], %46 {strides = array<i32>} : memref<5x3xf32, #tpu.memory_space<vmem>>, vector<5x3xf32>,
    return
  }
}

</mosaic_0001>

<llo_original>
// kernel: joint_forward.4
$region0: #{joint_forward.4}
  #allocation0 [shape = 'u32[]', space=smem, size = 0x4, offset = 0x4, fixed_abs, tag = 'smem constant byte address 0x4 - core index']
  #allocation1 [shape = 'u32[144,128]{1,0:T(1,128)}', space=vmem, size = 0x12000, scoped, tag = 'internal scratch']
  %s0 = inlined_call_operand.vmem [shape: f32[12,48], index: 0, kind: input, shape index: {}]
  %s1 = inlined_call_operand.vmem [shape: f32[48,32], index: 1, kind: input, shape index: {}]
  %s2 = inlined_call_operand.vmem [shape: f32[1,32], index: 2, kind: input, shape index: {}]
  %s3 = inlined_call_operand.vmem [shape: f32[48,1], index: 3, kind: input, shape index: {}]
  %s4 = inlined_call_operand.vmem [shape: s32[1,12], index: 4, kind: input, shape index: {}]
  %s5 = inlined_call_operand.vmem [shape: s32[12,1], index: 5, kind: input, shape index: {}]
  %s6 = inlined_call_operand.vmem [shape: f32[6,32], index: 6, kind: output, shape index: {}]
  %s7 = sld [smem:[#allocation0]]
  $region34: #{joint_forward.4} parent=0
    _
  %s9 = ssub.s32 1, %s7
  %s10 = scalar_select 0, %s9, %s7
  // Predicated region
  $region2: #{joint_forward.4} parent=0 // pred_check
    _
  $region3: #{joint_forward.4} parent=0 // pred_check_branch
    %12 = sbr.rel (0) target = $region5
  $region4: #{joint_forward.4} parent=0 // pred_region
    _
  $region5: #{joint_forward.4} parent=0 // pred_fallthru
    _
  // Predicated region
  $region6: #{joint_forward.4} parent=0 // pred_check
    _
  $region7: #{joint_forward.4} parent=0 // pred_check_branch
    %14 = sbr.rel (0) target = $region9
  $region8: #{joint_forward.4} parent=0 // pred_region
    _
  $region9: #{joint_forward.4} parent=0 // pred_fallthru
    _
  // Predicated region
  $region10: #{joint_forward.4} parent=0 // pred_check
    _
  $region11: #{joint_forward.4} parent=0 // pred_check_branch
    %16 = sbr.rel (0) target = $region13
  $region12: #{joint_forward.4} parent=0 // pred_region
    _
  $region13: #{joint_forward.4} parent=0 // pred_fallthru
    _
  // Predicated region
  $region14: #{joint_forward.4} parent=0 // pred_check
    _
  $region15: #{joint_forward.4} parent=0 // pred_check_branch
    %18 = sbr.rel (0) target = $region17
  $region16: #{joint_forward.4} parent=0 // pred_region
    _
  $region17: #{joint_forward.4} parent=0 // pred_fallthru
    _
  // Predicated region
  $region18: #{joint_forward.4} parent=0 // pred_check
    _
  $region19: #{joint_forward.4} parent=0 // pred_check_branch
    %20 = sbr.rel (0) target = $region21
  $region20: #{joint_forward.4} parent=0 // pred_region
    _
  $region21: #{joint_forward.4} parent=0 // pred_fallthru
    _
  // Predicated region
  $region22: #{joint_forward.4} parent=0 // pred_check
    _
  $region23: #{joint_forward.4} parent=0 // pred_check_branch
    %22 = sbr.rel (0) target = $region25
  $region24: #{joint_forward.4} parent=0 // pred_region
    _
  $region25: #{joint_forward.4} parent=0 // pred_fallthru
    _
  %v23 = vld [vmem:[%s0] sm:$0xff]
  %v24 = vld [vmem:[%s0 + $0x8] sm:$0xf]
  %v25 = vld [vmem:[%s3] sm:$0xff]
  %v26 = vld [vmem:[%s3 + $0x8] sm:$0xff]
  %v27 = vld [vmem:[%s3 + $0x10] sm:$0xff]
  %v28 = vld [vmem:[%s3 + $0x18] sm:$0xff]
  %v29 = vld [vmem:[%s3 + $0x20] sm:$0xff]
  %v30 = vld [vmem:[%s3 + $0x28] sm:$0xff]
  %vm31 = vcmask 392192
  %v33 = vsel %vm31, %v23, 0
  %v36 = vsel %vm31, %v24, 0
  %38 = vmatprep.subr.mxu0 0.0
  %39 = vmatpush1.msra.mxu0 0.0
  %40 = vmatprep.subr.mxu0 0.0
  %41 = vmatpush1.msra.mxu0 0.0
  %42 = vmatprep.subr.mxu0 0.0
  %43 = vmatpush1.msra.mxu0 0.0
  %44 = vmatprep.subr.mxu0 0.0
  %45 = vmatpush1.msra.mxu0 0.0
  %46 = vmatprep.subr.mxu0 0.0
  %47 = vmatpush1.msra.mxu0 0.0
  %48 = vmatprep.subr.mxu0 0.0
  %49 = vmatpush1.msra.mxu0 0.0
  %50 = vmatprep.subr.mxu0 0.0
  %51 = vmatpush1.msra.mxu0 0.0
  %52 = vmatprep.subr.mxu0 0.0
  %53 = vmatpush1.msra.mxu0 0.0
  %54 = vmatprep.subr.mxu0 0.0
  %55 = vmatpush1.msra.mxu0 0.0
  %56 = vmatprep.subr.mxu0 0.0
  %57 = vmatpush1.msra.mxu0 0.0
  %58 = vmatprep.subr.mxu0 0.0
  %59 = vmatpush1.msra.mxu0 %v30
  %60 = vmatprep.subr.mxu0 0.0
  %61 = vmatpush1.msra.mxu0 %v29
  %62 = vmatprep.subr.mxu0 0.0
  %63 = vmatpush1.msra.mxu0 %v28
  %64 = vmatprep.subr.mxu0 0.0
  %65 = vmatpush1.msra.mxu0 %v27
  %66 = vmatprep.subr.mxu0 0.0
  %67 = vmatpush1.msra.mxu0 %v26
  %68 = vmatprep.subr.mxu0 0.0
  %69 = vmatpush1.msra.mxu0 %v25
  %70 = vmatprep.subr.mxu0 0.0
  %71 = vmatpush2.msra.mxu0 0.0
  %72 = vmatprep.subr.mxu0 0.0
  %73 = vmatpush2.msra.mxu0 0.0
  %74 = vmatprep.subr.mxu0 0.0
  %75 = vmatpush2.msra.mxu0 0.0
  %76 = vmatprep.subr.mxu0 0.0
  %77 = vmatpush2.msra.mxu0 0.0
  %78 = vmatprep.subr.mxu0 0.0
  %79 = vmatpush2.msra.mxu0 0.0
  %80 = vmatprep.subr.mxu0 0.0
  %81 = vmatpush2.msra.mxu0 0.0
  %82 = vmatprep.subr.mxu0 0.0
  %83 = vmatpush2.msra.mxu0 0.0
  %84 = vmatprep.subr.mxu0 0.0
  %85 = vmatpush2.msra.mxu0 0.0
  %86 = vmatprep.subr.mxu0 0.0
  %87 = vmatpush2.msra.mxu0 0.0
  %88 = vmatprep.subr.mxu0 0.0
  %89 = vmatpush2.msra.mxu0 0.0
  %90 = vmatprep.subr.mxu0 0.0
  %91 = vmatpush2.msra.mxu0 0.0
  %92 = vmatprep.subr.mxu0 0.0
  %93 = vmatpush2.msra.mxu0 0.0
  %94 = vmatprep.subr.mxu0 0.0
  %95 = vmatpush2.msra.mxu0 0.0
  %96 = vmatprep.subr.mxu0 0.0
  %97 = vmatpush2.msra.mxu0 0.0
  %98 = vmatprep.subr.mxu0 0.0
  %99 = vmatpush2.msra.mxu0 0.0
  %100 = vmatprep.subr.mxu0 0.0
  %101 = vmatpush2.msra.mxu0 0.0
  %102 = vmatprep.mubr.f32.mxu0 0.0
  %103 = vmatmul.mubr.f32.gmra.mxu0 %v33
  %v104 = vpop.f32.mrf.mxu0
  %v105 = vadd.f32 0.0, %v104
  %v106 = vpop.f32.mrf.mxu0
  %107 = vmatprep.mubr.f32.mxu0 0.0
  %108 = vmatmul.mubr.f32.gmra.mxu0 %v36
  %v109 = vpop.f32.mrf.mxu0
  %v110 = vadd.f32 0.0, %v109
  %v111 = vpop.f32.mrf.mxu0
  %112 = vdwg.mxu0
  %v113 = vmul.f32 %v105, 1.442695
  %v114 = vpow.pop %v113
  %v115 = vmul.f32 %v110, 1.442695
  %v116 = vpow.pop %v115
  %v117 = vld [vmem:[%s5] sm:$0xff]
  %v118 = vld [vmem:[%s5 + $0x8] sm:$0xf]
  %v119 = vld [vmem:[%s4] sm:$0x1]
  %120 = vset.pattern.permute.xlu0 0
  %121 = vperm.xlu0 %120, %v117
  %v122 = vpop.permute.xlu0 %121
  %123 = vset.pattern.permute.xlu0 0
  %124 = vperm.xlu0 %123, %v118
  %v125 = vpop.permute.xlu0 %124
  %v126 = vlaneseq
  %v127 = vshrl.u32 %v126, 7
  %v128 = vsub.s32 0, %v127
  %v129 = vrot.slane %v119, %v128
  %vm130 = vcmp.eq.s32.totalorder %v122, %v129
  %vm131 = vcmp.eq.s32.totalorder %v125, %v129
  %v132 = vsel %vm130, 1, 0
  %v133 = vsel %vm131, 1, 0
  %v134 = vcvt.s32.f32 %v132
  %v135 = vcvt.s32.f32 %v133
  %vm136 = vcmask 97280
  %v138 = vsel %vm136, %v134, 0
  %v141 = vsel %vm136, %v135, 0
  %vm143 = vcmask 1043456
  %v145 = vsel %vm143, %v116, 0
  %147 = vmatprep.subr.mxu0 0.0
  %148 = vmatpush1.msra.mxu0 0.0
  %149 = vmatprep.subr.mxu0 0.0
  %150 = vmatpush1.msra.mxu0 0.0
  %151 = vmatprep.subr.mxu0 0.0
  %152 = vmatpush1.msra.mxu0 0.0
  %153 = vmatprep.subr.mxu0 0.0
  %154 = vmatpush1.msra.mxu0 0.0
  %155 = vmatprep.subr.mxu0 0.0
  %156 = vmatpush1.msra.mxu0 0.0
  %157 = vmatprep.subr.mxu0 0.0
  %158 = vmatpush1.msra.mxu0 0.0
  %159 = vmatprep.subr.mxu0 0.0
  %160 = vmatpush1.msra.mxu0 0.0
  %161 = vmatprep.subr.mxu0 0.0
  %162 = vmatpush1.msra.mxu0 0.0
  %163 = vmatprep.subr.mxu0 0.0
  %164 = vmatpush1.msra.mxu0 0.0
  %165 = vmatprep.subr.mxu0 0.0
  %166 = vmatpush1.msra.mxu0 0.0
  %167 = vmatprep.subr.mxu0 0.0
  %168 = vmatpush1.msra.mxu0 0.0
  %169 = vmatprep.subr.mxu0 0.0
  %170 = vmatpush1.msra.mxu0 0.0
  %171 = vmatprep.subr.mxu0 0.0
  %172 = vmatpush1.msra.mxu0 0.0
  %173 = vmatprep.subr.mxu0 0.0
  %174 = vmatpush1.msra.mxu0 0.0
  %175 = vmatprep.subr.mxu0 0.0
  %176 = vmatpush1.msra.mxu0 %v145
  %177 = vmatprep.subr.mxu0 0.0
  %178 = vmatpush1.msra.mxu0 %v114
  %179 = vmatprep.subr.mxu0 0.0
  %180 = vmatpush2.msra.mxu0 0.0
  %181 = vmatprep.subr.mxu0 0.0
  %182 = vmatpush2.msra.mxu0 0.0
  %183 = vmatprep.subr.mxu0 0.0
  %184 = vmatpush2.msra.mxu0 0.0
  %185 = vmatprep.subr.mxu0 0.0
  %186 = vmatpush2.msra.mxu0 0.0
  %187 = vmatprep.subr.mxu0 0.0
  %188 = vmatpush2.msra.mxu0 0.0
  %189 = vmatprep.subr.mxu0 0.0
  %190 = vmatpush2.msra.mxu0 0.0
  %191 = vmatprep.subr.mxu0 0.0
  %192 = vmatpush2.msra.mxu0 0.0
  %193 = vmatprep.subr.mxu0 0.0
  %194 = vmatpush2.msra.mxu0 0.0
  %195 = vmatprep.subr.mxu0 0.0
  %196 = vmatpush2.msra.mxu0 0.0
  %197 = vmatprep.subr.mxu0 0.0
  %198 = vmatpush2.msra.mxu0 0.0
  %199 = vmatprep.subr.mxu0 0.0
  %200 = vmatpush2.msra.mxu0 0.0
  %201 = vmatprep.subr.mxu0 0.0
  %202 = vmatpush2.msra.mxu0 0.0
  %203 = vmatprep.subr.mxu0 0.0
  %204 = vmatpush2.msra.mxu0 0.0
  %205 = vmatprep.subr.mxu0 0.0
  %206 = vmatpush2.msra.mxu0 0.0
  %207 = vmatprep.subr.mxu0 0.0
  %208 = vmatpush2.msra.mxu0 0.0
  %209 = vmatprep.subr.mxu0 0.0
  %210 = vmatpush2.msra.mxu0 0.0
  %211 = vmatprep.mubr.f32.mxu0 0.0
  %212 = vmatmul.mubr.f32.gmra.mxu0 %v138
  %v213 = vpop.f32.mrf.mxu0
  %v214 = vadd.f32 0.0, %v213
  %v215 = vpop.f32.mrf.mxu0
  %216 = vmatprep.mubr.f32.mxu0 0.0
  %217 = vmatmul.mubr.f32.gmra.mxu0 %v141
  %v218 = vpop.f32.mrf.mxu0
  %v219 = vadd.f32 0.0, %v218
  %v220 = vpop.f32.mrf.mxu0
  %221 = vdwg.mxu0
  %v222 = vrcp.pop %v214
  %v223 = vmul.f32 %v114, %v222
  %v224 = vrcp.pop %v219
  %v225 = vmul.f32 %v116, %v224
  %v226 = vld [vmem:[%s1] sm:$0xff]
  %v227 = vld [vmem:[%s1 + $0x8] sm:$0xff]
  %v228 = vld [vmem:[%s1 + $0x10] sm:$0xff]
  %v229 = vld [vmem:[%s1 + $0x18] sm:$0xff]
  %v230 = vld [vmem:[%s1 + $0x20] sm:$0xff]
  %v231 = vld [vmem:[%s1 + $0x28] sm:$0xff]
  %v232 = vld [vmem:[%s2] sm:$0x1]
  %v234 = vlaneseq
  %v235 = vshrl.u32 %v234, 7
  %v236 = vsub.s32 0, %v235
  %v237 = vrot.slane %v232, %v236
  %239 = vmatprep.subr.mxu0 0.0
  %240 = vmatpush1.msra.mxu0 0.0
  %241 = vmatprep.subr.mxu0 0.0
  %242 = vmatpush1.msra.mxu0 0.0
  %243 = vmatprep.subr.mxu0 0.0
  %244 = vmatpush1.msra.mxu0 0.0
  %245 = vmatprep.subr.mxu0 0.0
  %246 = vmatpush1.msra.mxu0 0.0
  %247 = vmatprep.subr.mxu0 0.0
  %248 = vmatpush1.msra.mxu0 0.0
  %249 = vmatprep.subr.mxu0 0.0
  %250 = vmatpush1.msra.mxu0 0.0
  %251 = vmatprep.subr.mxu0 0.0
  %252 = vmatpush1.msra.mxu0 0.0
  %253 = vmatprep.subr.mxu0 0.0
  %254 = vmatpush1.msra.mxu0 0.0
  %255 = vmatprep.subr.mxu0 0.0
  %256 = vmatpush1.msra.mxu0 0.0
  %257 = vmatprep.subr.mxu0 0.0
  %258 = vmatpush1.msra.mxu0 0.0
  %259 = vmatprep.subr.mxu0 0.0
  %260 = vmatpush1.msra.mxu0 %v231
  %261 = vmatprep.subr.mxu0 0.0
  %262 = vmatpush1.msra.mxu0 %v230
  %263 = vmatprep.subr.mxu0 0.0
  %264 = vmatpush1.msra.mxu0 %v229
  %265 = vmatprep.subr.mxu0 0.0
  %266 = vmatpush1.msra.mxu0 %v228
  %267 = vmatprep.subr.mxu0 0.0
  %268 = vmatpush1.msra.mxu0 %v227
  %269 = vmatprep.subr.mxu0 0.0
  %270 = vmatpush1.msra.mxu0 %v226
  %271 = vmatprep.subr.mxu0 0.0
  %272 = vmatpush2.msra.mxu0 0.0
  %273 = vmatprep.subr.mxu0 0.0
  %274 = vmatpush2.msra.mxu0 0.0
  %275 = vmatprep.subr.mxu0 0.0
  %276 = vmatpush2.msra.mxu0 0.0
  %277 = vmatprep.subr.mxu0 0.0
  %278 = vmatpush2.msra.mxu0 0.0
  %279 = vmatprep.subr.mxu0 0.0
  %280 = vmatpush2.msra.mxu0 0.0
  %281 = vmatprep.subr.mxu0 0.0
  %282 = vmatpush2.msra.mxu0 0.0
  %283 = vmatprep.subr.mxu0 0.0
  %284 = vmatpush2.msra.mxu0 0.0
  %285 = vmatprep.subr.mxu0 0.0
  %286 = vmatpush2.msra.mxu0 0.0
  %287 = vmatprep.subr.mxu0 0.0
  %288 = vmatpush2.msra.mxu0 0.0
  %289 = vmatprep.subr.mxu0 0.0
  %290 = vmatpush2.msra.mxu0 0.0
  %291 = vmatprep.subr.mxu0 0.0
  %292 = vmatpush2.msra.mxu0 0.0
  %293 = vmatprep.subr.mxu0 0.0
  %294 = vmatpush2.msra.mxu0 0.0
  %295 = vmatprep.subr.mxu0 0.0
  %296 = vmatpush2.msra.mxu0 0.0
  %297 = vmatprep.subr.mxu0 0.0
  %298 = vmatpush2.msra.mxu0 0.0
  %299 = vmatprep.subr.mxu0 0.0
  %300 = vmatpush2.msra.mxu0 0.0
  %301 = vmatprep.subr.mxu0 0.0
  %302 = vmatpush2.msra.mxu0 0.0
  %303 = vmatprep.mubr.f32.mxu0 0.0
  %304 = vmatmul.mubr.f32.gmra.mxu0 %v33
  %v305 = vpop.f32.mrf.mxu0
  %v306 = vadd.f32 %v237, %v305
  %v307 = vpop.f32.mrf.mxu0
  %308 = vmatprep.mubr.f32.mxu0 0.0
  %309 = vmatmul.mubr.f32.gmra.mxu0 %v36
  %v310 = vpop.f32.mrf.mxu0
  %v311 = vadd.f32 %v237, %v310
  %v312 = vpop.f32.mrf.mxu0
  %313 = vdwg.mxu0
  %v314 = vmax.f32 %v306, 0.0
  %v315 = vmax.f32 %v311, 0.0
  %v316 = vlaneseq
  %v317 = vshrl.u32 %v316, 7
  %vm318 = vcmp.eq.s32.totalorder %v317, %v129
  %v319 = vsel %vm318, 1, 0
  %v320 = vcvt.s32.f32 %v319
  %322 = vset.pattern.permute.xlu0 0
  %323 = vperm.xlu0 %322, %v223
  %v324 = vpop.permute.xlu0 %323
  %327 = vset.pattern.permute.xlu0 0
  %328 = vperm.xlu0 %327, %v225
  %v329 = vpop.permute.xlu0 %328
  %v331 = vmul.f32 %v324, %v314
  %v332 = vmul.f32 %v329, %v315
  %v334 = vsel %vm136, %v320, 0
  %v337 = vsel %vm143, %v332, 0
  %339 = vmatprep.subr.mxu0 0.0
  %340 = vmatpush1.msra.mxu0 0.0
  %341 = vmatprep.subr.mxu0 0.0
  %342 = vmatpush1.msra.mxu0 0.0
  %343 = vmatprep.subr.mxu0 0.0
  %344 = vmatpush1.msra.mxu0 0.0
  %345 = vmatprep.subr.mxu0 0.0
  %346 = vmatpush1.msra.mxu0 0.0
  %347 = vmatprep.subr.mxu0 0.0
  %348 = vmatpush1.msra.mxu0 0.0
  %349 = vmatprep.subr.mxu0 0.0
  %350 = vmatpush1.msra.mxu0 0.0
  %351 = vmatprep.subr.mxu0 0.0
  %352 = vmatpush1.msra.mxu0 0.0
  %353 = vmatprep.subr.mxu0 0.0
  %354 = vmatpush1.msra.mxu0 0.0
  %355 = vmatprep.subr.mxu0 0.0
  %356 = vmatpush1.msra.mxu0 0.0
  %357 = vmatprep.subr.mxu0 0.0
  %358 = vmatpush1.msra.mxu0 0.0
  %359 = vmatprep.subr.mxu0 0.0
  %360 = vmatpush1.msra.mxu0 0.0
  %361 = vmatprep.subr.mxu0 0.0
  %362 = vmatpush1.msra.mxu0 0.0
  %363 = vmatprep.subr.mxu0 0.0
  %364 = vmatpush1.msra.mxu0 0.0
  %365 = vmatprep.subr.mxu0 0.0
  %366 = vmatpush1.msra.mxu0 0.0
  %367 = vmatprep.subr.mxu0 0.0
  %368 = vmatpush1.msra.mxu0 %v337
  %369 = vmatprep.subr.mxu0 0.0
  %370 = vmatpush1.msra.mxu0 %v331
  %371 = vmatprep.subr.mxu0 0.0
  %372 = vmatpush2.msra.mxu0 0.0
  %373 = vmatprep.subr.mxu0 0.0
  %374 = vmatpush2.msra.mxu0 0.0
  %375 = vmatprep.subr.mxu0 0.0
  %376 = vmatpush2.msra.mxu0 0.0
  %377 = vmatprep.subr.mxu0 0.0
  %378 = vmatpush2.msra.mxu0 0.0
  %379 = vmatprep.subr.mxu0 0.0
  %380 = vmatpush2.msra.mxu0 0.0
  %381 = vmatprep.subr.mxu0 0.0
  %382 = vmatpush2.msra.mxu0 0.0
  %383 = vmatprep.subr.mxu0 0.0
  %384 = vmatpush2.msra.mxu0 0.0
  %385 = vmatprep.subr.mxu0 0.0
  %386 = vmatpush2.msra.mxu0 0.0
  %387 = vmatprep.subr.mxu0 0.0
  %388 = vmatpush2.msra.mxu0 0.0
  %389 = vmatprep.subr.mxu0 0.0
  %390 = vmatpush2.msra.mxu0 0.0
  %391 = vmatprep.subr.mxu0 0.0
  %392 = vmatpush2.msra.mxu0 0.0
  %393 = vmatprep.subr.mxu0 0.0
  %394 = vmatpush2.msra.mxu0 0.0
  %395 = vmatprep.subr.mxu0 0.0
  %396 = vmatpush2.msra.mxu0 0.0
  %397 = vmatprep.subr.mxu0 0.0
  %398 = vmatpush2.msra.mxu0 0.0
  %399 = vmatprep.subr.mxu0 0.0
  %400 = vmatpush2.msra.mxu0 0.0
  %401 = vmatprep.subr.mxu0 0.0
  %402 = vmatpush2.msra.mxu0 0.0
  %403 = vmatprep.mubr.f32.mxu0 0.0
  %404 = vmatmul.mubr.f32.gmra.mxu0 %v334
  %v405 = vpop.f32.mrf.mxu0
  %v406 = vadd.f32 0.0, %v405
  %v407 = vpop.f32.mrf.mxu0
  %408 = vdwg.mxu0
  %vm409 = vcmask 259072
  %410 = vst.msk [vmem:[%s6] sm:$0x3f] %vm409, %v406
  // Predicated region
  $region26: #{joint_forward.4} parent=0 // pred_check
    _
  $region27: #{joint_forward.4} parent=0 // pred_check_branch
    %412 = sbr.rel (0) target = $region29
  $region28: #{joint_forward.4} parent=0 // pred_region
    _
  $region29: #{joint_forward.4} parent=0 // pred_fallthru
    _
  // Predicated region
  $region30: #{joint_forward.4} parent=0 // pred_check
    _
  $region31: #{joint_forward.4} parent=0 // pred_check_branch
    %414 = sbr.rel (0) target = $region33
  $region32: #{joint_forward.4} parent=0 // pred_region
    _
  $region33: #{joint_forward.4} parent=0 // pred_fallthru
    _

// kernel: joint_forward.5
$region0: #{joint_forward.5}
  #allocation0 [shape = 'u32[]', space=smem, size = 0x4, offset = 0x4, fixed_abs, tag = 'smem constant byte address 0x4 - core index']
  #allocation1 [shape = 'u32[144,128]{1,0:T(1,128)}', space=vmem, size = 0x12000, scoped, tag = 'internal scratch']
  %s0 = inlined_call_operand.vmem [shape: f32[2,1,8], index: 0, kind: input, shape index: {}]
  %s1 = inlined_call_operand.vmem [shape: f32[2,8,32], index: 1, kind: input, shape index: {}]
  %s2 = inlined_call_operand.vmem [shape: f32[2,32,96], index: 2, kind: input, shape index: {}]
  %s3 = inlined_call_operand.vmem [shape: f32[2,32,32], index: 3, kind: input, shape index: {}]
  %s4 = inlined_call_operand.vmem [shape: f32[2,1,32], index: 4, kind: input, shape index: {}]
  %s5 = inlined_call_operand.vmem [shape: f32[2,1,32], index: 5, kind: input, shape index: {}]
  %s6 = inlined_call_operand.vmem [shape: f32[2,32,64], index: 6, kind: input, shape index: {}]
  %s7 = inlined_call_operand.vmem [shape: f32[2,64,32], index: 7, kind: input, shape index: {}]
  %s8 = inlined_call_operand.vmem [shape: f32[2,2,8,32], index: 8, kind: output, shape index: {}]
  %s9 = sld [smem:[#allocation0]]
  $region65: #{joint_forward.5} parent=0
    _
  %s11 = ssub.s32 1, %s9
  %s12 = scalar_select 0, %s11, %s9
  loop: start=0, step=1, limit=6
  $region2: #{joint_forward.5} parent=0 // loop_pre_header
    _
  $region3: #{joint_forward.5} parent=0 // loop_header
    %s14 = sphi 0, %s18
    %p15 = scmp.ge.s32.totalorder %s14, 6
    %s21 = sphi 0, %s33
    %s22 = sphi 0, %s29
    %s23 = sphi 0, %s21
    %s24 = sphi 0, %s22
    %s25 = sphi 0, %s23
    %s26 = sphi 0, %s24
    %s36 = sphi 0, %s38
    %s39 = sphi 0, %s36
    %s40 = sphi 0, %s39
    %s56 = sphi 0, %s40
    %s62 = sphi 0, %s64
    %s65 = sphi 0, %s62
    %s66 = sphi 0, %s65
    %s82 = sphi 0, %s66
    %s88 = sphi 0, %s90
    %s91 = sphi 0, %s88
    %s92 = sphi 0, %s91
    %s108 = sphi 0, %s92
    %s114 = sphi 0, %s116
    %s117 = sphi 0, %s114
    %s118 = sphi 0, %s117
    %s134 = sphi 0, %s118
    %s140 = sphi 0, %s142
    %s143 = sphi 0, %s140
    %s144 = sphi 0, %s143
    %s160 = sphi 0, %s144
    %s166 = sphi 0, %s168
    %s169 = sphi 0, %s166
    %s170 = sphi 0, %s169
    %s186 = sphi 0, %s170
    %s192 = sphi 0, %s194
    %s195 = sphi 0, %s192
    %s196 = sphi 0, %s195
    %s212 = sphi 0, %s196
    %s218 = sphi 0, %s220
    %s221 = sphi 0, %s218
    %s222 = sphi 0, %s221
    %s238 = sphi 0, %s222
    %s246 = sphi 0, %s248
    %s249 = sphi 0, %s246
    %s250 = sphi 0, %s249
    %s266 = sphi 0, %s250
  $region4: #{joint_forward.5} parent=0 // loop_header_branch
    %17 = sbr.rel (%p15) target = $region8
  $region5: #{joint_forward.5} parent=0 // loop_body
    %s19 = ssub.s32 %s14, 1
    %s20 = ssub.s32 %s14, 2
    %s27 = sadd.s32 1, %s22
    %p28 = scmp.ge.s32.totalorder %s27, 2
    %s29 = scalar_select %p28, 0, %s27
    %s30 = sadd.s32 1, %s21
    %s31 = scalar_select %p28, %s30, %s21
    %p32 = scmp.ge.s32.totalorder %s31, 2
    %s33 = scalar_select %p32, 0, %s31
    %s34 = ssub.s32 %s22, %s29
    %p35 = scmp.eq.s32.totalorder %s34, 0
    %s37 = sadd.s32 %s36, 1
    %s38 = scalar_select %p35, %s36, %s37
    %p41 = pneg %p35
    %p42 = scmp.eq.s32.totalorder %s14, 3
    %p43 = por %p41, %p42
    %p44 = scmp.ne.s32.totalorder %s36, %s39
    %p45 = scmp.eq.s32.totalorder %s14, 0
    %p46 = por %p44, %p45
    %p47 = scmp.ne.s32.totalorder %s36, %s39
    %p48 = scmp.eq.s32.totalorder %s19, 3
    %p49 = por %p47, %p48
    %p50 = scmp.ne.s32.totalorder %s39, %s40
    %p51 = scmp.eq.s32.totalorder %s19, 0
    %p52 = por %p50, %p51
    %p53 = scmp.ne.s32.totalorder %s39, %s40
    %p54 = scmp.eq.s32.totalorder %s20, 3
    %p55 = por %p53, %p54
    %p57 = scmp.ne.s32.totalorder %s40, %s56
    %p58 = scmp.eq.s32.totalorder %s20, 0
    %p59 = por %p57, %p58
    %s60 = ssub.s32 %s22, %s29
    %p61 = scmp.eq.s32.totalorder %s60, 0
    %s63 = sadd.s32 %s62, 1
    %s64 = scalar_select %p61, %s62, %s63
    %p67 = pneg %p61
    %p68 = scmp.eq.s32.totalorder %s14, 3
    %p69 = por %p67, %p68
    %p70 = scmp.ne.s32.totalorder %s62, %s65
    %p71 = scmp.eq.s32.totalorder %s14, 0
    %p72 = por %p70, %p71
    %p73 = scmp.ne.s32.totalorder %s62, %s65
    %p74 = scmp.eq.s32.totalorder %s19, 3
    %p75 = por %p73, %p74
    %p76 = scmp.ne.s32.totalorder %s65, %s66
    %p77 = scmp.eq.s32.totalorder %s19, 0
    %p78 = por %p76, %p77
    %p79 = scmp.ne.s32.totalorder %s65, %s66
    %p80 = scmp.eq.s32.totalorder %s20, 3
    %p81 = por %p79, %p80
    %p83 = scmp.ne.s32.totalorder %s66, %s82
    %p84 = scmp.eq.s32.totalorder %s20, 0
    %p85 = por %p83, %p84
    %s86 = ssub.s32 %s21, %s33
    %p87 = scmp.eq.s32.totalorder %s86, 0
    %s89 = sadd.s32 %s88, 1
    %s90 = scalar_select %p87, %s88, %s89
    %p93 = pneg %p87
    %p94 = scmp.eq.s32.totalorder %s14, 3
    %p95 = por %p93, %p94
    %p96 = scmp.ne.s32.totalorder %s88, %s91
    %p97 = scmp.eq.s32.totalorder %s14, 0
    %p98 = por %p96, %p97
    %p99 = scmp.ne.s32.totalorder %s88, %s91
    %p100 = scmp.eq.s32.totalorder %s19, 3
    %p101 = por %p99, %p100
    %p102 = scmp.ne.s32.totalorder %s91, %s92
    %p103 = scmp.eq.s32.totalorder %s19, 0
    %p104 = por %p102, %p103
    %p105 = scmp.ne.s32.totalorder %s91, %s92
    %p106 = scmp.eq.s32.totalorder %s20, 3
    %p107 = por %p105, %p106
    %p109 = scmp.ne.s32.totalorder %s92, %s108
    %p110 = scmp.eq.s32.totalorder %s20, 0
    %p111 = por %p109, %p110
    %s112 = ssub.s32 %s21, %s33
    %p113 = scmp.eq.s32.totalorder %s112, 0
    %s115 = sadd.s32 %s114, 1
    %s116 = scalar_select %p113, %s114, %s115
    %p119 = pneg %p113
    %p120 = scmp.eq.s32.totalorder %s14, 3
    %p121 = por %p119, %p120
    %p122 = scmp.ne.s32.totalorder %s114, %s117
    %p123 = scmp.eq.s32.totalorder %s14, 0
    %p124 = por %p122, %p123
    %p125 = scmp.ne.s32.totalorder %s114, %s117
    %p126 = scmp.eq.s32.totalorder %s19, 3
    %p127 = por %p125, %p126
    %p128 = scmp.ne.s32.totalorder %s117, %s118
    %p129 = scmp.eq.s32.totalorder %s19, 0
    %p130 = por %p128, %p129
    %p131 = scmp.ne.s32.totalorder %s117, %s118
    %p132 = scmp.eq.s32.totalorder %s20, 3
    %p133 = por %p131, %p132
    %p135 = scmp.ne.s32.totalorder %s118, %s134
    %p136 = scmp.eq.s32.totalorder %s20, 0
    %p137 = por %p135, %p136
    %s138 = ssub.s32 %s21, %s33
    %p139 = scmp.eq.s32.totalorder %s138, 0
    %s141 = sadd.s32 %s140, 1
    %s142 = scalar_select %p139, %s140, %s141
    %p145 = pneg %p139
    %p146 = scmp.eq.s32.totalorder %s14, 3
    %p147 = por %p145, %p146
    %p148 = scmp.ne.s32.totalorder %s140, %s143
    %p149 = scmp.eq.s32.totalorder %s14, 0
    %p150 = por %p148, %p149
    %p151 = scmp.ne.s32.totalorder %s140, %s143
    %p152 = scmp.eq.s32.totalorder %s19, 3
    %p153 = por %p151, %p152
    %p154 = scmp.ne.s32.totalorder %s143, %s144
    %p155 = scmp.eq.s32.totalorder %s19, 0
    %p156 = por %p154, %p155
    %p157 = scmp.ne.s32.totalorder %s143, %s144
    %p158 = scmp.eq.s32.totalorder %s20, 3
    %p159 = por %p157, %p158
    %p161 = scmp.ne.s32.totalorder %s144, %s160
    %p162 = scmp.eq.s32.totalorder %s20, 0
    %p163 = por %p161, %p162
    %s164 = ssub.s32 %s21, %s33
    %p165 = scmp.eq.s32.totalorder %s164, 0
    %s167 = sadd.s32 %s166, 1
    %s168 = scalar_select %p165, %s166, %s167
    %p171 = pneg %p165
    %p172 = scmp.eq.s32.totalorder %s14, 3
    %p173 = por %p171, %p172
    %p174 = scmp.ne.s32.totalorder %s166, %s169
    %p175 = scmp.eq.s32.totalorder %s14, 0
    %p176 = por %p174, %p175
    %p177 = scmp.ne.s32.totalorder %s166, %s169
    %p178 = scmp.eq.s32.totalorder %s19, 3
    %p179 = por %p177, %p178
    %p180 = scmp.ne.s32.totalorder %s169, %s170
    %p181 = scmp.eq.s32.totalorder %s19, 0
    %p182 = por %p180, %p181
    %p183 = scmp.ne.s32.totalorder %s169, %s170
    %p184 = scmp.eq.s32.totalorder %s20, 3
    %p185 = por %p183, %p184
    %p187 = scmp.ne.s32.totalorder %s170, %s186
    %p188 = scmp.eq.s32.totalorder %s20, 0
    %p189 = por %p187, %p188
    %s190 = ssub.s32 %s21, %s33
    %p191 = scmp.eq.s32.totalorder %s190, 0
    %s193 = sadd.s32 %s192, 1
    %s194 = scalar_select %p191, %s192, %s193
    %p197 = pneg %p191
    %p198 = scmp.eq.s32.totalorder %s14, 3
    %p199 = por %p197, %p198
    %p200 = scmp.ne.s32.totalorder %s192, %s195
    %p201 = scmp.eq.s32.totalorder %s14, 0
    %p202 = por %p200, %p201
    %p203 = scmp.ne.s32.totalorder %s192, %s195
    %p204 = scmp.eq.s32.totalorder %s19, 3
    %p205 = por %p203, %p204
    %p206 = scmp.ne.s32.totalorder %s195, %s196
    %p207 = scmp.eq.s32.totalorder %s19, 0
    %p208 = por %p206, %p207
    %p209 = scmp.ne.s32.totalorder %s195, %s196
    %p210 = scmp.eq.s32.totalorder %s20, 3
    %p211 = por %p209, %p210
    %p213 = scmp.ne.s32.totalorder %s196, %s212
    %p214 = scmp.eq.s32.totalorder %s20, 0
    %p215 = por %p213, %p214
    %s216 = ssub.s32 %s21, %s33
    %p217 = scmp.eq.s32.totalorder %s216, 0
    %s219 = sadd.s32 %s218, 1
    %s220 = scalar_select %p217, %s218, %s219
    %p223 = pneg %p217
    %p224 = scmp.eq.s32.totalorder %s14, 3
    %p225 = por %p223, %p224
    %p226 = scmp.ne.s32.totalorder %s218, %s221
    %p227 = scmp.eq.s32.totalorder %s14, 0
    %p228 = por %p226, %p227
    %p229 = scmp.ne.s32.totalorder %s218, %s221
    %p230 = scmp.eq.s32.totalorder %s19, 3
    %p231 = por %p229, %p230
    %p232 = scmp.ne.s32.totalorder %s221, %s222
    %p233 = scmp.eq.s32.totalorder %s19, 0
    %p234 = por %p232, %p233
    %p235 = scmp.ne.s32.totalorder %s221, %s222
    %p236 = scmp.eq.s32.totalorder %s20, 3
    %p237 = por %p235, %p236
    %p239 = scmp.ne.s32.totalorder %s222, %s238
    %p240 = scmp.eq.s32.totalorder %s20, 0
    %p241 = por %p239, %p240
    %s242 = ssub.s32 %s21, %s33
    %s243 = ssub.s32 %s22, %s29
    %s244 = sor.u32 %s242, %s243
    %p245 = scmp.eq.s32.totalorder %s244, 0
    %s247 = sadd.s32 %s246, 1
    %s248 = scalar_select %p245, %s246, %s247
    %p251 = pneg %p245
    %p252 = scmp.eq.s32.totalorder %s14, 3
    %p253 = por %p251, %p252
    %p254 = scmp.ne.s32.totalorder %s246, %s249
    %p255 = scmp.eq.s32.totalorder %s14, 0
    %p256 = por %p254, %p255
    %p257 = scmp.ne.s32.totalorder %s246, %s249
    %p258 = scmp.eq.s32.totalorder %s19, 3
    %p259 = por %p257, %p258
    %p260 = scmp.ne.s32.totalorder %s249, %s250
    %p261 = scmp.eq.s32.totalorder %s19, 0
    %p262 = por %p260, %p261
    %p263 = scmp.ne.s32.totalorder %s249, %s250
    %p264 = scmp.eq.s32.totalorder %s20, 3
    %p265 = por %p263, %p264
    %p267 = scmp.ne.s32.totalorder %s250, %s266
    %p268 = scmp.eq.s32.totalorder %s20, 0
    %p269 = por %p267, %p268
    %p270 = scmp.le.s32.totalorder 1, %s14
    %p271 = scmp.lt.s32.totalorder %s14, 5
    %p272 = pnand %p270, %p271
    %p273 = pneg %p272
    // Predicated region
    $region9: #{joint_forward.5} parent=5 // pred_check
      _
    $region10: #{joint_forward.5} parent=5 // pred_check_branch
      %275 = sbr.rel (%p272) target = $region12
    $region11: #{joint_forward.5} parent=5 // pred_region
      %s276 = ssub.s32 %s14, 1
    $region12: #{joint_forward.5} parent=5 // pred_fallthru
      _
    %p277 = scmp.lt.s32.totalorder %s14, 4
    // Predicated region
    $region13: #{joint_forward.5} parent=5 // pred_check
      %p278 = pneg %p277
    $region14: #{joint_forward.5} parent=5 // pred_check_branch
      %280 = sbr.rel (%p278) target = $region16
    $region15: #{joint_forward.5} parent=5 // pred_region
      // Predicated region
      $region17: #{joint_forward.5} parent=15 // pred_check
        %p281 = pneg %p46
      $region18: #{joint_forward.5} parent=15 // pred_check_branch
        %283 = sbr.rel (%p281) target = $region20
      $region19: #{joint_forward.5} parent=15 // pred_region
        %p284 = scmp.lt.s32.totalorder %s22, 1
        %s285 = scalar_select %p284, %s22, 1
        %s286 = scalar_lea.vmem %s0, %s285
      $region20: #{joint_forward.5} parent=15 // pred_fallthru
        _
      // Predicated region
      $region21: #{joint_forward.5} parent=15 // pred_check
        %p287 = pneg %p72
      $region22: #{joint_forward.5} parent=15 // pred_check_branch
        %289 = sbr.rel (%p287) target = $region24
      $region23: #{joint_forward.5} parent=15 // pred_region
        %p290 = scmp.lt.s32.totalorder %s22, 1
        %s291 = scalar_select %p290, %s22, 1
        %s292 = smul.addr %s291, 8
        %s293 = scalar_lea.vmem %s1, %s292
      $region24: #{joint_forward.5} parent=15 // pred_fallthru
        _
      // Predicated region
      $region25: #{joint_forward.5} parent=15 // pred_check
        %p294 = pneg %p98
      $region26: #{joint_forward.5} parent=15 // pred_check_branch
        %296 = sbr.rel (%p294) target = $region28
      $region27: #{joint_forward.5} parent=15 // pred_region
        %p297 = scmp.lt.s32.totalorder %s21, 1
        %s298 = scalar_select %p297, %s21, 1
        %s299 = smul.addr %s298, 4
        %s300 = smul.addr %s299, 8
        %s301 = scalar_lea.vmem %s2, %s300
      $region28: #{joint_forward.5} parent=15 // pred_fallthru
        _
      // Predicated region
      $region29: #{joint_forward.5} parent=15 // pred_check
        %p302 = pneg %p124
      $region30: #{joint_forward.5} parent=15 // pred_check_branch
        %304 = sbr.rel (%p302) target = $region32
      $region31: #{joint_forward.5} parent=15 // pred_region
        %p305 = scmp.lt.s32.totalorder %s21, 1
        %s306 = scalar_select %p305, %s21, 1
        %s307 = smul.addr %s306, 4
        %s308 = smul.addr %s307, 8
        %s309 = scalar_lea.vmem %s3, %s308
      $region32: #{joint_forward.5} parent=15 // pred_fallthru
        _
      // Predicated region
      $region33: #{joint_forward.5} parent=15 // pred_check
        %p310 = pneg %p150
      $region34: #{joint_forward.5} parent=15 // pred_check_branch
        %312 = sbr.rel (%p310) target = $region36
      $region35: #{joint_forward.5} parent=15 // pred_region
        %p313 = scmp.lt.s32.totalorder %s21, 1
        %s314 = scalar_select %p313, %s21, 1
        %s315 = scalar_lea.vmem %s4, %s314
      $region36: #{joint_forward.5} parent=15 // pred_fallthru
        _
      // Predicated region
      $region37: #{joint_forward.5} parent=15 // pred_check
        %p316 = pneg %p176
      $region38: #{joint_forward.5} parent=15 // pred_check_branch
        %318 = sbr.rel (%p316) target = $region40
      $region39: #{joint_forward.5} parent=15 // pred_region
        %p319 = scmp.lt.s32.totalorder %s21, 1
        %s320 = scalar_select %p319, %s21, 1
        %s321 = scalar_lea.vmem %s5, %s320
      $region40: #{joint_forward.5} parent=15 // pred_fallthru
        _
      // Predicated region
      $region41: #{joint_forward.5} parent=15 // pred_check
        %p322 = pneg %p202
      $region42: #{joint_forward.5} parent=15 // pred_check_branch
        %324 = sbr.rel (%p322) target = $region44
      $region43: #{joint_forward.5} parent=15 // pred_region
        %p325 = scmp.lt.s32.totalorder %s21, 1
        %s326 = scalar_select %p325, %s21, 1
        %s327 = smul.addr %s326, 4
        %s328 = smul.addr %s327, 8
        %s329 = scalar_lea.vmem %s6, %s328
      $region44: #{joint_forward.5} parent=15 // pred_fallthru
        _
      // Predicated region
      $region45: #{joint_forward.5} parent=15 // pred_check
        %p330 = pneg %p228
      $region46: #{joint_forward.5} parent=15 // pred_check_branch
        %332 = sbr.rel (%p330) target = $region48
      $region47: #{joint_forward.5} parent=15 // pred_region
        %p333 = scmp.lt.s32.totalorder %s21, 1
        %s334 = scalar_select %p333, %s21, 1
        %s335 = smul.addr %s334, 8
        %s336 = smul.addr %s335, 8
        %s337 = scalar_lea.vmem %s7, %s336
      $region48: #{joint_forward.5} parent=15 // pred_fallthru
        _
    $region16: #{joint_forward.5} parent=5 // pred_fallthru
      _
    %p338 = scmp.le.s32.totalorder 1, %s14
    %p339 = scmp.lt.s32.totalorder %s14, 5
    %p340 = pnand %p338, %p339
    %p341 = pneg %p340
    // Predicated region
    $region49: #{joint_forward.5} parent=5 // pred_check
      _
    $region50: #{joint_forward.5} parent=5 // pred_check_branch
      %343 = sbr.rel (%p340) target = $region52
    $region51: #{joint_forward.5} parent=5 // pred_region
      %s344 = ssub.s32 %s14, 1
      %p345 = scmp.lt.s32.totalorder %s24, 1
      %s346 = scalar_select %p345, %s24, 1
      %s347 = scalar_lea.vmem %s0, %s346
      %p348 = pneg %p52
      %p349 = pneg %p49
      %p350 = scmp.lt.s32.totalorder %s24, 1
      %s351 = scalar_select %p350, %s24, 1
      %s352 = smul.addr %s351, 8
      %s353 = scalar_lea.vmem %s1, %s352
      %p354 = pneg %p78
      %p355 = pneg %p75
      %p356 = scmp.lt.s32.totalorder %s23, 1
      %s357 = scalar_select %p356, %s23, 1
      %s358 = smul.addr %s357, 4
      %s359 = smul.addr %s358, 8
      %s360 = scalar_lea.vmem %s2, %s359
      %p361 = pneg %p104
      %p362 = pneg %p101
      %p363 = scmp.lt.s32.totalorder %s23, 1
      %s364 = scalar_select %p363, %s23, 1
      %s365 = smul.addr %s364, 4
      %s366 = smul.addr %s365, 8
      %s367 = scalar_lea.vmem %s3, %s366
      %p368 = pneg %p130
      %p369 = pneg %p127
      %p370 = scmp.lt.s32.totalorder %s23, 1
      %s371 = scalar_select %p370, %s23, 1
      %s372 = scalar_lea.vmem %s4, %s371
      %p373 = pneg %p156
      %p374 = pneg %p153
      %p375 = scmp.lt.s32.totalorder %s23, 1
      %s376 = scalar_select %p375, %s23, 1
      %s377 = scalar_lea.vmem %s5, %s376
      %p378 = pneg %p182
      %p379 = pneg %p179
      %p380 = scmp.lt.s32.totalorder %s23, 1
      %s381 = scalar_select %p380, %s23, 1
      %s382 = smul.addr %s381, 4
      %s383 = smul.addr %s382, 8
      %s384 = scalar_lea.vmem %s6, %s383
      %p385 = pneg %p208
      %p386 = pneg %p205
      %p387 = scmp.lt.s32.totalorder %s23, 1
      %s388 = scalar_select %p387, %s23, 1
      %s389 = smul.addr %s388, 8
      %s390 = smul.addr %s389, 8
      %s391 = scalar_lea.vmem %s7, %s390
      %p392 = pneg %p234
      %p393 = pneg %p231
      %p394 = pneg %p262
      %p395 = pneg %p259
      %p396 = scmp.lt.s32.totalorder %s23, 1
      %s397 = scalar_select %p396, %s23, 1
      %p398 = scmp.lt.s32.totalorder %s24, 1
      %s399 = scalar_select %p398, %s24, 1
      %s400 = smul.addr %s397, 2
      %s401 = sadd.s32 %s399, %s400
      %s402 = smul.addr %s401, 8
      %s403 = scalar_lea.vmem %s8, %s402
      %p404 = scmp.lt.s32.totalorder %s24, 1
      %s405 = scalar_select %p404, %s24, 1
      %s406 = scalar_lea.vmem %s0, %s405
      %p407 = scmp.lt.s32.totalorder %s24, 1
      %s408 = scalar_select %p407, %s24, 1
      %s409 = smul.addr %s408, 8
      %s410 = scalar_lea.vmem %s1, %s409
      %p411 = scmp.lt.s32.totalorder %s23, 1
      %s412 = scalar_select %p411, %s23, 1
      %s413 = smul.addr %s412, 4
      %s414 = smul.addr %s413, 8
      %s415 = scalar_lea.vmem %s2, %s414
      %p416 = scmp.lt.s32.totalorder %s23, 1
      %s417 = scalar_select %p416, %s23, 1
      %s418 = smul.addr %s417, 4
      %s419 = smul.addr %s418, 8
      %s420 = scalar_lea.vmem %s3, %s419
      %p421 = scmp.lt.s32.totalorder %s23, 1
      %s422 = scalar_select %p421, %s23, 1
      %s423 = scalar_lea.vmem %s4, %s422
      %p424 = scmp.lt.s32.totalorder %s23, 1
      %s425 = scalar_select %p424, %s23, 1
      %s426 = scalar_lea.vmem %s5, %s425
      %p427 = scmp.lt.s32.totalorder %s23, 1
      %s428 = scalar_select %p427, %s23, 1
      %s429 = smul.addr %s428, 4
      %s430 = smul.addr %s429, 8
      %s431 = scalar_lea.vmem %s6, %s430
      %p432 = scmp.lt.s32.totalorder %s23, 1
      %s433 = scalar_select %p432, %s23, 1
      %s434 = smul.addr %s433, 8
      %s435 = smul.addr %s434, 8
      %s436 = scalar_lea.vmem %s7, %s435
      %p437 = scmp.lt.s32.totalorder %s23, 1
      %s438 = scalar_select %p437, %s23, 1
      %p439 = scmp.lt.s32.totalorder %s24, 1
      %s440 = scalar_select %p439, %s24, 1
      %s441 = smul.addr %s438, 2
      %s442 = sadd.s32 %s440, %s441
      %s443 = smul.addr %s442, 8
      %s444 = scalar_lea.vmem %s8, %s443
      %v445 = vld [vmem:[%s410] sm:$0xff]
      %v446 = vld [vmem:[%s406] sm:$0x1]
      %vm447 = vcmp.gt.f32.partialorder %v446, 0.5
      %v448 = vld [vmem:[%s415] sm:$0xff]
      %v449 = vld [vmem:[%s415 + $0x8] sm:$0xff]
      %v450 = vld [vmem:[%s415 + $0x10] sm:$0xff]
      %v451 = vld [vmem:[%s415 + $0x18] sm:$0xff]
      %vm452 = vcmask 261120
      %v454 = vsel %vm452, %v445, 0
      %456 = vmatprep.subr.mxu0 0.0
      %457 = vmatpush1.msra.mxu0 0.0
      %458 = vmatprep.subr.mxu0 0.0
      %459 = vmatpush1.msra.mxu0 0.0
      %460 = vmatprep.subr.mxu0 0.0
      %461 = vmatpush1.msra.mxu0 0.0
      %462 = vmatprep.subr.mxu0 0.0
      %463 = vmatpush1.msra.mxu0 0.0
      %464 = vmatprep.subr.mxu0 0.0
      %465 = vmatpush1.msra.mxu0 0.0
      %466 = vmatprep.subr.mxu0 0.0
      %467 = vmatpush1.msra.mxu0 0.0
      %468 = vmatprep.subr.mxu0 0.0
      %469 = vmatpush1.msra.mxu0 0.0
      %470 = vmatprep.subr.mxu0 0.0
      %471 = vmatpush1.msra.mxu0 0.0
      %472 = vmatprep.subr.mxu0 0.0
      %473 = vmatpush1.msra.mxu0 0.0
      %474 = vmatprep.subr.mxu0 0.0
      %475 = vmatpush1.msra.mxu0 0.0
      %476 = vmatprep.subr.mxu0 0.0
      %477 = vmatpush1.msra.mxu0 0.0
      %478 = vmatprep.subr.mxu0 0.0
      %479 = vmatpush1.msra.mxu0 0.0
      %480 = vmatprep.subr.mxu0 0.0
      %481 = vmatpush1.msra.mxu0 %v451
      %482 = vmatprep.subr.mxu0 0.0
      %483 = vmatpush1.msra.mxu0 %v450
      %484 = vmatprep.subr.mxu0 0.0
      %485 = vmatpush1.msra.mxu0 %v449
      %486 = vmatprep.subr.mxu0 0.0
      %487 = vmatpush1.msra.mxu0 %v448
      %488 = vmatprep.subr.mxu0 0.0
      %489 = vmatpush2.msra.mxu0 0.0
      %490 = vmatprep.subr.mxu0 0.0
      %491 = vmatpush2.msra.mxu0 0.0
      %492 = vmatprep.subr.mxu0 0.0
      %493 = vmatpush2.msra.mxu0 0.0
      %494 = vmatprep.subr.mxu0 0.0
      %495 = vmatpush2.msra.mxu0 0.0
      %496 = vmatprep.subr.mxu0 0.0
      %497 = vmatpush2.msra.mxu0 0.0
      %498 = vmatprep.subr.mxu0 0.0
      %499 = vmatpush2.msra.mxu0 0.0
      %500 = vmatprep.subr.mxu0 0.0
      %501 = vmatpush2.msra.mxu0 0.0
      %502 = vmatprep.subr.mxu0 0.0
      %503 = vmatpush2.msra.mxu0 0.0
      %504 = vmatprep.subr.mxu0 0.0
      %505 = vmatpush2.msra.mxu0 0.0
      %506 = vmatprep.subr.mxu0 0.0
      %507 = vmatpush2.msra.mxu0 0.0
      %508 = vmatprep.subr.mxu0 0.0
      %509 = vmatpush2.msra.mxu0 0.0
      %510 = vmatprep.subr.mxu0 0.0
      %511 = vmatpush2.msra.mxu0 0.0
      %512 = vmatprep.subr.mxu0 0.0
      %513 = vmatpush2.msra.mxu0 0.0
      %514 = vmatprep.subr.mxu0 0.0
      %515 = vmatpush2.msra.mxu0 0.0
      %516 = vmatprep.subr.mxu0 0.0
      %517 = vmatpush2.msra.mxu0 0.0
      %518 = vmatprep.subr.mxu0 0.0
      %519 = vmatpush2.msra.mxu0 0.0
      %520 = vmatprep.mubr.f32.mxu0 0.0
      %521 = vmatmul.mubr.f32.gmra.mxu0 %v454
      %v522 = vpop.f32.mrf.mxu0
      %v523 = vadd.f32 0.0, %v522
      %v524 = vpop.f32.mrf.mxu0
      %525 = vdwg.mxu0
      %v526 = vld [vmem:[%s420] sm:$0xff]
      %v527 = vld [vmem:[%s420 + $0x8] sm:$0xff]
      %v528 = vld [vmem:[%s420 + $0x10] sm:$0xff]
      %v529 = vld [vmem:[%s420 + $0x18] sm:$0xff]
      %531 = vrot.lane.b32.xlu0 %v523, 96
      %v532 = vpop.permute.xlu0 %531
      %vm533 = vcmask 130048
      %v534 = vsel %vm533, %v523, 0
      %v536 = vsel %vm533, %v532, 0
      %538 = vmatprep.subr.mxu0 0.0
      %539 = vmatpush1.xpose.msra.mxu0 0.0
      %540 = vmatprep.subr.mxu0 0.0
      %541 = vmatpush1.xpose.msra.mxu0 0.0
      %542 = vmatprep.subr.mxu0 0.0
      %543 = vmatpush1.xpose.msra.mxu0 0.0
      %544 = vmatprep.subr.mxu0 0.0
      %545 = vmatpush1.xpose.msra.mxu0 0.0
      %546 = vmatprep.subr.mxu0 0.0
      %547 = vmatpush1.xpose.msra.mxu0 0.0
      %548 = vmatprep.subr.mxu0 0.0
      %549 = vmatpush1.xpose.msra.mxu0 0.0
      %550 = vmatprep.subr.mxu0 0.0
      %551 = vmatpush1.xpose.msra.mxu0 0.0
      %552 = vmatprep.subr.mxu0 0.0
      %553 = vmatpush1.xpose.msra.mxu0 0.0
      %554 = vmatprep.subr.mxu0 0.0
      %555 = vmatpush1.xpose.msra.mxu0 0.0
      %556 = vmatprep.subr.mxu0 0.0
      %557 = vmatpush1.xpose.msra.mxu0 0.0
      %558 = vmatprep.subr.mxu0 0.0
      %559 = vmatpush1.xpose.msra.mxu0 0.0
      %560 = vmatprep.subr.mxu0 0.0
      %561 = vmatpush1.xpose.msra.mxu0 0.0
      %562 = vmatprep.subr.mxu0 0.0
      %563 = vmatpush1.xpose.msra.mxu0 0.0
      %564 = vmatprep.subr.mxu0 0.0
      %565 = vmatpush1.xpose.msra.mxu0 0.0
      %566 = vmatprep.subr.mxu0 0.0
      %567 = vmatpush1.xpose.msra.mxu0 0.0
      %568 = vmatprep.subr.mxu0 0.0
      %569 = vmatpush1.xpose.msra.mxu0 %v536
      %570 = vmatprep.subr.mxu0 0.0
      %571 = vmatpush2.xpose.msra.mxu0 0.0
      %572 = vmatprep.subr.mxu0 0.0
      %573 = vmatpush2.xpose.msra.mxu0 0.0
      %574 = vmatprep.subr.mxu0 0.0
      %575 = vmatpush2.xpose.msra.mxu0 0.0
      %576 = vmatprep.subr.mxu0 0.0
      %577 = vmatpush2.xpose.msra.mxu0 0.0
      %578 = vmatprep.subr.mxu0 0.0
      %579 = vmatpush2.xpose.msra.mxu0 0.0
      %580 = vmatprep.subr.mxu0 0.0
      %581 = vmatpush2.xpose.msra.mxu0 0.0
      %582 = vmatprep.subr.mxu0 0.0
      %583 = vmatpush2.xpose.msra.mxu0 0.0
      %584 = vmatprep.subr.mxu0 0.0
      %585 = vmatpush2.xpose.msra.mxu0 0.0
      %586 = vmatprep.subr.mxu0 0.0
      %587 = vmatpush2.xpose.msra.mxu0 0.0
      %588 = vmatprep.subr.mxu0 0.0
      %589 = vmatpush2.xpose.msra.mxu0 0.0
      %590 = vmatprep.subr.mxu0 0.0
      %591 = vmatpush2.xpose.msra.mxu0 0.0
      %592 = vmatprep.subr.mxu0 0.0
      %593 = vmatpush2.xpose.msra.mxu0 0.0
      %594 = vmatprep.subr.mxu0 0.0
      %595 = vmatpush2.xpose.msra.mxu0 0.0
      %596 = vmatprep.subr.mxu0 0.0
      %597 = vmatpush2.xpose.msra.mxu0 0.0
      %598 = vmatprep.subr.mxu0 0.0
      %599 = vmatpush2.xpose.msra.mxu0 0.0
      %600 = vmatprep.subr.mxu0 0.0
      %601 = vmatpush2.xpose.msra.mxu0 0.0
      %602 = vmatprep.mubr.f32.mxu0 0.0
      %603 = vmatmul.mubr.f32.gmra.mxu0 %v534
      %v604 = vpop.f32.mrf.mxu0
      %v605 = vadd.f32 0.0, %v604
      %v606 = vpop.f32.mrf.mxu0
      %607 = vdwg.mxu0
      %v608 = vmul.f32 %v605, 0.25
      %v609 = vsel %vm447, 1, 0
      %v610 = vlaneseq
      %v611 = vshrl.u32 %v610, 7
      %v612 = vsub.s32 0, %v611
      %v613 = vrot.slane %v609, %v612
      %vm614 = vcmp.eq.s32.totalorder %v613, 1
      %v615 = vsel %vm614, -1e+09, %v608
      %vm616 = vcmask 64512
      %v617 = vsel %vm616, %v615, -inf
      %618 = vmax.xlane.f32.xlu0 %v617
      %v619 = vpop.xlane.xlu0 %618
      %v620 = vsub.f32 %v615, %v619
      %v621 = vmul.f32 %v620, 1.442695
      %v622 = vpow.pop %v621
      %v623 = vsel %vm616, %v622, 0.0
      %624 = vadd.xlane.f32.xlu0 %v623
      %v625 = vpop.xlane.xlu0 %624
      %v626 = vrcp.pop %v625
      %v627 = vmul.f32 %v622, %v626
      %628 = vrot.lane.b32.xlu0 %v523, 64
      %v629 = vpop.permute.xlu0 %628
      %v632 = vsel %vm616, %v627, 0
      %634 = vmatprep.subr.mxu0 0.0
      %635 = vmatpush1.msra.mxu0 0.0
      %636 = vmatprep.subr.mxu0 0.0
      %637 = vmatpush1.msra.mxu0 0.0
      %638 = vmatprep.subr.mxu0 0.0
      %639 = vmatpush1.msra.mxu0 0.0
      %640 = vmatprep.subr.mxu0 0.0
      %641 = vmatpush1.msra.mxu0 0.0
      %642 = vmatprep.subr.mxu0 0.0
      %643 = vmatpush1.msra.mxu0 0.0
      %644 = vmatprep.subr.mxu0 0.0
      %645 = vmatpush1.msra.mxu0 0.0
      %646 = vmatprep.subr.mxu0 0.0
      %647 = vmatpush1.msra.mxu0 0.0
      %648 = vmatprep.subr.mxu0 0.0
      %649 = vmatpush1.msra.mxu0 0.0
      %650 = vmatprep.subr.mxu0 0.0
      %651 = vmatpush1.msra.mxu0 0.0
      %652 = vmatprep.subr.mxu0 0.0
      %653 = vmatpush1.msra.mxu0 0.0
      %654 = vmatprep.subr.mxu0 0.0
      %655 = vmatpush1.msra.mxu0 0.0
      %656 = vmatprep.subr.mxu0 0.0
      %657 = vmatpush1.msra.mxu0 0.0
      %658 = vmatprep.subr.mxu0 0.0
      %659 = vmatpush1.msra.mxu0 0.0
      %660 = vmatprep.subr.mxu0 0.0
      %661 = vmatpush1.msra.mxu0 0.0
      %662 = vmatprep.subr.mxu0 0.0
      %663 = vmatpush1.msra.mxu0 0.0
      %664 = vmatprep.subr.mxu0 0.0
      %665 = vmatpush1.msra.mxu0 %v629
      %666 = vmatprep.subr.mxu0 0.0
      %667 = vmatpush2.msra.mxu0 0.0
      %668 = vmatprep.subr.mxu0 0.0
      %669 = vmatpush2.msra.mxu0 0.0
      %670 = vmatprep.subr.mxu0 0.0
      %671 = vmatpush2.msra.mxu0 0.0
      %672 = vmatprep.subr.mxu0 0.0
      %673 = vmatpush2.msra.mxu0 0.0
      %674 = vmatprep.subr.mxu0 0.0
      %675 = vmatpush2.msra.mxu0 0.0
      %676 = vmatprep.subr.mxu0 0.0
      %677 = vmatpush2.msra.mxu0 0.0
      %678 = vmatprep.subr.mxu0 0.0
      %679 = vmatpush2.msra.mxu0 0.0
      %680 = vmatprep.subr.mxu0 0.0
      %681 = vmatpush2.msra.mxu0 0.0
      %682 = vmatprep.subr.mxu0 0.0
      %683 = vmatpush2.msra.mxu0 0.0
      %684 = vmatprep.subr.mxu0 0.0
      %685 = vmatpush2.msra.mxu0 0.0
      %686 = vmatprep.subr.mxu0 0.0
      %687 = vmatpush2.msra.mxu0 0.0
      %688 = vmatprep.subr.mxu0 0.0
      %689 = vmatpush2.msra.mxu0 0.0
      %690 = vmatprep.subr.mxu0 0.0
      %691 = vmatpush2.msra.mxu0 0.0
      %692 = vmatprep.subr.mxu0 0.0
      %693 = vmatpush2.msra.mxu0 0.0
      %694 = vmatprep.subr.mxu0 0.0
      %695 = vmatpush2.msra.mxu0 0.0
      %696 = vmatprep.subr.mxu0 0.0
      %697 = vmatpush2.msra.mxu0 0.0
      %698 = vmatprep.mubr.f32.mxu0 0.0
      %699 = vmatmul.mubr.f32.gmra.mxu0 %v632
      %v700 = vpop.f32.mrf.mxu0
      %v701 = vadd.f32 0.0, %v700
      %v702 = vpop.f32.mrf.mxu0
      %703 = vdwg.mxu0
      %704 = vrot.lane.b32.xlu0 %v523, 112
      %v705 = vpop.permute.xlu0 %704
      %706 = vrot.lane.b32.xlu0 %v523, 80
      %v707 = vpop.permute.xlu0 %706
      %v708 = vsel %vm533, %v705, 0
      %v710 = vsel %vm533, %v707, 0
      %712 = vmatprep.subr.mxu0 0.0
      %713 = vmatpush1.xpose.msra.mxu0 0.0
      %714 = vmatprep.subr.mxu0 0.0
      %715 = vmatpush1.xpose.msra.mxu0 0.0
      %716 = vmatprep.subr.mxu0 0.0
      %717 = vmatpush1.xpose.msra.mxu0 0.0
      %718 = vmatprep.subr.mxu0 0.0
      %719 = vmatpush1.xpose.msra.mxu0 0.0
      %720 = vmatprep.subr.mxu0 0.0
      %721 = vmatpush1.xpose.msra.mxu0 0.0
      %722 = vmatprep.subr.mxu0 0.0
      %723 = vmatpush1.xpose.msra.mxu0 0.0
      %724 = vmatprep.subr.mxu0 0.0
      %725 = vmatpush1.xpose.msra.mxu0 0.0
      %726 = vmatprep.subr.mxu0 0.0
      %727 = vmatpush1.xpose.msra.mxu0 0.0
      %728 = vmatprep.subr.mxu0 0.0
      %729 = vmatpush1.xpose.msra.mxu0 0.0
      %730 = vmatprep.subr.mxu0 0.0
      %731 = vmatpush1.xpose.msra.mxu0 0.0
      %732 = vmatprep.subr.mxu0 0.0
      %733 = vmatpush1.xpose.msra.mxu0 0.0
      %734 = vmatprep.subr.mxu0 0.0
      %735 = vmatpush1.xpose.msra.mxu0 0.0
      %736 = vmatprep.subr.mxu0 0.0
      %737 = vmatpush1.xpose.msra.mxu0 0.0
      %738 = vmatprep.subr.mxu0 0.0
      %739 = vmatpush1.xpose.msra.mxu0 0.0
      %740 = vmatprep.subr.mxu0 0.0
      %741 = vmatpush1.xpose.msra.mxu0 0.0
      %742 = vmatprep.subr.mxu0 0.0
      %743 = vmatpush1.xpose.msra.mxu0 %v710
      %744 = vmatprep.subr.mxu0 0.0
      %745 = vmatpush2.xpose.msra.mxu0 0.0
      %746 = vmatprep.subr.mxu0 0.0
      %747 = vmatpush2.xpose.msra.mxu0 0.0
      %748 = vmatprep.subr.mxu0 0.0
      %749 = vmatpush2.xpose.msra.mxu0 0.0
      %750 = vmatprep.subr.mxu0 0.0
      %751 = vmatpush2.xpose.msra.mxu0 0.0
      %752 = vmatprep.subr.mxu0 0.0
      %753 = vmatpush2.xpose.msra.mxu0 0.0
      %754 = vmatprep.subr.mxu0 0.0
      %755 = vmatpush2.xpose.msra.mxu0 0.0
      %756 = vmatprep.subr.mxu0 0.0
      %757 = vmatpush2.xpose.msra.mxu0 0.0
      %758 = vmatprep.subr.mxu0 0.0
      %759 = vmatpush2.xpose.msra.mxu0 0.0
      %760 = vmatprep.subr.mxu0 0.0
      %761 = vmatpush2.xpose.msra.mxu0 0.0
      %762 = vmatprep.subr.mxu0 0.0
      %763 = vmatpush2.xpose.msra.mxu0 0.0
      %764 = vmatprep.subr.mxu0 0.0
      %765 = vmatpush2.xpose.msra.mxu0 0.0
      %766 = vmatprep.subr.mxu0 0.0
      %767 = vmatpush2.xpose.msra.mxu0 0.0
      %768 = vmatprep.subr.mxu0 0.0
      %769 = vmatpush2.xpose.msra.mxu0 0.0
      %770 = vmatprep.subr.mxu0 0.0
      %771 = vmatpush2.xpose.msra.mxu0 0.0
      %772 = vmatprep.subr.mxu0 0.0
      %773 = vmatpush2.xpose.msra.mxu0 0.0
      %774 = vmatprep.subr.mxu0 0.0
      %775 = vmatpush2.xpose.msra.mxu0 0.0
      %776 = vmatprep.mubr.f32.mxu0 0.0
      %777 = vmatmul.mubr.f32.gmra.mxu0 %v708
      %v778 = vpop.f32.mrf.mxu0
      %v779 = vadd.f32 0.0, %v778
      %v780 = vpop.f32.mrf.mxu0
      %781 = vdwg.mxu0
      %v782 = vmul.f32 %v779, 0.25
      %v783 = vsel %vm614, -1e+09, %v782
      %v784 = vsel %vm616, %v783, -inf
      %785 = vmax.xlane.f32.xlu0 %v784
      %v786 = vpop.xlane.xlu0 %785
      %v787 = vsub.f32 %v783, %v786
      %v788 = vmul.f32 %v787, 1.442695
      %v789 = vpow.pop %v788
      %v790 = vsel %vm616, %v789, 0.0
      %791 = vadd.xlane.f32.xlu0 %v790
      %v792 = vpop.xlane.xlu0 %791
      %v793 = vrcp.pop %v792
      %v794 = vmul.f32 %v789, %v793
      %795 = vrot.lane.b32.xlu0 %v523, 48
      %v796 = vpop.permute.xlu0 %795
      %v799 = vsel %vm616, %v794, 0
      %801 = vmatprep.subr.mxu0 0.0
      %802 = vmatpush1.msra.mxu0 0.0
      %803 = vmatprep.subr.mxu0 0.0
      %804 = vmatpush1.msra.mxu0 0.0
      %805 = vmatprep.subr.mxu0 0.0
      %806 = vmatpush1.msra.mxu0 0.0
      %807 = vmatprep.subr.mxu0 0.0
      %808 = vmatpush1.msra.mxu0 0.0
      %809 = vmatprep.subr.mxu0 0.0
      %810 = vmatpush1.msra.mxu0 0.0
      %811 = vmatprep.subr.mxu0 0.0
      %812 = vmatpush1.msra.mxu0 0.0
      %813 = vmatprep.subr.mxu0 0.0
      %814 = vmatpush1.msra.mxu0 0.0
      %815 = vmatprep.subr.mxu0 0.0
      %816 = vmatpush1.msra.mxu0 0.0
      %817 = vmatprep.subr.mxu0 0.0
      %818 = vmatpush1.msra.mxu0 0.0
      %819 = vmatprep.subr.mxu0 0.0
      %820 = vmatpush1.msra.mxu0 0.0
      %821 = vmatprep.subr.mxu0 0.0
      %822 = vmatpush1.msra.mxu0 0.0
      %823 = vmatprep.subr.mxu0 0.0
      %824 = vmatpush1.msra.mxu0 0.0
      %825 = vmatprep.subr.mxu0 0.0
      %826 = vmatpush1.msra.mxu0 0.0
      %827 = vmatprep.subr.mxu0 0.0
      %828 = vmatpush1.msra.mxu0 0.0
      %829 = vmatprep.subr.mxu0 0.0
      %830 = vmatpush1.msra.mxu0 0.0
      %831 = vmatprep.subr.mxu0 0.0
      %832 = vmatpush1.msra.mxu0 %v796
      %833 = vmatprep.subr.mxu0 0.0
      %834 = vmatpush2.msra.mxu0 0.0
      %835 = vmatprep.subr.mxu0 0.0
      %836 = vmatpush2.msra.mxu0 0.0
      %837 = vmatprep.subr.mxu0 0.0
      %838 = vmatpush2.msra.mxu0 0.0
      %839 = vmatprep.subr.mxu0 0.0
      %840 = vmatpush2.msra.mxu0 0.0
      %841 = vmatprep.subr.mxu0 0.0
      %842 = vmatpush2.msra.mxu0 0.0
      %843 = vmatprep.subr.mxu0 0.0
      %844 = vmatpush2.msra.mxu0 0.0
      %845 = vmatprep.subr.mxu0 0.0
      %846 = vmatpush2.msra.mxu0 0.0
      %847 = vmatprep.subr.mxu0 0.0
      %848 = vmatpush2.msra.mxu0 0.0
      %849 = vmatprep.subr.mxu0 0.0
      %850 = vmatpush2.msra.mxu0 0.0
      %851 = vmatprep.subr.mxu0 0.0
      %852 = vmatpush2.msra.mxu0 0.0
      %853 = vmatprep.subr.mxu0 0.0
      %854 = vmatpush2.msra.mxu0 0.0
      %855 = vmatprep.subr.mxu0 0.0
      %856 = vmatpush2.msra.mxu0 0.0
      %857 = vmatprep.subr.mxu0 0.0
      %858 = vmatpush2.msra.mxu0 0.0
      %859 = vmatprep.subr.mxu0 0.0
      %860 = vmatpush2.msra.mxu0 0.0
      %861 = vmatprep.subr.mxu0 0.0
      %862 = vmatpush2.msra.mxu0 0.0
      %863 = vmatprep.subr.mxu0 0.0
      %864 = vmatpush2.msra.mxu0 0.0
      %865 = vmatprep.mubr.f32.mxu0 0.0
      %866 = vmatmul.mubr.f32.gmra.mxu0 %v799
      %v867 = vpop.f32.mrf.mxu0
      %v868 = vadd.f32 0.0, %v867
      %v869 = vpop.f32.mrf.mxu0
      %870 = vdwg.mxu0
      %v872 = vsel %vm533, %v868, 0
      %874 = vmatprep.subr.mxu0 0.0
      %875 = vmatpush1.msra.mxu0 0.0
      %876 = vmatprep.subr.mxu0 0.0
      %877 = vmatpush1.msra.mxu0 0.0
      %878 = vmatprep.subr.mxu0 0.0
      %879 = vmatpush1.msra.mxu0 0.0
      %880 = vmatprep.subr.mxu0 0.0
      %881 = vmatpush1.msra.mxu0 0.0
      %882 = vmatprep.subr.mxu0 0.0
      %883 = vmatpush1.msra.mxu0 0.0
      %884 = vmatprep.subr.mxu0 0.0
      %885 = vmatpush1.msra.mxu0 0.0
      %886 = vmatprep.subr.mxu0 0.0
      %887 = vmatpush1.msra.mxu0 0.0
      %888 = vmatprep.subr.mxu0 0.0
      %889 = vmatpush1.msra.mxu0 0.0
      %890 = vmatprep.subr.mxu0 0.0
      %891 = vmatpush1.msra.mxu0 0.0
      %892 = vmatprep.subr.mxu0 0.0
      %893 = vmatpush1.msra.mxu0 0.0
      %894 = vmatprep.subr.mxu0 0.0
      %895 = vmatpush1.msra.mxu0 0.0
      %896 = vmatprep.subr.mxu0 0.0
      %897 = vmatpush1.msra.mxu0 0.0
      %898 = vmatprep.subr.mxu0 0.0
      %899 = vmatpush1.msra.mxu0 0.0
      %900 = vmatprep.subr.mxu0 0.0
      %901 = vmatpush1.msra.mxu0 0.0
      %902 = vmatprep.subr.mxu0 0.0
      %903 = vmatpush1.msra.mxu0 %v529
      %904 = vmatprep.subr.mxu0 0.0
      %905 = vmatpush1.msra.mxu0 %v528
      %906 = vmatprep.subr.mxu0 0.0
      %907 = vmatpush2.msra.mxu0 0.0
      %908 = vmatprep.subr.mxu0 0.0
      %909 = vmatpush2.msra.mxu0 0.0
      %910 = vmatprep.subr.mxu0 0.0
      %911 = vmatpush2.msra.mxu0 0.0
      %912 = vmatprep.subr.mxu0 0.0
      %913 = vmatpush2.msra.mxu0 0.0
      %914 = vmatprep.subr.mxu0 0.0
      %915 = vmatpush2.msra.mxu0 0.0
      %916 = vmatprep.subr.mxu0 0.0
      %917 = vmatpush2.msra.mxu0 0.0
      %918 = vmatprep.subr.mxu0 0.0
      %919 = vmatpush2.msra.mxu0 0.0
      %920 = vmatprep.subr.mxu0 0.0
      %921 = vmatpush2.msra.mxu0 0.0
      %922 = vmatprep.subr.mxu0 0.0
      %923 = vmatpush2.msra.mxu0 0.0
      %924 = vmatprep.subr.mxu0 0.0
      %925 = vmatpush2.msra.mxu0 0.0
      %926 = vmatprep.subr.mxu0 0.0
      %927 = vmatpush2.msra.mxu0 0.0
      %928 = vmatprep.subr.mxu0 0.0
      %929 = vmatpush2.msra.mxu0 0.0
      %930 = vmatprep.subr.mxu0 0.0
      %931 = vmatpush2.msra.mxu0 0.0
      %932 = vmatprep.subr.mxu0 0.0
      %933 = vmatpush2.msra.mxu0 0.0
      %934 = vmatprep.subr.mxu0 0.0
      %935 = vmatpush2.msra.mxu0 0.0
      %936 = vmatprep.subr.mxu0 0.0
      %937 = vmatpush2.msra.mxu0 0.0
      %938 = vmatprep.mubr.f32.mxu0 0.0
      %939 = vmatmul.mubr.f32.gmra.mxu0 %v872
      %v940 = vpop.f32.mrf.mxu0
      %v941 = vadd.f32 0.0, %v940
      %v942 = vpop.f32.mrf.mxu0
      %943 = vdwg.mxu0
      %v945 = vsel %vm533, %v701, 0
      %947 = vmatprep.subr.mxu0 0.0
      %948 = vmatpush1.msra.mxu0 0.0
      %949 = vmatprep.subr.mxu0 0.0
      %950 = vmatpush1.msra.mxu0 0.0
      %951 = vmatprep.subr.mxu0 0.0
      %952 = vmatpush1.msra.mxu0 0.0
      %953 = vmatprep.subr.mxu0 0.0
      %954 = vmatpush1.msra.mxu0 0.0
      %955 = vmatprep.subr.mxu0 0.0
      %956 = vmatpush1.msra.mxu0 0.0
      %957 = vmatprep.subr.mxu0 0.0
      %958 = vmatpush1.msra.mxu0 0.0
      %959 = vmatprep.subr.mxu0 0.0
      %960 = vmatpush1.msra.mxu0 0.0
      %961 = vmatprep.subr.mxu0 0.0
      %962 = vmatpush1.msra.mxu0 0.0
      %963 = vmatprep.subr.mxu0 0.0
      %964 = vmatpush1.msra.mxu0 0.0
      %965 = vmatprep.subr.mxu0 0.0
      %966 = vmatpush1.msra.mxu0 0.0
      %967 = vmatprep.subr.mxu0 0.0
      %968 = vmatpush1.msra.mxu0 0.0
      %969 = vmatprep.subr.mxu0 0.0
      %970 = vmatpush1.msra.mxu0 0.0
      %971 = vmatprep.subr.mxu0 0.0
      %972 = vmatpush1.msra.mxu0 0.0
      %973 = vmatprep.subr.mxu0 0.0
      %974 = vmatpush1.msra.mxu0 0.0
      %975 = vmatprep.subr.mxu0 0.0
      %976 = vmatpush1.msra.mxu0 %v527
      %977 = vmatprep.subr.mxu0 0.0
      %978 = vmatpush1.msra.mxu0 %v526
      %979 = vmatprep.subr.mxu0 0.0
      %980 = vmatpush2.msra.mxu0 0.0
      %981 = vmatprep.subr.mxu0 0.0
      %982 = vmatpush2.msra.mxu0 0.0
      %983 = vmatprep.subr.mxu0 0.0
      %984 = vmatpush2.msra.mxu0 0.0
      %985 = vmatprep.subr.mxu0 0.0
      %986 = vmatpush2.msra.mxu0 0.0
      %987 = vmatprep.subr.mxu0 0.0
      %988 = vmatpush2.msra.mxu0 0.0
      %989 = vmatprep.subr.mxu0 0.0
      %990 = vmatpush2.msra.mxu0 0.0
      %991 = vmatprep.subr.mxu0 0.0
      %992 = vmatpush2.msra.mxu0 0.0
      %993 = vmatprep.subr.mxu0 0.0
      %994 = vmatpush2.msra.mxu0 0.0
      %995 = vmatprep.subr.mxu0 0.0
      %996 = vmatpush2.msra.mxu0 0.0
      %997 = vmatprep.subr.mxu0 0.0
      %998 = vmatpush2.msra.mxu0 0.0
      %999 = vmatprep.subr.mxu0 0.0
      %1000 = vmatpush2.msra.mxu0 0.0
      %1001 = vmatprep.subr.mxu0 0.0
      %1002 = vmatpush2.msra.mxu0 0.0
      %1003 = vmatprep.subr.mxu0 0.0
      %1004 = vmatpush2.msra.mxu0 0.0
      %1005 = vmatprep.subr.mxu0 0.0
      %1006 = vmatpush2.msra.mxu0 0.0
      %1007 = vmatprep.subr.mxu0 0.0
      %1008 = vmatpush2.msra.mxu0 0.0
      %1009 = vmatprep.subr.mxu0 0.0
      %1010 = vmatpush2.msra.mxu0 0.0
      %1011 = vmatprep.mubr.f32.mxu0 0.0
      %1012 = vmatmul.mubr.f32.gmra.mxu0 %v945
      %v1013 = vpop.f32.mrf.mxu0
      %v1014 = vadd.f32 %v941, %v1013
      %v1015 = vpop.f32.mrf.mxu0
      %1016 = vdwg.mxu0
      %v1017 = vadd.f32 %v445, %v1014
      %v1018 = vsel %vm452, %v1017, 0.0
      %1019 = vadd.xlane.f32.xlu0 %v1018
      %v1020 = vpop.xlane.xlu0 %1019
      %v1021 = vrcp.pop 32.0
      %v1022 = vmul.f32 %v1020, %v1021
      %v1023 = vsub.f32 %v1017, %v1022
      %v1024 = vmul.f32 %v1023, %v1023
      %v1025 = vsel %vm452, %v1024, 0.0
      %1026 = vadd.xlane.f32.xlu0 %v1025
      %v1027 = vpop.xlane.xlu0 %1026
      %v1028 = vmul.f32 %v1027, %v1021
      %v1029 = vadd.f32 %v1028, 1e-05
      %v1030 = vrsqrt.pop %v1029
      %v1031 = vmul.f32 %v1023, %v1030
      %v1032 = vld [vmem:[%s423] sm:$0x1]
      %v1034 = vlaneseq
      %v1035 = vshrl.u32 %v1034, 7
      %v1036 = vsub.s32 0, %v1035
      %v1037 = vrot.slane %v1032, %v1036
      %v1039 = vmul.f32 %v1031, %v1037
      %v1040 = vld [vmem:[%s426] sm:$0x1]
      %v1042 = vlaneseq
      %v1043 = vshrl.u32 %v1042, 7
      %v1044 = vsub.s32 0, %v1043
      %v1045 = vrot.slane %v1040, %v1044
      %v1047 = vadd.f32 %v1039, %v1045
      %v1048 = vld [vmem:[%s431] sm:$0xff]
      %v1049 = vld [vmem:[%s431 + $0x8] sm:$0xff]
      %v1050 = vld [vmem:[%s431 + $0x10] sm:$0xff]
      %v1051 = vld [vmem:[%s431 + $0x18] sm:$0xff]
      %v1053 = vsel %vm452, %v1047, 0
      %1055 = vmatprep.subr.mxu0 0.0
      %1056 = vmatpush1.msra.mxu0 0.0
      %1057 = vmatprep.subr.mxu0 0.0
      %1058 = vmatpush1.msra.mxu0 0.0
      %1059 = vmatprep.subr.mxu0 0.0
      %1060 = vmatpush1.msra.mxu0 0.0
      %1061 = vmatprep.subr.mxu0 0.0
      %1062 = vmatpush1.msra.mxu0 0.0
      %1063 = vmatprep.subr.mxu0 0.0
      %1064 = vmatpush1.msra.mxu0 0.0
      %1065 = vmatprep.subr.mxu0 0.0
      %1066 = vmatpush1.msra.mxu0 0.0
      %1067 = vmatprep.subr.mxu0 0.0
      %1068 = vmatpush1.msra.mxu0 0.0
      %1069 = vmatprep.subr.mxu0 0.0
      %1070 = vmatpush1.msra.mxu0 0.0
      %1071 = vmatprep.subr.mxu0 0.0
      %1072 = vmatpush1.msra.mxu0 0.0
      %1073 = vmatprep.subr.mxu0 0.0
      %1074 = vmatpush1.msra.mxu0 0.0
      %1075 = vmatprep.subr.mxu0 0.0
      %1076 = vmatpush1.msra.mxu0 0.0
      %1077 = vmatprep.subr.mxu0 0.0
      %1078 = vmatpush1.msra.mxu0 0.0
      %1079 = vmatprep.subr.mxu0 0.0
      %1080 = vmatpush1.msra.mxu0 %v1051
      %1081 = vmatprep.subr.mxu0 0.0
      %1082 = vmatpush1.msra.mxu0 %v1050
      %1083 = vmatprep.subr.mxu0 0.0
      %1084 = vmatpush1.msra.mxu0 %v1049
      %1085 = vmatprep.subr.mxu0 0.0
      %1086 = vmatpush1.msra.mxu0 %v1048
      %1087 = vmatprep.subr.mxu0 0.0
      %1088 = vmatpush2.msra.mxu0 0.0
      %1089 = vmatprep.subr.mxu0 0.0
      %1090 = vmatpush2.msra.mxu0 0.0
      %1091 = vmatprep.subr.mxu0 0.0
      %1092 = vmatpush2.msra.mxu0 0.0
      %1093 = vmatprep.subr.mxu0 0.0
      %1094 = vmatpush2.msra.mxu0 0.0
      %1095 = vmatprep.subr.mxu0 0.0
      %1096 = vmatpush2.msra.mxu0 0.0
      %1097 = vmatprep.subr.mxu0 0.0
      %1098 = vmatpush2.msra.mxu0 0.0
      %1099 = vmatprep.subr.mxu0 0.0
      %1100 = vmatpush2.msra.mxu0 0.0
      %1101 = vmatprep.subr.mxu0 0.0
      %1102 = vmatpush2.msra.mxu0 0.0
      %1103 = vmatprep.subr.mxu0 0.0
      %1104 = vmatpush2.msra.mxu0 0.0
      %1105 = vmatprep.subr.mxu0 0.0
      %1106 = vmatpush2.msra.mxu0 0.0
      %1107 = vmatprep.subr.mxu0 0.0
      %1108 = vmatpush2.msra.mxu0 0.0
      %1109 = vmatprep.subr.mxu0 0.0
      %1110 = vmatpush2.msra.mxu0 0.0
      %1111 = vmatprep.subr.mxu0 0.0
      %1112 = vmatpush2.msra.mxu0 0.0
      %1113 = vmatprep.subr.mxu0 0.0
      %1114 = vmatpush2.msra.mxu0 0.0
      %1115 = vmatprep.subr.mxu0 0.0
      %1116 = vmatpush2.msra.mxu0 0.0
      %1117 = vmatprep.subr.mxu0 0.0
      %1118 = vmatpush2.msra.mxu0 0.0
      %1119 = vmatprep.mubr.f32.mxu0 0.0
      %1120 = vmatmul.mubr.f32.gmra.mxu0 %v1053
      %v1121 = vpop.f32.mrf.mxu0
      %v1122 = vadd.f32 0.0, %v1121
      %v1123 = vpop.f32.mrf.mxu0
      %1124 = vdwg.mxu0
      %v1125 = vmax.f32 %v1122, 0.0
      %v1126 = vld [vmem:[%s436] sm:$0xff]
      %v1127 = vld [vmem:[%s436 + $0x8] sm:$0xff]
      %v1128 = vld [vmem:[%s436 + $0x10] sm:$0xff]
      %v1129 = vld [vmem:[%s436 + $0x18] sm:$0xff]
      %v1130 = vld [vmem:[%s436 + $0x20] sm:$0xff]
      %v1131 = vld [vmem:[%s436 + $0x28] sm:$0xff]
      %v1132 = vld [vmem:[%s436 + $0x30] sm:$0xff]
      %v1133 = vld [vmem:[%s436 + $0x38] sm:$0xff]
      %vm1134 = vcmask 523264
      %v1136 = vsel %vm1134, %v1125, 0
      %1138 = vmatprep.subr.mxu0 0.0
      %1139 = vmatpush1.msra.mxu0 0.0
      %1140 = vmatprep.subr.mxu0 0.0
      %1141 = vmatpush1.msra.mxu0 0.0
      %1142 = vmatprep.subr.mxu0 0.0
      %1143 = vmatpush1.msra.mxu0 0.0
      %1144 = vmatprep.subr.mxu0 0.0
      %1145 = vmatpush1.msra.mxu0 0.0
      %1146 = vmatprep.subr.mxu0 0.0
      %1147 = vmatpush1.msra.mxu0 0.0
      %1148 = vmatprep.subr.mxu0 0.0
      %1149 = vmatpush1.msra.mxu0 0.0
      %1150 = vmatprep.subr.mxu0 0.0
      %1151 = vmatpush1.msra.mxu0 0.0
      %1152 = vmatprep.subr.mxu0 0.0
      %1153 = vmatpush1.msra.mxu0 0.0
      %1154 = vmatprep.subr.mxu0 0.0
      %1155 = vmatpush1.msra.mxu0 %v1133
      %1156 = vmatprep.subr.mxu0 0.0
      %1157 = vmatpush1.msra.mxu0 %v1132
      %1158 = vmatprep.subr.mxu0 0.0
      %1159 = vmatpush1.msra.mxu0 %v1131
      %1160 = vmatprep.subr.mxu0 0.0
      %1161 = vmatpush1.msra.mxu0 %v1130
      %1162 = vmatprep.subr.mxu0 0.0
      %1163 = vmatpush1.msra.mxu0 %v1129
      %1164 = vmatprep.subr.mxu0 0.0
      %1165 = vmatpush1.msra.mxu0 %v1128
      %1166 = vmatprep.subr.mxu0 0.0
      %1167 = vmatpush1.msra.mxu0 %v1127
      %1168 = vmatprep.subr.mxu0 0.0
      %1169 = vmatpush1.msra.mxu0 %v1126
      %1170 = vmatprep.subr.mxu0 0.0
      %1171 = vmatpush2.msra.mxu0 0.0
      %1172 = vmatprep.subr.mxu0 0.0
      %1173 = vmatpush2.msra.mxu0 0.0
      %1174 = vmatprep.subr.mxu0 0.0
      %1175 = vmatpush2.msra.mxu0 0.0
      %1176 = vmatprep.subr.mxu0 0.0
      %1177 = vmatpush2.msra.mxu0 0.0
      %1178 = vmatprep.subr.mxu0 0.0
      %1179 = vmatpush2.msra.mxu0 0.0
      %1180 = vmatprep.subr.mxu0 0.0
      %1181 = vmatpush2.msra.mxu0 0.0
      %1182 = vmatprep.subr.mxu0 0.0
      %1183 = vmatpush2.msra.mxu0 0.0
      %1184 = vmatprep.subr.mxu0 0.0
      %1185 = vmatpush2.msra.mxu0 0.0
      %1186 = vmatprep.subr.mxu0 0.0
      %1187 = vmatpush2.msra.mxu0 0.0
      %1188 = vmatprep.subr.mxu0 0.0
      %1189 = vmatpush2.msra.mxu0 0.0
      %1190 = vmatprep.subr.mxu0 0.0
      %1191 = vmatpush2.msra.mxu0 0.0
      %1192 = vmatprep.subr.mxu0 0.0
      %1193 = vmatpush2.msra.mxu0 0.0
      %1194 = vmatprep.subr.mxu0 0.0
      %1195 = vmatpush2.msra.mxu0 0.0
      %1196 = vmatprep.subr.mxu0 0.0
      %1197 = vmatpush2.msra.mxu0 0.0
      %1198 = vmatprep.subr.mxu0 0.0
      %1199 = vmatpush2.msra.mxu0 0.0
      %1200 = vmatprep.subr.mxu0 0.0
      %1201 = vmatpush2.msra.mxu0 0.0
      %1202 = vmatprep.mubr.f32.mxu0 0.0
      %1203 = vmatmul.mubr.f32.gmra.mxu0 %v1136
      %v1204 = vpop.f32.mrf.mxu0
      %v1205 = vadd.f32 0.0, %v1204
      %v1206 = vpop.f32.mrf.mxu0
      %1207 = vdwg.mxu0
      %v1208 = vadd.f32 %v1017, %v1205
      %1209 = vst.msk [vmem:[%s444] sm:$0xff] %vm452, %v1208
      %p1210 = scmp.lt.s32.totalorder %s23, 1
      %s1211 = scalar_select %p1210, %s23, 1
      %p1212 = scmp.lt.s32.totalorder %s24, 1
      %s1213 = scalar_select %p1212, %s24, 1
      %s1214 = smul.addr %s1211, 2
      %s1215 = sadd.s32 %s1213, %s1214
      %s1216 = smul.addr %s1215, 8
      %s1217 = scalar_lea.vmem %s8, %s1216
      // Predicated region
      $region53: #{joint_forward.5} parent=51 // pred_check
        %p1218 = pneg %p259
      $region54: #{joint_forward.5} parent=51 // pred_check_branch
        %1220 = sbr.rel (%p1218) target = $region56
      $region55: #{joint_forward.5} parent=51 // pred_region
        _
      $region56: #{joint_forward.5} parent=51 // pred_fallthru
        _
    $region52: #{joint_forward.5} parent=5 // pred_fallthru
      _
    %p1221 = scmp.le.s32.totalorder 2, %s14
    // Predicated region
    $region57: #{joint_forward.5} parent=5 // pred_check
      %p1222 = pneg %p1221
    $region58: #{joint_forward.5} parent=5 // pred_check_branch
      %1224 = sbr.rel (%p1222) target = $region60
    $region59: #{joint_forward.5} parent=5 // pred_region
      %s1225 = ssub.s32 %s14, 2
      // Predicated region
      $region61: #{joint_forward.5} parent=59 // pred_check
        %p1226 = pneg %p265
      $region62: #{joint_forward.5} parent=59 // pred_check_branch
        %1228 = sbr.rel (%p1226) target = $region64
      $region63: #{joint_forward.5} parent=59 // pred_region
        %p1229 = scmp.lt.s32.totalorder %s25, 1
        %s1230 = scalar_select %p1229, %s25, 1
        %p1231 = scmp.lt.s32.totalorder %s26, 1
        %s1232 = scalar_select %p1231, %s26, 1
        %s1233 = smul.addr %s1230, 2
        %s1234 = sadd.s32 %s1232, %s1233
        %s1235 = smul.addr %s1234, 8
        %s1236 = scalar_lea.vmem %s8, %s1235
      $region64: #{joint_forward.5} parent=59 // pred_fallthru
        _
    $region60: #{joint_forward.5} parent=5 // pred_fallthru
      _
  $region6: #{joint_forward.5} parent=0 // loop_footer
    %s18 = sadd.s32 1, %s14
  $region7: #{joint_forward.5} parent=0 // loop_footer_branch
    %13 = sbr.rel target = $region3
  $region8: #{joint_forward.5} parent=0 // loop_exit
    _

// kernel: joint_forward.6
$region0: #{joint_forward.6}
  #allocation0 [shape = 'u32[]', space=smem, size = 0x4, offset = 0x4, fixed_abs, tag = 'smem constant byte address 0x4 - core index']
  #allocation1 [shape = 'u32[144,128]{1,0:T(1,128)}', space=vmem, size = 0x12000, scoped, tag = 'internal scratch']
  %s0 = inlined_call_operand.vmem [shape: f32[2,1,8], index: 0, kind: input, shape index: {}]
  %s1 = inlined_call_operand.vmem [shape: f32[2,2,8,32], index: 1, kind: input, shape index: {}]
  %s2 = inlined_call_operand.vmem [shape: f32[2,32,96], index: 2, kind: input, shape index: {}]
  %s3 = inlined_call_operand.vmem [shape: f32[2,32,32], index: 3, kind: input, shape index: {}]
  %s4 = inlined_call_operand.vmem [shape: f32[2,1,32], index: 4, kind: input, shape index: {}]
  %s5 = inlined_call_operand.vmem [shape: f32[2,1,32], index: 5, kind: input, shape index: {}]
  %s6 = inlined_call_operand.vmem [shape: f32[2,32,64], index: 6, kind: input, shape index: {}]
  %s7 = inlined_call_operand.vmem [shape: f32[2,64,32], index: 7, kind: input, shape index: {}]
  %s8 = inlined_call_operand.vmem [shape: f32[2,2,8,32], index: 8, kind: output, shape index: {}]
  %s9 = sld [smem:[#allocation0]]
  $region65: #{joint_forward.6} parent=0
    _
  %s11 = ssub.s32 1, %s9
  %s12 = scalar_select 0, %s11, %s9
  loop: start=0, step=1, limit=6
  $region2: #{joint_forward.6} parent=0 // loop_pre_header
    _
  $region3: #{joint_forward.6} parent=0 // loop_header
    %s14 = sphi 0, %s18
    %p15 = scmp.ge.s32.totalorder %s14, 6
    %s21 = sphi 0, %s33
    %s22 = sphi 0, %s29
    %s23 = sphi 0, %s21
    %s24 = sphi 0, %s22
    %s25 = sphi 0, %s23
    %s26 = sphi 0, %s24
    %s36 = sphi 0, %s38
    %s39 = sphi 0, %s36
    %s40 = sphi 0, %s39
    %s56 = sphi 0, %s40
    %s64 = sphi 0, %s66
    %s67 = sphi 0, %s64
    %s68 = sphi 0, %s67
    %s84 = sphi 0, %s68
    %s90 = sphi 0, %s92
    %s93 = sphi 0, %s90
    %s94 = sphi 0, %s93
    %s110 = sphi 0, %s94
    %s116 = sphi 0, %s118
    %s119 = sphi 0, %s116
    %s120 = sphi 0, %s119
    %s136 = sphi 0, %s120
    %s142 = sphi 0, %s144
    %s145 = sphi 0, %s142
    %s146 = sphi 0, %s145
    %s162 = sphi 0, %s146
    %s168 = sphi 0, %s170
    %s171 = sphi 0, %s168
    %s172 = sphi 0, %s171
    %s188 = sphi 0, %s172
    %s194 = sphi 0, %s196
    %s197 = sphi 0, %s194
    %s198 = sphi 0, %s197
    %s214 = sphi 0, %s198
    %s220 = sphi 0, %s222
    %s223 = sphi 0, %s220
    %s224 = sphi 0, %s223
    %s240 = sphi 0, %s224
    %s248 = sphi 0, %s250
    %s251 = sphi 0, %s248
    %s252 = sphi 0, %s251
    %s268 = sphi 0, %s252
  $region4: #{joint_forward.6} parent=0 // loop_header_branch
    %17 = sbr.rel (%p15) target = $region8
  $region5: #{joint_forward.6} parent=0 // loop_body
    %s19 = ssub.s32 %s14, 1
    %s20 = ssub.s32 %s14, 2
    %s27 = sadd.s32 1, %s22
    %p28 = scmp.ge.s32.totalorder %s27, 2
    %s29 = scalar_select %p28, 0, %s27
    %s30 = sadd.s32 1, %s21
    %s31 = scalar_select %p28, %s30, %s21
    %p32 = scmp.ge.s32.totalorder %s31, 2
    %s33 = scalar_select %p32, 0, %s31
    %s34 = ssub.s32 %s22, %s29
    %p35 = scmp.eq.s32.totalorder %s34, 0
    %s37 = sadd.s32 %s36, 1
    %s38 = scalar_select %p35, %s36, %s37
    %p41 = pneg %p35
    %p42 = scmp.eq.s32.totalorder %s14, 3
    %p43 = por %p41, %p42
    %p44 = scmp.ne.s32.totalorder %s36, %s39
    %p45 = scmp.eq.s32.totalorder %s14, 0
    %p46 = por %p44, %p45
    %p47 = scmp.ne.s32.totalorder %s36, %s39
    %p48 = scmp.eq.s32.totalorder %s19, 3
    %p49 = por %p47, %p48
    %p50 = scmp.ne.s32.totalorder %s39, %s40
    %p51 = scmp.eq.s32.totalorder %s19, 0
    %p52 = por %p50, %p51
    %p53 = scmp.ne.s32.totalorder %s39, %s40
    %p54 = scmp.eq.s32.totalorder %s20, 3
    %p55 = por %p53, %p54
    %p57 = scmp.ne.s32.totalorder %s40, %s56
    %p58 = scmp.eq.s32.totalorder %s20, 0
    %p59 = por %p57, %p58
    %s60 = ssub.s32 %s21, %s33
    %s61 = ssub.s32 %s22, %s29
    %s62 = sor.u32 %s60, %s61
    %p63 = scmp.eq.s32.totalorder %s62, 0
    %s65 = sadd.s32 %s64, 1
    %s66 = scalar_select %p63, %s64, %s65
    %p69 = pneg %p63
    %p70 = scmp.eq.s32.totalorder %s14, 3
    %p71 = por %p69, %p70
    %p72 = scmp.ne.s32.totalorder %s64, %s67
    %p73 = scmp.eq.s32.totalorder %s14, 0
    %p74 = por %p72, %p73
    %p75 = scmp.ne.s32.totalorder %s64, %s67
    %p76 = scmp.eq.s32.totalorder %s19, 3
    %p77 = por %p75, %p76
    %p78 = scmp.ne.s32.totalorder %s67, %s68
    %p79 = scmp.eq.s32.totalorder %s19, 0
    %p80 = por %p78, %p79
    %p81 = scmp.ne.s32.totalorder %s67, %s68
    %p82 = scmp.eq.s32.totalorder %s20, 3
    %p83 = por %p81, %p82
    %p85 = scmp.ne.s32.totalorder %s68, %s84
    %p86 = scmp.eq.s32.totalorder %s20, 0
    %p87 = por %p85, %p86
    %s88 = ssub.s32 %s21, %s33
    %p89 = scmp.eq.s32.totalorder %s88, 0
    %s91 = sadd.s32 %s90, 1
    %s92 = scalar_select %p89, %s90, %s91
    %p95 = pneg %p89
    %p96 = scmp.eq.s32.totalorder %s14, 3
    %p97 = por %p95, %p96
    %p98 = scmp.ne.s32.totalorder %s90, %s93
    %p99 = scmp.eq.s32.totalorder %s14, 0
    %p100 = por %p98, %p99
    %p101 = scmp.ne.s32.totalorder %s90, %s93
    %p102 = scmp.eq.s32.totalorder %s19, 3
    %p103 = por %p101, %p102
    %p104 = scmp.ne.s32.totalorder %s93, %s94
    %p105 = scmp.eq.s32.totalorder %s19, 0
    %p106 = por %p104, %p105
    %p107 = scmp.ne.s32.totalorder %s93, %s94
    %p108 = scmp.eq.s32.totalorder %s20, 3
    %p109 = por %p107, %p108
    %p111 = scmp.ne.s32.totalorder %s94, %s110
    %p112 = scmp.eq.s32.totalorder %s20, 0
    %p113 = por %p111, %p112
    %s114 = ssub.s32 %s21, %s33
    %p115 = scmp.eq.s32.totalorder %s114, 0
    %s117 = sadd.s32 %s116, 1
    %s118 = scalar_select %p115, %s116, %s117
    %p121 = pneg %p115
    %p122 = scmp.eq.s32.totalorder %s14, 3
    %p123 = por %p121, %p122
    %p124 = scmp.ne.s32.totalorder %s116, %s119
    %p125 = scmp.eq.s32.totalorder %s14, 0
    %p126 = por %p124, %p125
    %p127 = scmp.ne.s32.totalorder %s116, %s119
    %p128 = scmp.eq.s32.totalorder %s19, 3
    %p129 = por %p127, %p128
    %p130 = scmp.ne.s32.totalorder %s119, %s120
    %p131 = scmp.eq.s32.totalorder %s19, 0
    %p132 = por %p130, %p131
    %p133 = scmp.ne.s32.totalorder %s119, %s120
    %p134 = scmp.eq.s32.totalorder %s20, 3
    %p135 = por %p133, %p134
    %p137 = scmp.ne.s32.totalorder %s120, %s136
    %p138 = scmp.eq.s32.totalorder %s20, 0
    %p139 = por %p137, %p138
    %s140 = ssub.s32 %s21, %s33
    %p141 = scmp.eq.s32.totalorder %s140, 0
    %s143 = sadd.s32 %s142, 1
    %s144 = scalar_select %p141, %s142, %s143
    %p147 = pneg %p141
    %p148 = scmp.eq.s32.totalorder %s14, 3
    %p149 = por %p147, %p148
    %p150 = scmp.ne.s32.totalorder %s142, %s145
    %p151 = scmp.eq.s32.totalorder %s14, 0
    %p152 = por %p150, %p151
    %p153 = scmp.ne.s32.totalorder %s142, %s145
    %p154 = scmp.eq.s32.totalorder %s19, 3
    %p155 = por %p153, %p154
    %p156 = scmp.ne.s32.totalorder %s145, %s146
    %p157 = scmp.eq.s32.totalorder %s19, 0
    %p158 = por %p156, %p157
    %p159 = scmp.ne.s32.totalorder %s145, %s146
    %p160 = scmp.eq.s32.totalorder %s20, 3
    %p161 = por %p159, %p160
    %p163 = scmp.ne.s32.totalorder %s146, %s162
    %p164 = scmp.eq.s32.totalorder %s20, 0
    %p165 = por %p163, %p164
    %s166 = ssub.s32 %s21, %s33
    %p167 = scmp.eq.s32.totalorder %s166, 0
    %s169 = sadd.s32 %s168, 1
    %s170 = scalar_select %p167, %s168, %s169
    %p173 = pneg %p167
    %p174 = scmp.eq.s32.totalorder %s14, 3
    %p175 = por %p173, %p174
    %p176 = scmp.ne.s32.totalorder %s168, %s171
    %p177 = scmp.eq.s32.totalorder %s14, 0
    %p178 = por %p176, %p177
    %p179 = scmp.ne.s32.totalorder %s168, %s171
    %p180 = scmp.eq.s32.totalorder %s19, 3
    %p181 = por %p179, %p180
    %p182 = scmp.ne.s32.totalorder %s171, %s172
    %p183 = scmp.eq.s32.totalorder %s19, 0
    %p184 = por %p182, %p183
    %p185 = scmp.ne.s32.totalorder %s171, %s172
    %p186 = scmp.eq.s32.totalorder %s20, 3
    %p187 = por %p185, %p186
    %p189 = scmp.ne.s32.totalorder %s172, %s188
    %p190 = scmp.eq.s32.totalorder %s20, 0
    %p191 = por %p189, %p190
    %s192 = ssub.s32 %s21, %s33
    %p193 = scmp.eq.s32.totalorder %s192, 0
    %s195 = sadd.s32 %s194, 1
    %s196 = scalar_select %p193, %s194, %s195
    %p199 = pneg %p193
    %p200 = scmp.eq.s32.totalorder %s14, 3
    %p201 = por %p199, %p200
    %p202 = scmp.ne.s32.totalorder %s194, %s197
    %p203 = scmp.eq.s32.totalorder %s14, 0
    %p204 = por %p202, %p203
    %p205 = scmp.ne.s32.totalorder %s194, %s197
    %p206 = scmp.eq.s32.totalorder %s19, 3
    %p207 = por %p205, %p206
    %p208 = scmp.ne.s32.totalorder %s197, %s198
    %p209 = scmp.eq.s32.totalorder %s19, 0
    %p210 = por %p208, %p209
    %p211 = scmp.ne.s32.totalorder %s197, %s198
    %p212 = scmp.eq.s32.totalorder %s20, 3
    %p213 = por %p211, %p212
    %p215 = scmp.ne.s32.totalorder %s198, %s214
    %p216 = scmp.eq.s32.totalorder %s20, 0
    %p217 = por %p215, %p216
    %s218 = ssub.s32 %s21, %s33
    %p219 = scmp.eq.s32.totalorder %s218, 0
    %s221 = sadd.s32 %s220, 1
    %s222 = scalar_select %p219, %s220, %s221
    %p225 = pneg %p219
    %p226 = scmp.eq.s32.totalorder %s14, 3
    %p227 = por %p225, %p226
    %p228 = scmp.ne.s32.totalorder %s220, %s223
    %p229 = scmp.eq.s32.totalorder %s14, 0
    %p230 = por %p228, %p229
    %p231 = scmp.ne.s32.totalorder %s220, %s223
    %p232 = scmp.eq.s32.totalorder %s19, 3
    %p233 = por %p231, %p232
    %p234 = scmp.ne.s32.totalorder %s223, %s224
    %p235 = scmp.eq.s32.totalorder %s19, 0
    %p236 = por %p234, %p235
    %p237 = scmp.ne.s32.totalorder %s223, %s224
    %p238 = scmp.eq.s32.totalorder %s20, 3
    %p239 = por %p237, %p238
    %p241 = scmp.ne.s32.totalorder %s224, %s240
    %p242 = scmp.eq.s32.totalorder %s20, 0
    %p243 = por %p241, %p242
    %s244 = ssub.s32 %s21, %s33
    %s245 = ssub.s32 %s22, %s29
    %s246 = sor.u32 %s244, %s245
    %p247 = scmp.eq.s32.totalorder %s246, 0
    %s249 = sadd.s32 %s248, 1
    %s250 = scalar_select %p247, %s248, %s249
    %p253 = pneg %p247
    %p254 = scmp.eq.s32.totalorder %s14, 3
    %p255 = por %p253, %p254
    %p256 = scmp.ne.s32.totalorder %s248, %s251
    %p257 = scmp.eq.s32.totalorder %s14, 0
    %p258 = por %p256, %p257
    %p259 = scmp.ne.s32.totalorder %s248, %s251
    %p260 = scmp.eq.s32.totalorder %s19, 3
    %p261 = por %p259, %p260
    %p262 = scmp.ne.s32.totalorder %s251, %s252
    %p263 = scmp.eq.s32.totalorder %s19, 0
    %p264 = por %p262, %p263
    %p265 = scmp.ne.s32.totalorder %s251, %s252
    %p266 = scmp.eq.s32.totalorder %s20, 3
    %p267 = por %p265, %p266
    %p269 = scmp.ne.s32.totalorder %s252, %s268
    %p270 = scmp.eq.s32.totalorder %s20, 0
    %p271 = por %p269, %p270
    %p272 = scmp.le.s32.totalorder 1, %s14
    %p273 = scmp.lt.s32.totalorder %s14, 5
    %p274 = pnand %p272, %p273
    %p275 = pneg %p274
    // Predicated region
    $region9: #{joint_forward.6} parent=5 // pred_check
      _
    $region10: #{joint_forward.6} parent=5 // pred_check_branch
      %277 = sbr.rel (%p274) target = $region12
    $region11: #{joint_forward.6} parent=5 // pred_region
      %s278 = ssub.s32 %s14, 1
    $region12: #{joint_forward.6} parent=5 // pred_fallthru
      _
    %p279 = scmp.lt.s32.totalorder %s14, 4
    // Predicated region
    $region13: #{joint_forward.6} parent=5 // pred_check
      %p280 = pneg %p279
    $region14: #{joint_forward.6} parent=5 // pred_check_branch
      %282 = sbr.rel (%p280) target = $region16
    $region15: #{joint_forward.6} parent=5 // pred_region
      // Predicated region
      $region17: #{joint_forward.6} parent=15 // pred_check
        %p283 = pneg %p46
      $region18: #{joint_forward.6} parent=15 // pred_check_branch
        %285 = sbr.rel (%p283) target = $region20
      $region19: #{joint_forward.6} parent=15 // pred_region
        %p286 = scmp.lt.s32.totalorder %s22, 1
        %s287 = scalar_select %p286, %s22, 1
        %s288 = scalar_lea.vmem %s0, %s287
      $region20: #{joint_forward.6} parent=15 // pred_fallthru
        _
      // Predicated region
      $region21: #{joint_forward.6} parent=15 // pred_check
        %p289 = pneg %p74
      $region22: #{joint_forward.6} parent=15 // pred_check_branch
        %291 = sbr.rel (%p289) target = $region24
      $region23: #{joint_forward.6} parent=15 // pred_region
        %p292 = scmp.lt.s32.totalorder %s21, 1
        %s293 = scalar_select %p292, %s21, 1
        %p294 = scmp.lt.s32.totalorder %s22, 1
        %s295 = scalar_select %p294, %s22, 1
        %s296 = smul.addr %s293, 2
        %s297 = sadd.s32 %s295, %s296
        %s298 = smul.addr %s297, 8
        %s299 = scalar_lea.vmem %s1, %s298
      $region24: #{joint_forward.6} parent=15 // pred_fallthru
        _
      // Predicated region
      $region25: #{joint_forward.6} parent=15 // pred_check
        %p300 = pneg %p100
      $region26: #{joint_forward.6} parent=15 // pred_check_branch
        %302 = sbr.rel (%p300) target = $region28
      $region27: #{joint_forward.6} parent=15 // pred_region
        %p303 = scmp.lt.s32.totalorder %s21, 1
        %s304 = scalar_select %p303, %s21, 1
        %s305 = smul.addr %s304, 4
        %s306 = smul.addr %s305, 8
        %s307 = scalar_lea.vmem %s2, %s306
      $region28: #{joint_forward.6} parent=15 // pred_fallthru
        _
      // Predicated region
      $region29: #{joint_forward.6} parent=15 // pred_check
        %p308 = pneg %p126
      $region30: #{joint_forward.6} parent=15 // pred_check_branch
        %310 = sbr.rel (%p308) target = $region32
      $region31: #{joint_forward.6} parent=15 // pred_region
        %p311 = scmp.lt.s32.totalorder %s21, 1
        %s312 = scalar_select %p311, %s21, 1
        %s313 = smul.addr %s312, 4
        %s314 = smul.addr %s313, 8
        %s315 = scalar_lea.vmem %s3, %s314
      $region32: #{joint_forward.6} parent=15 // pred_fallthru
        _
      // Predicated region
      $region33: #{joint_forward.6} parent=15 // pred_check
        %p316 = pneg %p152
      $region34: #{joint_forward.6} parent=15 // pred_check_branch
        %318 = sbr.rel (%p316) target = $region36
      $region35: #{joint_forward.6} parent=15 // pred_region
        %p319 = scmp.lt.s32.totalorder %s21, 1
        %s320 = scalar_select %p319, %s21, 1
        %s321 = scalar_lea.vmem %s4, %s320
      $region36: #{joint_forward.6} parent=15 // pred_fallthru
        _
      // Predicated region
      $region37: #{joint_forward.6} parent=15 // pred_check
        %p322 = pneg %p178
      $region38: #{joint_forward.6} parent=15 // pred_check_branch
        %324 = sbr.rel (%p322) target = $region40
      $region39: #{joint_forward.6} parent=15 // pred_region
        %p325 = scmp.lt.s32.totalorder %s21, 1
        %s326 = scalar_select %p325, %s21, 1
        %s327 = scalar_lea.vmem %s5, %s326
      $region40: #{joint_forward.6} parent=15 // pred_fallthru
        _
      // Predicated region
      $region41: #{joint_forward.6} parent=15 // pred_check
        %p328 = pneg %p204
      $region42: #{joint_forward.6} parent=15 // pred_check_branch
        %330 = sbr.rel (%p328) target = $region44
      $region43: #{joint_forward.6} parent=15 // pred_region
        %p331 = scmp.lt.s32.totalorder %s21, 1
        %s332 = scalar_select %p331, %s21, 1
        %s333 = smul.addr %s332, 4
        %s334 = smul.addr %s333, 8
        %s335 = scalar_lea.vmem %s6, %s334
      $region44: #{joint_forward.6} parent=15 // pred_fallthru
        _
      // Predicated region
      $region45: #{joint_forward.6} parent=15 // pred_check
        %p336 = pneg %p230
      $region46: #{joint_forward.6} parent=15 // pred_check_branch
        %338 = sbr.rel (%p336) target = $region48
      $region47: #{joint_forward.6} parent=15 // pred_region
        %p339 = scmp.lt.s32.totalorder %s21, 1
        %s340 = scalar_select %p339, %s21, 1
        %s341 = smul.addr %s340, 8
        %s342 = smul.addr %s341, 8
        %s343 = scalar_lea.vmem %s7, %s342
      $region48: #{joint_forward.6} parent=15 // pred_fallthru
        _
    $region16: #{joint_forward.6} parent=5 // pred_fallthru
      _
    %p344 = scmp.le.s32.totalorder 1, %s14
    %p345 = scmp.lt.s32.totalorder %s14, 5
    %p346 = pnand %p344, %p345
    %p347 = pneg %p346
    // Predicated region
    $region49: #{joint_forward.6} parent=5 // pred_check
      _
    $region50: #{joint_forward.6} parent=5 // pred_check_branch
      %349 = sbr.rel (%p346) target = $region52
    $region51: #{joint_forward.6} parent=5 // pred_region
      %s350 = ssub.s32 %s14, 1
      %p351 = scmp.lt.s32.totalorder %s24, 1
      %s352 = scalar_select %p351, %s24, 1
      %s353 = scalar_lea.vmem %s0, %s352
      %p354 = pneg %p52
      %p355 = pneg %p49
      %p356 = scmp.lt.s32.totalorder %s23, 1
      %s357 = scalar_select %p356, %s23, 1
      %p358 = scmp.lt.s32.totalorder %s24, 1
      %s359 = scalar_select %p358, %s24, 1
      %s360 = smul.addr %s357, 2
      %s361 = sadd.s32 %s359, %s360
      %s362 = smul.addr %s361, 8
      %s363 = scalar_lea.vmem %s1, %s362
      %p364 = pneg %p80
      %p365 = pneg %p77
      %p366 = scmp.lt.s32.totalorder %s23, 1
      %s367 = scalar_select %p366, %s23, 1
      %s368 = smul.addr %s367, 4
      %s369 = smul.addr %s368, 8
      %s370 = scalar_lea.vmem %s2, %s369
      %p371 = pneg %p106
      %p372 = pneg %p103
      %p373 = scmp.lt.s32.totalorder %s23, 1
      %s374 = scalar_select %p373, %s23, 1
      %s375 = smul.addr %s374, 4
      %s376 = smul.addr %s375, 8
      %s377 = scalar_lea.vmem %s3, %s376
      %p378 = pneg %p132
      %p379 = pneg %p129
      %p380 = scmp.lt.s32.totalorder %s23, 1
      %s381 = scalar_select %p380, %s23, 1
      %s382 = scalar_lea.vmem %s4, %s381
      %p383 = pneg %p158
      %p384 = pneg %p155
      %p385 = scmp.lt.s32.totalorder %s23, 1
      %s386 = scalar_select %p385, %s23, 1
      %s387 = scalar_lea.vmem %s5, %s386
      %p388 = pneg %p184
      %p389 = pneg %p181
      %p390 = scmp.lt.s32.totalorder %s23, 1
      %s391 = scalar_select %p390, %s23, 1
      %s392 = smul.addr %s391, 4
      %s393 = smul.addr %s392, 8
      %s394 = scalar_lea.vmem %s6, %s393
      %p395 = pneg %p210
      %p396 = pneg %p207
      %p397 = scmp.lt.s32.totalorder %s23, 1
      %s398 = scalar_select %p397, %s23, 1
      %s399 = smul.addr %s398, 8
      %s400 = smul.addr %s399, 8
      %s401 = scalar_lea.vmem %s7, %s400
      %p402 = pneg %p236
      %p403 = pneg %p233
      %p404 = pneg %p264
      %p405 = pneg %p261
      %p406 = scmp.lt.s32.totalorder %s23, 1
      %s407 = scalar_select %p406, %s23, 1
      %p408 = scmp.lt.s32.totalorder %s24, 1
      %s409 = scalar_select %p408, %s24, 1
      %s410 = smul.addr %s407, 2
      %s411 = sadd.s32 %s409, %s410
      %s412 = smul.addr %s411, 8
      %s413 = scalar_lea.vmem %s8, %s412
      %p414 = scmp.lt.s32.totalorder %s24, 1
      %s415 = scalar_select %p414, %s24, 1
      %s416 = scalar_lea.vmem %s0, %s415
      %p417 = scmp.lt.s32.totalorder %s23, 1
      %s418 = scalar_select %p417, %s23, 1
      %p419 = scmp.lt.s32.totalorder %s24, 1
      %s420 = scalar_select %p419, %s24, 1
      %s421 = smul.addr %s418, 2
      %s422 = sadd.s32 %s420, %s421
      %s423 = smul.addr %s422, 8
      %s424 = scalar_lea.vmem %s1, %s423
      %p425 = scmp.lt.s32.totalorder %s23, 1
      %s426 = scalar_select %p425, %s23, 1
      %s427 = smul.addr %s426, 4
      %s428 = smul.addr %s427, 8
      %s429 = scalar_lea.vmem %s2, %s428
      %p430 = scmp.lt.s32.totalorder %s23, 1
      %s431 = scalar_select %p430, %s23, 1
      %s432 = smul.addr %s431, 4
      %s433 = smul.addr %s432, 8
      %s434 = scalar_lea.vmem %s3, %s433
      %p435 = scmp.lt.s32.totalorder %s23, 1
      %s436 = scalar_select %p435, %s23, 1
      %s437 = scalar_lea.vmem %s4, %s436
      %p438 = scmp.lt.s32.totalorder %s23, 1
      %s439 = scalar_select %p438, %s23, 1
      %s440 = scalar_lea.vmem %s5, %s439
      %p441 = scmp.lt.s32.totalorder %s23, 1
      %s442 = scalar_select %p441, %s23, 1
      %s443 = smul.addr %s442, 4
      %s444 = smul.addr %s443, 8
      %s445 = scalar_lea.vmem %s6, %s444
      %p446 = scmp.lt.s32.totalorder %s23, 1
      %s447 = scalar_select %p446, %s23, 1
      %s448 = smul.addr %s447, 8
      %s449 = smul.addr %s448, 8
      %s450 = scalar_lea.vmem %s7, %s449
      %p451 = scmp.lt.s32.totalorder %s23, 1
      %s452 = scalar_select %p451, %s23, 1
      %p453 = scmp.lt.s32.totalorder %s24, 1
      %s454 = scalar_select %p453, %s24, 1
      %s455 = smul.addr %s452, 2
      %s456 = sadd.s32 %s454, %s455
      %s457 = smul.addr %s456, 8
      %s458 = scalar_lea.vmem %s8, %s457
      %v459 = vld [vmem:[%s424] sm:$0xff]
      %v460 = vld [vmem:[%s416] sm:$0x1]
      %vm461 = vcmp.gt.f32.partialorder %v460, 0.5
      %v462 = vld [vmem:[%s429] sm:$0xff]
      %v463 = vld [vmem:[%s429 + $0x8] sm:$0xff]
      %v464 = vld [vmem:[%s429 + $0x10] sm:$0xff]
      %v465 = vld [vmem:[%s429 + $0x18] sm:$0xff]
      %vm466 = vcmask 261120
      %v468 = vsel %vm466, %v459, 0
      %470 = vmatprep.subr.mxu0 0.0
      %471 = vmatpush1.msra.mxu0 0.0
      %472 = vmatprep.subr.mxu0 0.0
      %473 = vmatpush1.msra.mxu0 0.0
      %474 = vmatprep.subr.mxu0 0.0
      %475 = vmatpush1.msra.mxu0 0.0
      %476 = vmatprep.subr.mxu0 0.0
      %477 = vmatpush1.msra.mxu0 0.0
      %478 = vmatprep.subr.mxu0 0.0
      %479 = vmatpush1.msra.mxu0 0.0
      %480 = vmatprep.subr.mxu0 0.0
      %481 = vmatpush1.msra.mxu0 0.0
      %482 = vmatprep.subr.mxu0 0.0
      %483 = vmatpush1.msra.mxu0 0.0
      %484 = vmatprep.subr.mxu0 0.0
      %485 = vmatpush1.msra.mxu0 0.0
      %486 = vmatprep.subr.mxu0 0.0
      %487 = vmatpush1.msra.mxu0 0.0
      %488 = vmatprep.subr.mxu0 0.0
      %489 = vmatpush1.msra.mxu0 0.0
      %490 = vmatprep.subr.mxu0 0.0
      %491 = vmatpush1.msra.mxu0 0.0
      %492 = vmatprep.subr.mxu0 0.0
      %493 = vmatpush1.msra.mxu0 0.0
      %494 = vmatprep.subr.mxu0 0.0
      %495 = vmatpush1.msra.mxu0 %v465
      %496 = vmatprep.subr.mxu0 0.0
      %497 = vmatpush1.msra.mxu0 %v464
      %498 = vmatprep.subr.mxu0 0.0
      %499 = vmatpush1.msra.mxu0 %v463
      %500 = vmatprep.subr.mxu0 0.0
      %501 = vmatpush1.msra.mxu0 %v462
      %502 = vmatprep.subr.mxu0 0.0
      %503 = vmatpush2.msra.mxu0 0.0
      %504 = vmatprep.subr.mxu0 0.0
      %505 = vmatpush2.msra.mxu0 0.0
      %506 = vmatprep.subr.mxu0 0.0
      %507 = vmatpush2.msra.mxu0 0.0
      %508 = vmatprep.subr.mxu0 0.0
      %509 = vmatpush2.msra.mxu0 0.0
      %510 = vmatprep.subr.mxu0 0.0
      %511 = vmatpush2.msra.mxu0 0.0
      %512 = vmatprep.subr.mxu0 0.0
      %513 = vmatpush2.msra.mxu0 0.0
      %514 = vmatprep.subr.mxu0 0.0
      %515 = vmatpush2.msra.mxu0 0.0
      %516 = vmatprep.subr.mxu0 0.0
      %517 = vmatpush2.msra.mxu0 0.0
      %518 = vmatprep.subr.mxu0 0.0
      %519 = vmatpush2.msra.mxu0 0.0
      %520 = vmatprep.subr.mxu0 0.0
      %521 = vmatpush2.msra.mxu0 0.0
      %522 = vmatprep.subr.mxu0 0.0
      %523 = vmatpush2.msra.mxu0 0.0
      %524 = vmatprep.subr.mxu0 0.0
      %525 = vmatpush2.msra.mxu0 0.0
      %526 = vmatprep.subr.mxu0 0.0
      %527 = vmatpush2.msra.mxu0 0.0
      %528 = vmatprep.subr.mxu0 0.0
      %529 = vmatpush2.msra.mxu0 0.0
      %530 = vmatprep.subr.mxu0 0.0
      %531 = vmatpush2.msra.mxu0 0.0
      %532 = vmatprep.subr.mxu0 0.0
      %533 = vmatpush2.msra.mxu0 0.0
      %534 = vmatprep.mubr.f32.mxu0 0.0
      %535 = vmatmul.mubr.f32.gmra.mxu0 %v468
      %v536 = vpop.f32.mrf.mxu0
      %v537 = vadd.f32 0.0, %v536
      %v538 = vpop.f32.mrf.mxu0
      %539 = vdwg.mxu0
      %v540 = vld [vmem:[%s434] sm:$0xff]
      %v541 = vld [vmem:[%s434 + $0x8] sm:$0xff]
      %v542 = vld [vmem:[%s434 + $0x10] sm:$0xff]
      %v543 = vld [vmem:[%s434 + $0x18] sm:$0xff]
      %545 = vrot.lane.b32.xlu0 %v537, 96
      %v546 = vpop.permute.xlu0 %545
      %vm547 = vcmask 130048
      %v548 = vsel %vm547, %v537, 0
      %v550 = vsel %vm547, %v546, 0
      %552 = vmatprep.subr.mxu0 0.0
      %553 = vmatpush1.xpose.msra.mxu0 0.0
      %554 = vmatprep.subr.mxu0 0.0
      %555 = vmatpush1.xpose.msra.mxu0 0.0
      %556 = vmatprep.subr.mxu0 0.0
      %557 = vmatpush1.xpose.msra.mxu0 0.0
      %558 = vmatprep.subr.mxu0 0.0
      %559 = vmatpush1.xpose.msra.mxu0 0.0
      %560 = vmatprep.subr.mxu0 0.0
      %561 = vmatpush1.xpose.msra.mxu0 0.0
      %562 = vmatprep.subr.mxu0 0.0
      %563 = vmatpush1.xpose.msra.mxu0 0.0
      %564 = vmatprep.subr.mxu0 0.0
      %565 = vmatpush1.xpose.msra.mxu0 0.0
      %566 = vmatprep.subr.mxu0 0.0
      %567 = vmatpush1.xpose.msra.mxu0 0.0
      %568 = vmatprep.subr.mxu0 0.0
      %569 = vmatpush1.xpose.msra.mxu0 0.0
      %570 = vmatprep.subr.mxu0 0.0
      %571 = vmatpush1.xpose.msra.mxu0 0.0
      %572 = vmatprep.subr.mxu0 0.0
      %573 = vmatpush1.xpose.msra.mxu0 0.0
      %574 = vmatprep.subr.mxu0 0.0
      %575 = vmatpush1.xpose.msra.mxu0 0.0
      %576 = vmatprep.subr.mxu0 0.0
      %577 = vmatpush1.xpose.msra.mxu0 0.0
      %578 = vmatprep.subr.mxu0 0.0
      %579 = vmatpush1.xpose.msra.mxu0 0.0
      %580 = vmatprep.subr.mxu0 0.0
      %581 = vmatpush1.xpose.msra.mxu0 0.0
      %582 = vmatprep.subr.mxu0 0.0
      %583 = vmatpush1.xpose.msra.mxu0 %v550
      %584 = vmatprep.subr.mxu0 0.0
      %585 = vmatpush2.xpose.msra.mxu0 0.0
      %586 = vmatprep.subr.mxu0 0.0
      %587 = vmatpush2.xpose.msra.mxu0 0.0
      %588 = vmatprep.subr.mxu0 0.0
      %589 = vmatpush2.xpose.msra.mxu0 0.0
      %590 = vmatprep.subr.mxu0 0.0
      %591 = vmatpush2.xpose.msra.mxu0 0.0
      %592 = vmatprep.subr.mxu0 0.0
      %593 = vmatpush2.xpose.msra.mxu0 0.0
      %594 = vmatprep.subr.mxu0 0.0
      %595 = vmatpush2.xpose.msra.mxu0 0.0
      %596 = vmatprep.subr.mxu0 0.0
      %597 = vmatpush2.xpose.msra.mxu0 0.0
      %598 = vmatprep.subr.mxu0 0.0
      %599 = vmatpush2.xpose.msra.mxu0 0.0
      %600 = vmatprep.subr.mxu0 0.0
      %601 = vmatpush2.xpose.msra.mxu0 0.0
      %602 = vmatprep.subr.mxu0 0.0
      %603 = vmatpush2.xpose.msra.mxu0 0.0
      %604 = vmatprep.subr.mxu0 0.0
      %605 = vmatpush2.xpose.msra.mxu0 0.0
      %606 = vmatprep.subr.mxu0 0.0
      %607 = vmatpush2.xpose.msra.mxu0 0.0
      %608 = vmatprep.subr.mxu0 0.0
      %609 = vmatpush2.xpose.msra.mxu0 0.0
      %610 = vmatprep.subr.mxu0 0.0
      %611 = vmatpush2.xpose.msra.mxu0 0.0
      %612 = vmatprep.subr.mxu0 0.0
      %613 = vmatpush2.xpose.msra.mxu0 0.0
      %614 = vmatprep.subr.mxu0 0.0
      %615 = vmatpush2.xpose.msra.mxu0 0.0
      %616 = vmatprep.mubr.f32.mxu0 0.0
      %617 = vmatmul.mubr.f32.gmra.mxu0 %v548
      %v618 = vpop.f32.mrf.mxu0
      %v619 = vadd.f32 0.0, %v618
      %v620 = vpop.f32.mrf.mxu0
      %621 = vdwg.mxu0
      %v622 = vmul.f32 %v619, 0.25
      %v623 = vsel %vm461, 1, 0
      %v624 = vlaneseq
      %v625 = vshrl.u32 %v624, 7
      %v626 = vsub.s32 0, %v625
      %v627 = vrot.slane %v623, %v626
      %vm628 = vcmp.eq.s32.totalorder %v627, 1
      %v629 = vsel %vm628, -1e+09, %v622
      %vm630 = vcmask 64512
      %v631 = vsel %vm630, %v629, -inf
      %632 = vmax.xlane.f32.xlu0 %v631
      %v633 = vpop.xlane.xlu0 %632
      %v634 = vsub.f32 %v629, %v633
      %v635 = vmul.f32 %v634, 1.442695
      %v636 = vpow.pop %v635
      %v637 = vsel %vm630, %v636, 0.0
      %638 = vadd.xlane.f32.xlu0 %v637
      %v639 = vpop.xlane.xlu0 %638
      %v640 = vrcp.pop %v639
      %v641 = vmul.f32 %v636, %v640
      %642 = vrot.lane.b32.xlu0 %v537, 64
      %v643 = vpop.permute.xlu0 %642
      %v646 = vsel %vm630, %v641, 0
      %648 = vmatprep.subr.mxu0 0.0
      %649 = vmatpush1.msra.mxu0 0.0
      %650 = vmatprep.subr.mxu0 0.0
      %651 = vmatpush1.msra.mxu0 0.0
      %652 = vmatprep.subr.mxu0 0.0
      %653 = vmatpush1.msra.mxu0 0.0
      %654 = vmatprep.subr.mxu0 0.0
      %655 = vmatpush1.msra.mxu0 0.0
      %656 = vmatprep.subr.mxu0 0.0
      %657 = vmatpush1.msra.mxu0 0.0
      %658 = vmatprep.subr.mxu0 0.0
      %659 = vmatpush1.msra.mxu0 0.0
      %660 = vmatprep.subr.mxu0 0.0
      %661 = vmatpush1.msra.mxu0 0.0
      %662 = vmatprep.subr.mxu0 0.0
      %663 = vmatpush1.msra.mxu0 0.0
      %664 = vmatprep.subr.mxu0 0.0
      %665 = vmatpush1.msra.mxu0 0.0
      %666 = vmatprep.subr.mxu0 0.0
      %667 = vmatpush1.msra.mxu0 0.0
      %668 = vmatprep.subr.mxu0 0.0
      %669 = vmatpush1.msra.mxu0 0.0
      %670 = vmatprep.subr.mxu0 0.0
      %671 = vmatpush1.msra.mxu0 0.0
      %672 = vmatprep.subr.mxu0 0.0
      %673 = vmatpush1.msra.mxu0 0.0
      %674 = vmatprep.subr.mxu0 0.0
      %675 = vmatpush1.msra.mxu0 0.0
      %676 = vmatprep.subr.mxu0 0.0
      %677 = vmatpush1.msra.mxu0 0.0
      %678 = vmatprep.subr.mxu0 0.0
      %679 = vmatpush1.msra.mxu0 %v643
      %680 = vmatprep.subr.mxu0 0.0
      %681 = vmatpush2.msra.mxu0 0.0
      %682 = vmatprep.subr.mxu0 0.0
      %683 = vmatpush2.msra.mxu0 0.0
      %684 = vmatprep.subr.mxu0 0.0
      %685 = vmatpush2.msra.mxu0 0.0
      %686 = vmatprep.subr.mxu0 0.0
      %687 = vmatpush2.msra.mxu0 0.0
      %688 = vmatprep.subr.mxu0 0.0
      %689 = vmatpush2.msra.mxu0 0.0
      %690 = vmatprep.subr.mxu0 0.0
      %691 = vmatpush2.msra.mxu0 0.0
      %692 = vmatprep.subr.mxu0 0.0
      %693 = vmatpush2.msra.mxu0 0.0
      %694 = vmatprep.subr.mxu0 0.0
      %695 = vmatpush2.msra.mxu0 0.0
      %696 = vmatprep.subr.mxu0 0.0
      %697 = vmatpush2.msra.mxu0 0.0
      %698 = vmatprep.subr.mxu0 0.0
      %699 = vmatpush2.msra.mxu0 0.0
      %700 = vmatprep.subr.mxu0 0.0
      %701 = vmatpush2.msra.mxu0 0.0
      %702 = vmatprep.subr.mxu0 0.0
      %703 = vmatpush2.msra.mxu0 0.0
      %704 = vmatprep.subr.mxu0 0.0
      %705 = vmatpush2.msra.mxu0 0.0
      %706 = vmatprep.subr.mxu0 0.0
      %707 = vmatpush2.msra.mxu0 0.0
      %708 = vmatprep.subr.mxu0 0.0
      %709 = vmatpush2.msra.mxu0 0.0
      %710 = vmatprep.subr.mxu0 0.0
      %711 = vmatpush2.msra.mxu0 0.0
      %712 = vmatprep.mubr.f32.mxu0 0.0
      %713 = vmatmul.mubr.f32.gmra.mxu0 %v646
      %v714 = vpop.f32.mrf.mxu0
      %v715 = vadd.f32 0.0, %v714
      %v716 = vpop.f32.mrf.mxu0
      %717 = vdwg.mxu0
      %718 = vrot.lane.b32.xlu0 %v537, 112
      %v719 = vpop.permute.xlu0 %718
      %720 = vrot.lane.b32.xlu0 %v537, 80
      %v721 = vpop.permute.xlu0 %720
      %v722 = vsel %vm547, %v719, 0
      %v724 = vsel %vm547, %v721, 0
      %726 = vmatprep.subr.mxu0 0.0
      %727 = vmatpush1.xpose.msra.mxu0 0.0
      %728 = vmatprep.subr.mxu0 0.0
      %729 = vmatpush1.xpose.msra.mxu0 0.0
      %730 = vmatprep.subr.mxu0 0.0
      %731 = vmatpush1.xpose.msra.mxu0 0.0
      %732 = vmatprep.subr.mxu0 0.0
      %733 = vmatpush1.xpose.msra.mxu0 0.0
      %734 = vmatprep.subr.mxu0 0.0
      %735 = vmatpush1.xpose.msra.mxu0 0.0
      %736 = vmatprep.subr.mxu0 0.0
      %737 = vmatpush1.xpose.msra.mxu0 0.0
      %738 = vmatprep.subr.mxu0 0.0
      %739 = vmatpush1.xpose.msra.mxu0 0.0
      %740 = vmatprep.subr.mxu0 0.0
      %741 = vmatpush1.xpose.msra.mxu0 0.0
      %742 = vmatprep.subr.mxu0 0.0
      %743 = vmatpush1.xpose.msra.mxu0 0.0
      %744 = vmatprep.subr.mxu0 0.0
      %745 = vmatpush1.xpose.msra.mxu0 0.0
      %746 = vmatprep.subr.mxu0 0.0
      %747 = vmatpush1.xpose.msra.mxu0 0.0
      %748 = vmatprep.subr.mxu0 0.0
      %749 = vmatpush1.xpose.msra.mxu0 0.0
      %750 = vmatprep.subr.mxu0 0.0
      %751 = vmatpush1.xpose.msra.mxu0 0.0
      %752 = vmatprep.subr.mxu0 0.0
      %753 = vmatpush1.xpose.msra.mxu0 0.0
      %754 = vmatprep.subr.mxu0 0.0
      %755 = vmatpush1.xpose.msra.mxu0 0.0
      %756 = vmatprep.subr.mxu0 0.0
      %757 = vmatpush1.xpose.msra.mxu0 %v724
      %758 = vmatprep.subr.mxu0 0.0
      %759 = vmatpush2.xpose.msra.mxu0 0.0
      %760 = vmatprep.subr.mxu0 0.0
      %761 = vmatpush2.xpose.msra.mxu0 0.0
      %762 = vmatprep.subr.mxu0 0.0
      %763 = vmatpush2.xpose.msra.mxu0 0.0
      %764 = vmatprep.subr.mxu0 0.0
      %765 = vmatpush2.xpose.msra.mxu0 0.0
      %766 = vmatprep.subr.mxu0 0.0
      %767 = vmatpush2.xpose.msra.mxu0 0.0
      %768 = vmatprep.subr.mxu0 0.0
      %769 = vmatpush2.xpose.msra.mxu0 0.0
      %770 = vmatprep.subr.mxu0 0.0
      %771 = vmatpush2.xpose.msra.mxu0 0.0
      %772 = vmatprep.subr.mxu0 0.0
      %773 = vmatpush2.xpose.msra.mxu0 0.0
      %774 = vmatprep.subr.mxu0 0.0
      %775 = vmatpush2.xpose.msra.mxu0 0.0
      %776 = vmatprep.subr.mxu0 0.0
      %777 = vmatpush2.xpose.msra.mxu0 0.0
      %778 = vmatprep.subr.mxu0 0.0
      %779 = vmatpush2.xpose.msra.mxu0 0.0
      %780 = vmatprep.subr.mxu0 0.0
      %781 = vmatpush2.xpose.msra.mxu0 0.0
      %782 = vmatprep.subr.mxu0 0.0
      %783 = vmatpush2.xpose.msra.mxu0 0.0
      %784 = vmatprep.subr.mxu0 0.0
      %785 = vmatpush2.xpose.msra.mxu0 0.0
      %786 = vmatprep.subr.mxu0 0.0
      %787 = vmatpush2.xpose.msra.mxu0 0.0
      %788 = vmatprep.subr.mxu0 0.0
      %789 = vmatpush2.xpose.msra.mxu0 0.0
      %790 = vmatprep.mubr.f32.mxu0 0.0
      %791 = vmatmul.mubr.f32.gmra.mxu0 %v722
      %v792 = vpop.f32.mrf.mxu0
      %v793 = vadd.f32 0.0, %v792
      %v794 = vpop.f32.mrf.mxu0
      %795 = vdwg.mxu0
      %v796 = vmul.f32 %v793, 0.25
      %v797 = vsel %vm628, -1e+09, %v796
      %v798 = vsel %vm630, %v797, -inf
      %799 = vmax.xlane.f32.xlu0 %v798
      %v800 = vpop.xlane.xlu0 %799
      %v801 = vsub.f32 %v797, %v800
      %v802 = vmul.f32 %v801, 1.442695
      %v803 = vpow.pop %v802
      %v804 = vsel %vm630, %v803, 0.0
      %805 = vadd.xlane.f32.xlu0 %v804
      %v806 = vpop.xlane.xlu0 %805
      %v807 = vrcp.pop %v806
      %v808 = vmul.f32 %v803, %v807
      %809 = vrot.lane.b32.xlu0 %v537, 48
      %v810 = vpop.permute.xlu0 %809
      %v813 = vsel %vm630, %v808, 0
      %815 = vmatprep.subr.mxu0 0.0
      %816 = vmatpush1.msra.mxu0 0.0
      %817 = vmatprep.subr.mxu0 0.0
      %818 = vmatpush1.msra.mxu0 0.0
      %819 = vmatprep.subr.mxu0 0.0
      %820 = vmatpush1.msra.mxu0 0.0
      %821 = vmatprep.subr.mxu0 0.0
      %822 = vmatpush1.msra.mxu0 0.0
      %823 = vmatprep.subr.mxu0 0.0
      %824 = vmatpush1.msra.mxu0 0.0
      %825 = vmatprep.subr.mxu0 0.0
      %826 = vmatpush1.msra.mxu0 0.0
      %827 = vmatprep.subr.mxu0 0.0
      %828 = vmatpush1.msra.mxu0 0.0
      %829 = vmatprep.subr.mxu0 0.0
      %830 = vmatpush1.msra.mxu0 0.0
      %831 = vmatprep.subr.mxu0 0.0
      %832 = vmatpush1.msra.mxu0 0.0
      %833 = vmatprep.subr.mxu0 0.0
      %834 = vmatpush1.msra.mxu0 0.0
      %835 = vmatprep.subr.mxu0 0.0
      %836 = vmatpush1.msra.mxu0 0.0
      %837 = vmatprep.subr.mxu0 0.0
      %838 = vmatpush1.msra.mxu0 0.0
      %839 = vmatprep.subr.mxu0 0.0
      %840 = vmatpush1.msra.mxu0 0.0
      %841 = vmatprep.subr.mxu0 0.0
      %842 = vmatpush1.msra.mxu0 0.0
      %843 = vmatprep.subr.mxu0 0.0
      %844 = vmatpush1.msra.mxu0 0.0
      %845 = vmatprep.subr.mxu0 0.0
      %846 = vmatpush1.msra.mxu0 %v810
      %847 = vmatprep.subr.mxu0 0.0
      %848 = vmatpush2.msra.mxu0 0.0
      %849 = vmatprep.subr.mxu0 0.0
      %850 = vmatpush2.msra.mxu0 0.0
      %851 = vmatprep.subr.mxu0 0.0
      %852 = vmatpush2.msra.mxu0 0.0
      %853 = vmatprep.subr.mxu0 0.0
      %854 = vmatpush2.msra.mxu0 0.0
      %855 = vmatprep.subr.mxu0 0.0
      %856 = vmatpush2.msra.mxu0 0.0
      %857 = vmatprep.subr.mxu0 0.0
      %858 = vmatpush2.msra.mxu0 0.0
      %859 = vmatprep.subr.mxu0 0.0
      %860 = vmatpush2.msra.mxu0 0.0
      %861 = vmatprep.subr.mxu0 0.0
      %862 = vmatpush2.msra.mxu0 0.0
      %863 = vmatprep.subr.mxu0 0.0
      %864 = vmatpush2.msra.mxu0 0.0
      %865 = vmatprep.subr.mxu0 0.0
      %866 = vmatpush2.msra.mxu0 0.0
      %867 = vmatprep.subr.mxu0 0.0
      %868 = vmatpush2.msra.mxu0 0.0
      %869 = vmatprep.subr.mxu0 0.0
      %870 = vmatpush2.msra.mxu0 0.0
      %871 = vmatprep.subr.mxu0 0.0
      %872 = vmatpush2.msra.mxu0 0.0
      %873 = vmatprep.subr.mxu0 0.0
      %874 = vmatpush2.msra.mxu0 0.0
      %875 = vmatprep.subr.mxu0 0.0
      %876 = vmatpush2.msra.mxu0 0.0
      %877 = vmatprep.subr.mxu0 0.0
      %878 = vmatpush2.msra.mxu0 0.0
      %879 = vmatprep.mubr.f32.mxu0 0.0
      %880 = vmatmul.mubr.f32.gmra.mxu0 %v813
      %v881 = vpop.f32.mrf.mxu0
      %v882 = vadd.f32 0.0, %v881
      %v883 = vpop.f32.mrf.mxu0
      %884 = vdwg.mxu0
      %v886 = vsel %vm547, %v882, 0
      %888 = vmatprep.subr.mxu0 0.0
      %889 = vmatpush1.msra.mxu0 0.0
      %890 = vmatprep.subr.mxu0 0.0
      %891 = vmatpush1.msra.mxu0 0.0
      %892 = vmatprep.subr.mxu0 0.0
      %893 = vmatpush1.msra.mxu0 0.0
      %894 = vmatprep.subr.mxu0 0.0
      %895 = vmatpush1.msra.mxu0 0.0
      %896 = vmatprep.subr.mxu0 0.0
      %897 = vmatpush1.msra.mxu0 0.0
      %898 = vmatprep.subr.mxu0 0.0
      %899 = vmatpush1.msra.mxu0 0.0
      %900 = vmatprep.subr.mxu0 0.0
      %901 = vmatpush1.msra.mxu0 0.0
      %902 = vmatprep.subr.mxu0 0.0
      %903 = vmatpush1.msra.mxu0 0.0
      %904 = vmatprep.subr.mxu0 0.0
      %905 = vmatpush1.msra.mxu0 0.0
      %906 = vmatprep.subr.mxu0 0.0
      %907 = vmatpush1.msra.mxu0 0.0
      %908 = vmatprep.subr.mxu0 0.0
      %909 = vmatpush1.msra.mxu0 0.0
      %910 = vmatprep.subr.mxu0 0.0
      %911 = vmatpush1.msra.mxu0 0.0
      %912 = vmatprep.subr.mxu0 0.0
      %913 = vmatpush1.msra.mxu0 0.0
      %914 = vmatprep.subr.mxu0 0.0
      %915 = vmatpush1.msra.mxu0 0.0
      %916 = vmatprep.subr.mxu0 0.0
      %917 = vmatpush1.msra.mxu0 %v543
      %918 = vmatprep.subr.mxu0 0.0
      %919 = vmatpush1.msra.mxu0 %v542
      %920 = vmatprep.subr.mxu0 0.0
      %921 = vmatpush2.msra.mxu0 0.0
      %922 = vmatprep.subr.mxu0 0.0
      %923 = vmatpush2.msra.mxu0 0.0
      %924 = vmatprep.subr.mxu0 0.0
      %925 = vmatpush2.msra.mxu0 0.0
      %926 = vmatprep.subr.mxu0 0.0
      %927 = vmatpush2.msra.mxu0 0.0
      %928 = vmatprep.subr.mxu0 0.0
      %929 = vmatpush2.msra.mxu0 0.0
      %930 = vmatprep.subr.mxu0 0.0
      %931 = vmatpush2.msra.mxu0 0.0
      %932 = vmatprep.subr.mxu0 0.0
      %933 = vmatpush2.msra.mxu0 0.0
      %934 = vmatprep.subr.mxu0 0.0
      %935 = vmatpush2.msra.mxu0 0.0
      %936 = vmatprep.subr.mxu0 0.0
      %937 = vmatpush2.msra.mxu0 0.0
      %938 = vmatprep.subr.mxu0 0.0
      %939 = vmatpush2.msra.mxu0 0.0
      %940 = vmatprep.subr.mxu0 0.0
      %941 = vmatpush2.msra.mxu0 0.0
      %942 = vmatprep.subr.mxu0 0.0
      %943 = vmatpush2.msra.mxu0 0.0
      %944 = vmatprep.subr.mxu0 0.0
      %945 = vmatpush2.msra.mxu0 0.0
      %946 = vmatprep.subr.mxu0 0.0
      %947 = vmatpush2.msra.mxu0 0.0
      %948 = vmatprep.subr.mxu0 0.0
      %949 = vmatpush2.msra.mxu0 0.0
      %950 = vmatprep.subr.mxu0 0.0
      %951 = vmatpush2.msra.mxu0 0.0
      %952 = vmatprep.mubr.f32.mxu0 0.0
      %953 = vmatmul.mubr.f32.gmra.mxu0 %v886
      %v954 = vpop.f32.mrf.mxu0
      %v955 = vadd.f32 0.0, %v954
      %v956 = vpop.f32.mrf.mxu0
      %957 = vdwg.mxu0
      %v959 = vsel %vm547, %v715, 0
      %961 = vmatprep.subr.mxu0 0.0
      %962 = vmatpush1.msra.mxu0 0.0
      %963 = vmatprep.subr.mxu0 0.0
      %964 = vmatpush1.msra.mxu0 0.0
      %965 = vmatprep.subr.mxu0 0.0
      %966 = vmatpush1.msra.mxu0 0.0
      %967 = vmatprep.subr.mxu0 0.0
      %968 = vmatpush1.msra.mxu0 0.0
      %969 = vmatprep.subr.mxu0 0.0
      %970 = vmatpush1.msra.mxu0 0.0
      %971 = vmatprep.subr.mxu0 0.0
      %972 = vmatpush1.msra.mxu0 0.0
      %973 = vmatprep.subr.mxu0 0.0
      %974 = vmatpush1.msra.mxu0 0.0
      %975 = vmatprep.subr.mxu0 0.0
      %976 = vmatpush1.msra.mxu0 0.0
      %977 = vmatprep.subr.mxu0 0.0
      %978 = vmatpush1.msra.mxu0 0.0
      %979 = vmatprep.subr.mxu0 0.0
      %980 = vmatpush1.msra.mxu0 0.0
      %981 = vmatprep.subr.mxu0 0.0
      %982 = vmatpush1.msra.mxu0 0.0
      %983 = vmatprep.subr.mxu0 0.0
      %984 = vmatpush1.msra.mxu0 0.0
      %985 = vmatprep.subr.mxu0 0.0
      %986 = vmatpush1.msra.mxu0 0.0
      %987 = vmatprep.subr.mxu0 0.0
      %988 = vmatpush1.msra.mxu0 0.0
      %989 = vmatprep.subr.mxu0 0.0
      %990 = vmatpush1.msra.mxu0 %v541
      %991 = vmatprep.subr.mxu0 0.0
      %992 = vmatpush1.msra.mxu0 %v540
      %993 = vmatprep.subr.mxu0 0.0
      %994 = vmatpush2.msra.mxu0 0.0
      %995 = vmatprep.subr.mxu0 0.0
      %996 = vmatpush2.msra.mxu0 0.0
      %997 = vmatprep.subr.mxu0 0.0
      %998 = vmatpush2.msra.mxu0 0.0
      %999 = vmatprep.subr.mxu0 0.0
      %1000 = vmatpush2.msra.mxu0 0.0
      %1001 = vmatprep.subr.mxu0 0.0
      %1002 = vmatpush2.msra.mxu0 0.0
      %1003 = vmatprep.subr.mxu0 0.0
      %1004 = vmatpush2.msra.mxu0 0.0
      %1005 = vmatprep.subr.mxu0 0.0
      %1006 = vmatpush2.msra.mxu0 0.0
      %1007 = vmatprep.subr.mxu0 0.0
      %1008 = vmatpush2.msra.mxu0 0.0
      %1009 = vmatprep.subr.mxu0 0.0
      %1010 = vmatpush2.msra.mxu0 0.0
      %1011 = vmatprep.subr.mxu0 0.0
      %1012 = vmatpush2.msra.mxu0 0.0
      %1013 = vmatprep.subr.mxu0 0.0
      %1014 = vmatpush2.msra.mxu0 0.0
      %1015 = vmatprep.subr.mxu0 0.0
      %1016 = vmatpush2.msra.mxu0 0.0
      %1017 = vmatprep.subr.mxu0 0.0
      %1018 = vmatpush2.msra.mxu0 0.0
      %1019 = vmatprep.subr.mxu0 0.0
      %1020 = vmatpush2.msra.mxu0 0.0
      %1021 = vmatprep.subr.mxu0 0.0
      %1022 = vmatpush2.msra.mxu0 0.0
      %1023 = vmatprep.subr.mxu0 0.0
      %1024 = vmatpush2.msra.mxu0 0.0
      %1025 = vmatprep.mubr.f32.mxu0 0.0
      %1026 = vmatmul.mubr.f32.gmra.mxu0 %v959
      %v1027 = vpop.f32.mrf.mxu0
      %v1028 = vadd.f32 %v955, %v1027
      %v1029 = vpop.f32.mrf.mxu0
      %1030 = vdwg.mxu0
      %v1031 = vadd.f32 %v459, %v1028
      %v1032 = vsel %vm466, %v1031, 0.0
      %1033 = vadd.xlane.f32.xlu0 %v1032
      %v1034 = vpop.xlane.xlu0 %1033
      %v1035 = vrcp.pop 32.0
      %v1036 = vmul.f32 %v1034, %v1035
      %v1037 = vsub.f32 %v1031, %v1036
      %v1038 = vmul.f32 %v1037, %v1037
      %v1039 = vsel %vm466, %v1038, 0.0
      %1040 = vadd.xlane.f32.xlu0 %v1039
      %v1041 = vpop.xlane.xlu0 %1040
      %v1042 = vmul.f32 %v1041, %v1035
      %v1043 = vadd.f32 %v1042, 1e-05
      %v1044 = vrsqrt.pop %v1043
      %v1045 = vmul.f32 %v1037, %v1044
      %v1046 = vld [vmem:[%s437] sm:$0x1]
      %v1048 = vlaneseq
      %v1049 = vshrl.u32 %v1048, 7
      %v1050 = vsub.s32 0, %v1049
      %v1051 = vrot.slane %v1046, %v1050
      %v1053 = vmul.f32 %v1045, %v1051
      %v1054 = vld [vmem:[%s440] sm:$0x1]
      %v1056 = vlaneseq
      %v1057 = vshrl.u32 %v1056, 7
      %v1058 = vsub.s32 0, %v1057
      %v1059 = vrot.slane %v1054, %v1058
      %v1061 = vadd.f32 %v1053, %v1059
      %v1062 = vld [vmem:[%s445] sm:$0xff]
      %v1063 = vld [vmem:[%s445 + $0x8] sm:$0xff]
      %v1064 = vld [vmem:[%s445 + $0x10] sm:$0xff]
      %v1065 = vld [vmem:[%s445 + $0x18] sm:$0xff]
      %v1067 = vsel %vm466, %v1061, 0
      %1069 = vmatprep.subr.mxu0 0.0
      %1070 = vmatpush1.msra.mxu0 0.0
      %1071 = vmatprep.subr.mxu0 0.0
      %1072 = vmatpush1.msra.mxu0 0.0
      %1073 = vmatprep.subr.mxu0 0.0
      %1074 = vmatpush1.msra.mxu0 0.0
      %1075 = vmatprep.subr.mxu0 0.0
      %1076 = vmatpush1.msra.mxu0 0.0
      %1077 = vmatprep.subr.mxu0 0.0
      %1078 = vmatpush1.msra.mxu0 0.0
      %1079 = vmatprep.subr.mxu0 0.0
      %1080 = vmatpush1.msra.mxu0 0.0
      %1081 = vmatprep.subr.mxu0 0.0
      %1082 = vmatpush1.msra.mxu0 0.0
      %1083 = vmatprep.subr.mxu0 0.0
      %1084 = vmatpush1.msra.mxu0 0.0
      %1085 = vmatprep.subr.mxu0 0.0
      %1086 = vmatpush1.msra.mxu0 0.0
      %1087 = vmatprep.subr.mxu0 0.0
      %1088 = vmatpush1.msra.mxu0 0.0
      %1089 = vmatprep.subr.mxu0 0.0
      %1090 = vmatpush1.msra.mxu0 0.0
      %1091 = vmatprep.subr.mxu0 0.0
      %1092 = vmatpush1.msra.mxu0 0.0
      %1093 = vmatprep.subr.mxu0 0.0
      %1094 = vmatpush1.msra.mxu0 %v1065
      %1095 = vmatprep.subr.mxu0 0.0
      %1096 = vmatpush1.msra.mxu0 %v1064
      %1097 = vmatprep.subr.mxu0 0.0
      %1098 = vmatpush1.msra.mxu0 %v1063
      %1099 = vmatprep.subr.mxu0 0.0
      %1100 = vmatpush1.msra.mxu0 %v1062
      %1101 = vmatprep.subr.mxu0 0.0
      %1102 = vmatpush2.msra.mxu0 0.0
      %1103 = vmatprep.subr.mxu0 0.0
      %1104 = vmatpush2.msra.mxu0 0.0
      %1105 = vmatprep.subr.mxu0 0.0
      %1106 = vmatpush2.msra.mxu0 0.0
      %1107 = vmatprep.subr.mxu0 0.0
      %1108 = vmatpush2.msra.mxu0 0.0
      %1109 = vmatprep.subr.mxu0 0.0
      %1110 = vmatpush2.msra.mxu0 0.0
      %1111 = vmatprep.subr.mxu0 0.0
      %1112 = vmatpush2.msra.mxu0 0.0
      %1113 = vmatprep.subr.mxu0 0.0
      %1114 = vmatpush2.msra.mxu0 0.0
      %1115 = vmatprep.subr.mxu0 0.0
      %1116 = vmatpush2.msra.mxu0 0.0
      %1117 = vmatprep.subr.mxu0 0.0
      %1118 = vmatpush2.msra.mxu0 0.0
      %1119 = vmatprep.subr.mxu0 0.0
      %1120 = vmatpush2.msra.mxu0 0.0
      %1121 = vmatprep.subr.mxu0 0.0
      %1122 = vmatpush2.msra.mxu0 0.0
      %1123 = vmatprep.subr.mxu0 0.0
      %1124 = vmatpush2.msra.mxu0 0.0
      %1125 = vmatprep.subr.mxu0 0.0
      %1126 = vmatpush2.msra.mxu0 0.0
      %1127 = vmatprep.subr.mxu0 0.0
      %1128 = vmatpush2.msra.mxu0 0.0
      %1129 = vmatprep.subr.mxu0 0.0
      %1130 = vmatpush2.msra.mxu0 0.0
      %1131 = vmatprep.subr.mxu0 0.0
      %1132 = vmatpush2.msra.mxu0 0.0
      %1133 = vmatprep.mubr.f32.mxu0 0.0
      %1134 = vmatmul.mubr.f32.gmra.mxu0 %v1067
      %v1135 = vpop.f32.mrf.mxu0
      %v1136 = vadd.f32 0.0, %v1135
      %v1137 = vpop.f32.mrf.mxu0
      %1138 = vdwg.mxu0
      %v1139 = vmax.f32 %v1136, 0.0
      %v1140 = vld [vmem:[%s450] sm:$0xff]
      %v1141 = vld [vmem:[%s450 + $0x8] sm:$0xff]
      %v1142 = vld [vmem:[%s450 + $0x10] sm:$0xff]
      %v1143 = vld [vmem:[%s450 + $0x18] sm:$0xff]
      %v1144 = vld [vmem:[%s450 + $0x20] sm:$0xff]
      %v1145 = vld [vmem:[%s450 + $0x28] sm:$0xff]
      %v1146 = vld [vmem:[%s450 + $0x30] sm:$0xff]
      %v1147 = vld [vmem:[%s450 + $0x38] sm:$0xff]
      %vm1148 = vcmask 523264
      %v1150 = vsel %vm1148, %v1139, 0
      %1152 = vmatprep.subr.mxu0 0.0
      %1153 = vmatpush1.msra.mxu0 0.0
      %1154 = vmatprep.subr.mxu0 0.0
      %1155 = vmatpush1.msra.mxu0 0.0
      %1156 = vmatprep.subr.mxu0 0.0
      %1157 = vmatpush1.msra.mxu0 0.0
      %1158 = vmatprep.subr.mxu0 0.0
      %1159 = vmatpush1.msra.mxu0 0.0
      %1160 = vmatprep.subr.mxu0 0.0
      %1161 = vmatpush1.msra.mxu0 0.0
      %1162 = vmatprep.subr.mxu0 0.0
      %1163 = vmatpush1.msra.mxu0 0.0
      %1164 = vmatprep.subr.mxu0 0.0
      %1165 = vmatpush1.msra.mxu0 0.0
      %1166 = vmatprep.subr.mxu0 0.0
      %1167 = vmatpush1.msra.mxu0 0.0
      %1168 = vmatprep.subr.mxu0 0.0
      %1169 = vmatpush1.msra.mxu0 %v1147
      %1170 = vmatprep.subr.mxu0 0.0
      %1171 = vmatpush1.msra.mxu0 %v1146
      %1172 = vmatprep.subr.mxu0 0.0
      %1173 = vmatpush1.msra.mxu0 %v1145
      %1174 = vmatprep.subr.mxu0 0.0
      %1175 = vmatpush1.msra.mxu0 %v1144
      %1176 = vmatprep.subr.mxu0 0.0
      %1177 = vmatpush1.msra.mxu0 %v1143
      %1178 = vmatprep.subr.mxu0 0.0
      %1179 = vmatpush1.msra.mxu0 %v1142
      %1180 = vmatprep.subr.mxu0 0.0
      %1181 = vmatpush1.msra.mxu0 %v1141
      %1182 = vmatprep.subr.mxu0 0.0
      %1183 = vmatpush1.msra.mxu0 %v1140
      %1184 = vmatprep.subr.mxu0 0.0
      %1185 = vmatpush2.msra.mxu0 0.0
      %1186 = vmatprep.subr.mxu0 0.0
      %1187 = vmatpush2.msra.mxu0 0.0
      %1188 = vmatprep.subr.mxu0 0.0
      %1189 = vmatpush2.msra.mxu0 0.0
      %1190 = vmatprep.subr.mxu0 0.0
      %1191 = vmatpush2.msra.mxu0 0.0
      %1192 = vmatprep.subr.mxu0 0.0
      %1193 = vmatpush2.msra.mxu0 0.0
      %1194 = vmatprep.subr.mxu0 0.0
      %1195 = vmatpush2.msra.mxu0 0.0
      %1196 = vmatprep.subr.mxu0 0.0
      %1197 = vmatpush2.msra.mxu0 0.0
      %1198 = vmatprep.subr.mxu0 0.0
      %1199 = vmatpush2.msra.mxu0 0.0
      %1200 = vmatprep.subr.mxu0 0.0
      %1201 = vmatpush2.msra.mxu0 0.0
      %1202 = vmatprep.subr.mxu0 0.0
      %1203 = vmatpush2.msra.mxu0 0.0
      %1204 = vmatprep.subr.mxu0 0.0
      %1205 = vmatpush2.msra.mxu0 0.0
      %1206 = vmatprep.subr.mxu0 0.0
      %1207 = vmatpush2.msra.mxu0 0.0
      %1208 = vmatprep.subr.mxu0 0.0
      %1209 = vmatpush2.msra.mxu0 0.0
      %1210 = vmatprep.subr.mxu0 0.0
      %1211 = vmatpush2.msra.mxu0 0.0
      %1212 = vmatprep.subr.mxu0 0.0
      %1213 = vmatpush2.msra.mxu0 0.0
      %1214 = vmatprep.subr.mxu0 0.0
      %1215 = vmatpush2.msra.mxu0 0.0
      %1216 = vmatprep.mubr.f32.mxu0 0.0
      %1217 = vmatmul.mubr.f32.gmra.mxu0 %v1150
      %v1218 = vpop.f32.mrf.mxu0
      %v1219 = vadd.f32 0.0, %v1218
      %v1220 = vpop.f32.mrf.mxu0
      %1221 = vdwg.mxu0
      %v1222 = vadd.f32 %v1031, %v1219
      %1223 = vst.msk [vmem:[%s458] sm:$0xff] %vm466, %v1222
      %p1224 = scmp.lt.s32.totalorder %s23, 1
      %s1225 = scalar_select %p1224, %s23, 1
      %p1226 = scmp.lt.s32.totalorder %s24, 1
      %s1227 = scalar_select %p1226, %s24, 1
      %s1228 = smul.addr %s1225, 2
      %s1229 = sadd.s32 %s1227, %s1228
      %s1230 = smul.addr %s1229, 8
      %s1231 = scalar_lea.vmem %s8, %s1230
      // Predicated region
      $region53: #{joint_forward.6} parent=51 // pred_check
        %p1232 = pneg %p261
      $region54: #{joint_forward.6} parent=51 // pred_check_branch
        %1234 = sbr.rel (%p1232) target = $region56
      $region55: #{joint_forward.6} parent=51 // pred_region
        _
      $region56: #{joint_forward.6} parent=51 // pred_fallthru
        _
    $region52: #{joint_forward.6} parent=5 // pred_fallthru
      _
    %p1235 = scmp.le.s32.totalorder 2, %s14
    // Predicated region
    $region57: #{joint_forward.6} parent=5 // pred_check
      %p1236 = pneg %p1235
    $region58: #{joint_forward.6} parent=5 // pred_check_branch
      %1238 = sbr.rel (%p1236) target = $region60
    $region59: #{joint_forward.6} parent=5 // pred_region
      %s1239 = ssub.s32 %s14, 2
      // Predicated region
      $region61: #{joint_forward.6} parent=59 // pred_check
        %p1240 = pneg %p267
      $region62: #{joint_forward.6} parent=59 // pred_check_branch
        %1242 = sbr.rel (%p1240) target = $region64
      $region63: #{joint_forward.6} parent=59 // pred_region
        %p1243 = scmp.lt.s32.totalorder %s25, 1
        %s1244 = scalar_select %p1243, %s25, 1
        %p1245 = scmp.lt.s32.totalorder %s26, 1
        %s1246 = scalar_select %p1245, %s26, 1
        %s1247 = smul.addr %s1244, 2
        %s1248 = sadd.s32 %s1246, %s1247
        %s1249 = smul.addr %s1248, 8
        %s1250 = scalar_lea.vmem %s8, %s1249
      $region64: #{joint_forward.6} parent=59 // pred_fallthru
        _
    $region60: #{joint_forward.6} parent=5 // pred_fallthru
      _
  $region6: #{joint_forward.6} parent=0 // loop_footer
    %s18 = sadd.s32 1, %s14
  $region7: #{joint_forward.6} parent=0 // loop_footer_branch
    %13 = sbr.rel target = $region3
  $region8: #{joint_forward.6} parent=0 // loop_exit
    _

// kernel: joint_forward.7
$region0: #{joint_forward.7}
  #allocation0 [shape = 'u32[]', space=smem, size = 0x4, offset = 0x4, fixed_abs, tag = 'smem constant byte address 0x4 - core index']
  #allocation1 [shape = 'u32[144,128]{1,0:T(1,128)}', space=vmem, size = 0x12000, scoped, tag = 'internal scratch']
  %s0 = inlined_call_operand.vmem [shape: f32[5,32], index: 0, kind: input, shape index: {}]
  %s1 = inlined_call_operand.vmem [shape: f32[5,32], index: 1, kind: input, shape index: {}]
  %s2 = inlined_call_operand.vmem [shape: f32[5,1], index: 2, kind: input, shape index: {}]
  %s3 = inlined_call_operand.vmem [shape: f32[32,32], index: 3, kind: input, shape index: {}]
  %s4 = inlined_call_operand.vmem [shape: f32[1,32], index: 4, kind: input, shape index: {}]
  %s5 = inlined_call_operand.vmem [shape: f32[32,32], index: 5, kind: input, shape index: {}]
  %s6 = inlined_call_operand.vmem [shape: f32[1,32], index: 6, kind: input, shape index: {}]
  %s7 = inlined_call_operand.vmem [shape: f32[16,3], index: 7, kind: input, shape index: {}]
  %s8 = inlined_call_operand.vmem [shape: f32[16,3], index: 8, kind: input, shape index: {}]
  %s9 = inlined_call_operand.vmem [shape: f32[1,3], index: 9, kind: input, shape index: {}]
  %s10 = inlined_call_operand.vmem [shape: f32[16,3], index: 10, kind: input, shape index: {}]
  %s11 = inlined_call_operand.vmem [shape: f32[5,3], index: 11, kind: output, shape index: {}]
  %s12 = sld [smem:[#allocation0]]
  $region54: #{joint_forward.7} parent=0
    _
  %s14 = ssub.s32 1, %s12
  %s15 = scalar_select 0, %s14, %s12
  // Predicated region
  $region2: #{joint_forward.7} parent=0 // pred_check
    _
  $region3: #{joint_forward.7} parent=0 // pred_check_branch
    %17 = sbr.rel (0) target = $region5
  $region4: #{joint_forward.7} parent=0 // pred_region
    _
  $region5: #{joint_forward.7} parent=0 // pred_fallthru
    _
  // Predicated region
  $region6: #{joint_forward.7} parent=0 // pred_check
    _
  $region7: #{joint_forward.7} parent=0 // pred_check_branch
    %19 = sbr.rel (0) target = $region9
  $region8: #{joint_forward.7} parent=0 // pred_region
    _
  $region9: #{joint_forward.7} parent=0 // pred_fallthru
    _
  // Predicated region
  $region10: #{joint_forward.7} parent=0 // pred_check
    _
  $region11: #{joint_forward.7} parent=0 // pred_check_branch
    %21 = sbr.rel (0) target = $region13
  $region12: #{joint_forward.7} parent=0 // pred_region
    _
  $region13: #{joint_forward.7} parent=0 // pred_fallthru
    _
  // Predicated region
  $region14: #{joint_forward.7} parent=0 // pred_check
    _
  $region15: #{joint_forward.7} parent=0 // pred_check_branch
    %23 = sbr.rel (0) target = $region17
  $region16: #{joint_forward.7} parent=0 // pred_region
    _
  $region17: #{joint_forward.7} parent=0 // pred_fallthru
    _
  // Predicated region
  $region18: #{joint_forward.7} parent=0 // pred_check
    _
  $region19: #{joint_forward.7} parent=0 // pred_check_branch
    %25 = sbr.rel (0) target = $region21
  $region20: #{joint_forward.7} parent=0 // pred_region
    _
  $region21: #{joint_forward.7} parent=0 // pred_fallthru
    _
  // Predicated region
  $region22: #{joint_forward.7} parent=0 // pred_check
    _
  $region23: #{joint_forward.7} parent=0 // pred_check_branch
    %27 = sbr.rel (0) target = $region25
  $region24: #{joint_forward.7} parent=0 // pred_region
    _
  $region25: #{joint_forward.7} parent=0 // pred_fallthru
    _
  // Predicated region
  $region26: #{joint_forward.7} parent=0 // pred_check
    _
  $region27: #{joint_forward.7} parent=0 // pred_check_branch
    %29 = sbr.rel (0) target = $region29
  $region28: #{joint_forward.7} parent=0 // pred_region
    _
  $region29: #{joint_forward.7} parent=0 // pred_fallthru
    _
  // Predicated region
  $region30: #{joint_forward.7} parent=0 // pred_check
    _
  $region31: #{joint_forward.7} parent=0 // pred_check_branch
    %31 = sbr.rel (0) target = $region33
  $region32: #{joint_forward.7} parent=0 // pred_region
    _
  $region33: #{joint_forward.7} parent=0 // pred_fallthru
    _
  // Predicated region
  $region34: #{joint_forward.7} parent=0 // pred_check
    _
  $region35: #{joint_forward.7} parent=0 // pred_check_branch
    %33 = sbr.rel (0) target = $region37
  $region36: #{joint_forward.7} parent=0 // pred_region
    _
  $region37: #{joint_forward.7} parent=0 // pred_fallthru
    _
  // Predicated region
  $region38: #{joint_forward.7} parent=0 // pred_check
    _
  $region39: #{joint_forward.7} parent=0 // pred_check_branch
    %35 = sbr.rel (0) target = $region41
  $region40: #{joint_forward.7} parent=0 // pred_region
    _
  $region41: #{joint_forward.7} parent=0 // pred_fallthru
    _
  // Predicated region
  $region42: #{joint_forward.7} parent=0 // pred_check
    _
  $region43: #{joint_forward.7} parent=0 // pred_check_branch
    %37 = sbr.rel (0) target = $region45
  $region44: #{joint_forward.7} parent=0 // pred_region
    _
  $region45: #{joint_forward.7} parent=0 // pred_fallthru
    _
  %v38 = vld [vmem:[%s2] sm:$0x1f]
  %v39 = vld [vmem:[%s0] sm:$0x1f]
  %v40 = vld [vmem:[%s3] sm:$0xff]
  %v41 = vld [vmem:[%s3 + $0x8] sm:$0xff]
  %v42 = vld [vmem:[%s3 + $0x10] sm:$0xff]
  %v43 = vld [vmem:[%s3 + $0x18] sm:$0xff]
  %v44 = vld [vmem:[%s4] sm:$0x1]
  %v46 = vlaneseq
  %v47 = vshrl.u32 %v46, 7
  %v48 = vsub.s32 0, %v47
  %v49 = vrot.slane %v44, %v48
  %vm51 = vcmask 261120
  %v53 = vsel %vm51, %v39, 0
  %55 = vmatprep.subr.mxu0 0.0
  %56 = vmatpush1.msra.mxu0 0.0
  %57 = vmatprep.subr.mxu0 0.0
  %58 = vmatpush1.msra.mxu0 0.0
  %59 = vmatprep.subr.mxu0 0.0
  %60 = vmatpush1.msra.mxu0 0.0
  %61 = vmatprep.subr.mxu0 0.0
  %62 = vmatpush1.msra.mxu0 0.0
  %63 = vmatprep.subr.mxu0 0.0
  %64 = vmatpush1.msra.mxu0 0.0
  %65 = vmatprep.subr.mxu0 0.0
  %66 = vmatpush1.msra.mxu0 0.0
  %67 = vmatprep.subr.mxu0 0.0
  %68 = vmatpush1.msra.mxu0 0.0
  %69 = vmatprep.subr.mxu0 0.0
  %70 = vmatpush1.msra.mxu0 0.0
  %71 = vmatprep.subr.mxu0 0.0
  %72 = vmatpush1.msra.mxu0 0.0
  %73 = vmatprep.subr.mxu0 0.0
  %74 = vmatpush1.msra.mxu0 0.0
  %75 = vmatprep.subr.mxu0 0.0
  %76 = vmatpush1.msra.mxu0 0.0
  %77 = vmatprep.subr.mxu0 0.0
  %78 = vmatpush1.msra.mxu0 0.0
  %79 = vmatprep.subr.mxu0 0.0
  %80 = vmatpush1.msra.mxu0 %v43
  %81 = vmatprep.subr.mxu0 0.0
  %82 = vmatpush1.msra.mxu0 %v42
  %83 = vmatprep.subr.mxu0 0.0
  %84 = vmatpush1.msra.mxu0 %v41
  %85 = vmatprep.subr.mxu0 0.0
  %86 = vmatpush1.msra.mxu0 %v40
  %87 = vmatprep.subr.mxu0 0.0
  %88 = vmatpush2.msra.mxu0 0.0
  %89 = vmatprep.subr.mxu0 0.0
  %90 = vmatpush2.msra.mxu0 0.0
  %91 = vmatprep.subr.mxu0 0.0
  %92 = vmatpush2.msra.mxu0 0.0
  %93 = vmatprep.subr.mxu0 0.0
  %94 = vmatpush2.msra.mxu0 0.0
  %95 = vmatprep.subr.mxu0 0.0
  %96 = vmatpush2.msra.mxu0 0.0
  %97 = vmatprep.subr.mxu0 0.0
  %98 = vmatpush2.msra.mxu0 0.0
  %99 = vmatprep.subr.mxu0 0.0
  %100 = vmatpush2.msra.mxu0 0.0
  %101 = vmatprep.subr.mxu0 0.0
  %102 = vmatpush2.msra.mxu0 0.0
  %103 = vmatprep.subr.mxu0 0.0
  %104 = vmatpush2.msra.mxu0 0.0
  %105 = vmatprep.subr.mxu0 0.0
  %106 = vmatpush2.msra.mxu0 0.0
  %107 = vmatprep.subr.mxu0 0.0
  %108 = vmatpush2.msra.mxu0 0.0
  %109 = vmatprep.subr.mxu0 0.0
  %110 = vmatpush2.msra.mxu0 0.0
  %111 = vmatprep.subr.mxu0 0.0
  %112 = vmatpush2.msra.mxu0 0.0
  %113 = vmatprep.subr.mxu0 0.0
  %114 = vmatpush2.msra.mxu0 0.0
  %115 = vmatprep.subr.mxu0 0.0
  %116 = vmatpush2.msra.mxu0 0.0
  %117 = vmatprep.subr.mxu0 0.0
  %118 = vmatpush2.msra.mxu0 0.0
  %119 = vmatprep.mubr.f32.mxu0 0.0
  %120 = vmatmul.mubr.f32.gmra.mxu0 %v53
  %v121 = vpop.f32.mrf.mxu0
  %v122 = vadd.f32 %v49, %v121
  %v123 = vpop.f32.mrf.mxu0
  %124 = vdwg.mxu0
  %126 = vset.pattern.permute.xlu0 0
  %127 = vperm.xlu0 %126, %v38
  %v128 = vpop.permute.xlu0 %127
  %v130 = vmul.f32 %v128, %v122
  %v131 = vsub.f32 1.0, %v38
  %133 = vset.pattern.permute.xlu0 0
  %134 = vperm.xlu0 %133, %v131
  %v135 = vpop.permute.xlu0 %134
  %v137 = vmul.f32 %v135, %v122
  %139 = vrot.lane.b32.xlu0 %v137, 112
  %v140 = vpop.permute.xlu0 %139
  %v142 = vadd.f32 %v130, %v140
  %v143 = vmax.f32 %v142, 0.0
  %v144 = vld [vmem:[%s1] sm:$0x1f]
  %v145 = vld [vmem:[%s5] sm:$0xff]
  %v146 = vld [vmem:[%s5 + $0x8] sm:$0xff]
  %v147 = vld [vmem:[%s5 + $0x10] sm:$0xff]
  %v148 = vld [vmem:[%s5 + $0x18] sm:$0xff]
  %v149 = vld [vmem:[%s6] sm:$0x1]
  %v151 = vlaneseq
  %v152 = vshrl.u32 %v151, 7
  %v153 = vsub.s32 0, %v152
  %v154 = vrot.slane %v149, %v153
  %v157 = vsel %vm51, %v144, 0
  %159 = vmatprep.subr.mxu0 0.0
  %160 = vmatpush1.msra.mxu0 0.0
  %161 = vmatprep.subr.mxu0 0.0
  %162 = vmatpush1.msra.mxu0 0.0
  %163 = vmatprep.subr.mxu0 0.0
  %164 = vmatpush1.msra.mxu0 0.0
  %165 = vmatprep.subr.mxu0 0.0
  %166 = vmatpush1.msra.mxu0 0.0
  %167 = vmatprep.subr.mxu0 0.0
  %168 = vmatpush1.msra.mxu0 0.0
  %169 = vmatprep.subr.mxu0 0.0
  %170 = vmatpush1.msra.mxu0 0.0
  %171 = vmatprep.subr.mxu0 0.0
  %172 = vmatpush1.msra.mxu0 0.0
  %173 = vmatprep.subr.mxu0 0.0
  %174 = vmatpush1.msra.mxu0 0.0
  %175 = vmatprep.subr.mxu0 0.0
  %176 = vmatpush1.msra.mxu0 0.0
  %177 = vmatprep.subr.mxu0 0.0
  %178 = vmatpush1.msra.mxu0 0.0
  %179 = vmatprep.subr.mxu0 0.0
  %180 = vmatpush1.msra.mxu0 0.0
  %181 = vmatprep.subr.mxu0 0.0
  %182 = vmatpush1.msra.mxu0 0.0
  %183 = vmatprep.subr.mxu0 0.0
  %184 = vmatpush1.msra.mxu0 %v148
  %185 = vmatprep.subr.mxu0 0.0
  %186 = vmatpush1.msra.mxu0 %v147
  %187 = vmatprep.subr.mxu0 0.0
  %188 = vmatpush1.msra.mxu0 %v146
  %189 = vmatprep.subr.mxu0 0.0
  %190 = vmatpush1.msra.mxu0 %v145
  %191 = vmatprep.subr.mxu0 0.0
  %192 = vmatpush2.msra.mxu0 0.0
  %193 = vmatprep.subr.mxu0 0.0
  %194 = vmatpush2.msra.mxu0 0.0
  %195 = vmatprep.subr.mxu0 0.0
  %196 = vmatpush2.msra.mxu0 0.0
  %197 = vmatprep.subr.mxu0 0.0
  %198 = vmatpush2.msra.mxu0 0.0
  %199 = vmatprep.subr.mxu0 0.0
  %200 = vmatpush2.msra.mxu0 0.0
  %201 = vmatprep.subr.mxu0 0.0
  %202 = vmatpush2.msra.mxu0 0.0
  %203 = vmatprep.subr.mxu0 0.0
  %204 = vmatpush2.msra.mxu0 0.0
  %205 = vmatprep.subr.mxu0 0.0
  %206 = vmatpush2.msra.mxu0 0.0
  %207 = vmatprep.subr.mxu0 0.0
  %208 = vmatpush2.msra.mxu0 0.0
  %209 = vmatprep.subr.mxu0 0.0
  %210 = vmatpush2.msra.mxu0 0.0
  %211 = vmatprep.subr.mxu0 0.0
  %212 = vmatpush2.msra.mxu0 0.0
  %213 = vmatprep.subr.mxu0 0.0
  %214 = vmatpush2.msra.mxu0 0.0
  %215 = vmatprep.subr.mxu0 0.0
  %216 = vmatpush2.msra.mxu0 0.0
  %217 = vmatprep.subr.mxu0 0.0
  %218 = vmatpush2.msra.mxu0 0.0
  %219 = vmatprep.subr.mxu0 0.0
  %220 = vmatpush2.msra.mxu0 0.0
  %221 = vmatprep.subr.mxu0 0.0
  %222 = vmatpush2.msra.mxu0 0.0
  %223 = vmatprep.mubr.f32.mxu0 0.0
  %224 = vmatmul.mubr.f32.gmra.mxu0 %v157
  %v225 = vpop.f32.mrf.mxu0
  %v226 = vadd.f32 %v154, %v225
  %v227 = vpop.f32.mrf.mxu0
  %228 = vdwg.mxu0
  %v229 = vmul.f32 %v128, %v226
  %v230 = vmul.f32 %v135, %v226
  %232 = vrot.lane.b32.xlu0 %v230, 112
  %v233 = vpop.permute.xlu0 %232
  %v235 = vadd.f32 %v229, %v233
  %v236 = vmax.f32 %v235, 0.0
  %v237 = vld [vmem:[%s7] sm:$0xff]
  %v238 = vld [vmem:[%s7 + $0x8] sm:$0xff]
  %v239 = vld [vmem:[%s8] sm:$0xff]
  %v240 = vld [vmem:[%s8 + $0x8] sm:$0xff]
  %vm241 = vcmask 130048
  %v243 = vsel %vm241, %v236, 0
  %245 = vmatprep.subr.mxu0 0.0
  %246 = vmatpush1.msra.mxu0 0.0
  %247 = vmatprep.subr.mxu0 0.0
  %248 = vmatpush1.msra.mxu0 0.0
  %249 = vmatprep.subr.mxu0 0.0
  %250 = vmatpush1.msra.mxu0 0.0
  %251 = vmatprep.subr.mxu0 0.0
  %252 = vmatpush1.msra.mxu0 0.0
  %253 = vmatprep.subr.mxu0 0.0
  %254 = vmatpush1.msra.mxu0 0.0
  %255 = vmatprep.subr.mxu0 0.0
  %256 = vmatpush1.msra.mxu0 0.0
  %257 = vmatprep.subr.mxu0 0.0
  %258 = vmatpush1.msra.mxu0 0.0
  %259 = vmatprep.subr.mxu0 0.0
  %260 = vmatpush1.msra.mxu0 0.0
  %261 = vmatprep.subr.mxu0 0.0
  %262 = vmatpush1.msra.mxu0 0.0
  %263 = vmatprep.subr.mxu0 0.0
  %264 = vmatpush1.msra.mxu0 0.0
  %265 = vmatprep.subr.mxu0 0.0
  %266 = vmatpush1.msra.mxu0 0.0
  %267 = vmatprep.subr.mxu0 0.0
  %268 = vmatpush1.msra.mxu0 0.0
  %269 = vmatprep.subr.mxu0 0.0
  %270 = vmatpush1.msra.mxu0 0.0
  %271 = vmatprep.subr.mxu0 0.0
  %272 = vmatpush1.msra.mxu0 0.0
  %273 = vmatprep.subr.mxu0 0.0
  %274 = vmatpush1.msra.mxu0 %v240
  %275 = vmatprep.subr.mxu0 0.0
  %276 = vmatpush1.msra.mxu0 %v239
  %277 = vmatprep.subr.mxu0 0.0
  %278 = vmatpush2.msra.mxu0 0.0
  %279 = vmatprep.subr.mxu0 0.0
  %280 = vmatpush2.msra.mxu0 0.0
  %281 = vmatprep.subr.mxu0 0.0
  %282 = vmatpush2.msra.mxu0 0.0
  %283 = vmatprep.subr.mxu0 0.0
  %284 = vmatpush2.msra.mxu0 0.0
  %285 = vmatprep.subr.mxu0 0.0
  %286 = vmatpush2.msra.mxu0 0.0
  %287 = vmatprep.subr.mxu0 0.0
  %288 = vmatpush2.msra.mxu0 0.0
  %289 = vmatprep.subr.mxu0 0.0
  %290 = vmatpush2.msra.mxu0 0.0
  %291 = vmatprep.subr.mxu0 0.0
  %292 = vmatpush2.msra.mxu0 0.0
  %293 = vmatprep.subr.mxu0 0.0
  %294 = vmatpush2.msra.mxu0 0.0
  %295 = vmatprep.subr.mxu0 0.0
  %296 = vmatpush2.msra.mxu0 0.0
  %297 = vmatprep.subr.mxu0 0.0
  %298 = vmatpush2.msra.mxu0 0.0
  %299 = vmatprep.subr.mxu0 0.0
  %300 = vmatpush2.msra.mxu0 0.0
  %301 = vmatprep.subr.mxu0 0.0
  %302 = vmatpush2.msra.mxu0 0.0
  %303 = vmatprep.subr.mxu0 0.0
  %304 = vmatpush2.msra.mxu0 0.0
  %305 = vmatprep.subr.mxu0 0.0
  %306 = vmatpush2.msra.mxu0 0.0
  %307 = vmatprep.subr.mxu0 0.0
  %308 = vmatpush2.msra.mxu0 0.0
  %309 = vmatprep.mubr.f32.mxu0 0.0
  %310 = vmatmul.mubr.f32.gmra.mxu0 %v243
  %v311 = vpop.f32.mrf.mxu0
  %v312 = vadd.f32 0.0, %v311
  %v313 = vpop.f32.mrf.mxu0
  %314 = vdwg.mxu0
  %v316 = vsel %vm241, %v143, 0
  %318 = vmatprep.subr.mxu0 0.0
  %319 = vmatpush1.msra.mxu0 0.0
  %320 = vmatprep.subr.mxu0 0.0
  %321 = vmatpush1.msra.mxu0 0.0
  %322 = vmatprep.subr.mxu0 0.0
  %323 = vmatpush1.msra.mxu0 0.0
  %324 = vmatprep.subr.mxu0 0.0
  %325 = vmatpush1.msra.mxu0 0.0
  %326 = vmatprep.subr.mxu0 0.0
  %327 = vmatpush1.msra.mxu0 0.0
  %328 = vmatprep.subr.mxu0 0.0
  %329 = vmatpush1.msra.mxu0 0.0
  %330 = vmatprep.subr.mxu0 0.0
  %331 = vmatpush1.msra.mxu0 0.0
  %332 = vmatprep.subr.mxu0 0.0
  %333 = vmatpush1.msra.mxu0 0.0
  %334 = vmatprep.subr.mxu0 0.0
  %335 = vmatpush1.msra.mxu0 0.0
  %336 = vmatprep.subr.mxu0 0.0
  %337 = vmatpush1.msra.mxu0 0.0
  %338 = vmatprep.subr.mxu0 0.0
  %339 = vmatpush1.msra.mxu0 0.0
  %340 = vmatprep.subr.mxu0 0.0
  %341 = vmatpush1.msra.mxu0 0.0
  %342 = vmatprep.subr.mxu0 0.0
  %343 = vmatpush1.msra.mxu0 0.0
  %344 = vmatprep.subr.mxu0 0.0
  %345 = vmatpush1.msra.mxu0 0.0
  %346 = vmatprep.subr.mxu0 0.0
  %347 = vmatpush1.msra.mxu0 %v238
  %348 = vmatprep.subr.mxu0 0.0
  %349 = vmatpush1.msra.mxu0 %v237
  %350 = vmatprep.subr.mxu0 0.0
  %351 = vmatpush2.msra.mxu0 0.0
  %352 = vmatprep.subr.mxu0 0.0
  %353 = vmatpush2.msra.mxu0 0.0
  %354 = vmatprep.subr.mxu0 0.0
  %355 = vmatpush2.msra.mxu0 0.0
  %356 = vmatprep.subr.mxu0 0.0
  %357 = vmatpush2.msra.mxu0 0.0
  %358 = vmatprep.subr.mxu0 0.0
  %359 = vmatpush2.msra.mxu0 0.0
  %360 = vmatprep.subr.mxu0 0.0
  %361 = vmatpush2.msra.mxu0 0.0
  %362 = vmatprep.subr.mxu0 0.0
  %363 = vmatpush2.msra.mxu0 0.0
  %364 = vmatprep.subr.mxu0 0.0
  %365 = vmatpush2.msra.mxu0 0.0
  %366 = vmatprep.subr.mxu0 0.0
  %367 = vmatpush2.msra.mxu0 0.0
  %368 = vmatprep.subr.mxu0 0.0
  %369 = vmatpush2.msra.mxu0 0.0
  %370 = vmatprep.subr.mxu0 0.0
  %371 = vmatpush2.msra.mxu0 0.0
  %372 = vmatprep.subr.mxu0 0.0
  %373 = vmatpush2.msra.mxu0 0.0
  %374 = vmatprep.subr.mxu0 0.0
  %375 = vmatpush2.msra.mxu0 0.0
  %376 = vmatprep.subr.mxu0 0.0
  %377 = vmatpush2.msra.mxu0 0.0
  %378 = vmatprep.subr.mxu0 0.0
  %379 = vmatpush2.msra.mxu0 0.0
  %380 = vmatprep.subr.mxu0 0.0
  %381 = vmatpush2.msra.mxu0 0.0
  %382 = vmatprep.mubr.f32.mxu0 0.0
  %383 = vmatmul.mubr.f32.gmra.mxu0 %v316
  %v384 = vpop.f32.mrf.mxu0
  %v385 = vadd.f32 %v312, %v384
  %v386 = vpop.f32.mrf.mxu0
  %387 = vdwg.mxu0
  %v388 = vmul.f32 %v143, %v236
  %v389 = vld [vmem:[%s10] sm:$0xff]
  %v390 = vld [vmem:[%s10 + $0x8] sm:$0xff]
  %v392 = vsel %vm241, %v388, 0
  %394 = vmatprep.subr.mxu0 0.0
  %395 = vmatpush1.msra.mxu0 0.0
  %396 = vmatprep.subr.mxu0 0.0
  %397 = vmatpush1.msra.mxu0 0.0
  %398 = vmatprep.subr.mxu0 0.0
  %399 = vmatpush1.msra.mxu0 0.0
  %400 = vmatprep.subr.mxu0 0.0
  %401 = vmatpush1.msra.mxu0 0.0
  %402 = vmatprep.subr.mxu0 0.0
  %403 = vmatpush1.msra.mxu0 0.0
  %404 = vmatprep.subr.mxu0 0.0
  %405 = vmatpush1.msra.mxu0 0.0
  %406 = vmatprep.subr.mxu0 0.0
  %407 = vmatpush1.msra.mxu0 0.0
  %408 = vmatprep.subr.mxu0 0.0
  %409 = vmatpush1.msra.mxu0 0.0
  %410 = vmatprep.subr.mxu0 0.0
  %411 = vmatpush1.msra.mxu0 0.0
  %412 = vmatprep.subr.mxu0 0.0
  %413 = vmatpush1.msra.mxu0 0.0
  %414 = vmatprep.subr.mxu0 0.0
  %415 = vmatpush1.msra.mxu0 0.0
  %416 = vmatprep.subr.mxu0 0.0
  %417 = vmatpush1.msra.mxu0 0.0
  %418 = vmatprep.subr.mxu0 0.0
  %419 = vmatpush1.msra.mxu0 0.0
  %420 = vmatprep.subr.mxu0 0.0
  %421 = vmatpush1.msra.mxu0 0.0
  %422 = vmatprep.subr.mxu0 0.0
  %423 = vmatpush1.msra.mxu0 %v390
  %424 = vmatprep.subr.mxu0 0.0
  %425 = vmatpush1.msra.mxu0 %v389
  %426 = vmatprep.subr.mxu0 0.0
  %427 = vmatpush2.msra.mxu0 0.0
  %428 = vmatprep.subr.mxu0 0.0
  %429 = vmatpush2.msra.mxu0 0.0
  %430 = vmatprep.subr.mxu0 0.0
  %431 = vmatpush2.msra.mxu0 0.0
  %432 = vmatprep.subr.mxu0 0.0
  %433 = vmatpush2.msra.mxu0 0.0
  %434 = vmatprep.subr.mxu0 0.0
  %435 = vmatpush2.msra.mxu0 0.0
  %436 = vmatprep.subr.mxu0 0.0
  %437 = vmatpush2.msra.mxu0 0.0
  %438 = vmatprep.subr.mxu0 0.0
  %439 = vmatpush2.msra.mxu0 0.0
  %440 = vmatprep.subr.mxu0 0.0
  %441 = vmatpush2.msra.mxu0 0.0
  %442 = vmatprep.subr.mxu0 0.0
  %443 = vmatpush2.msra.mxu0 0.0
  %444 = vmatprep.subr.mxu0 0.0
  %445 = vmatpush2.msra.mxu0 0.0
  %446 = vmatprep.subr.mxu0 0.0
  %447 = vmatpush2.msra.mxu0 0.0
  %448 = vmatprep.subr.mxu0 0.0
  %449 = vmatpush2.msra.mxu0 0.0
  %450 = vmatprep.subr.mxu0 0.0
  %451 = vmatpush2.msra.mxu0 0.0
  %452 = vmatprep.subr.mxu0 0.0
  %453 = vmatpush2.msra.mxu0 0.0
  %454 = vmatprep.subr.mxu0 0.0
  %455 = vmatpush2.msra.mxu0 0.0
  %456 = vmatprep.subr.mxu0 0.0
  %457 = vmatpush2.msra.mxu0 0.0
  %458 = vmatprep.mubr.f32.mxu0 0.0
  %459 = vmatmul.mubr.f32.gmra.mxu0 %v392
  %v460 = vpop.f32.mrf.mxu0
  %v461 = vadd.f32 0.0, %v460
  %v462 = vpop.f32.mrf.mxu0
  %463 = vdwg.mxu0
  %v464 = vadd.f32 %v385, %v461
  %v465 = vld [vmem:[%s9] sm:$0x1]
  %v467 = vlaneseq
  %v468 = vshrl.u32 %v467, 7
  %v469 = vsub.s32 0, %v468
  %v470 = vrot.slane %v465, %v469
  %v472 = vadd.f32 %v464, %v470
  %vm473 = vcmask 20480
  %474 = vst.msk [vmem:[%s11] sm:$0x1f] %vm473, %v472
  // Predicated region
  $region46: #{joint_forward.7} parent=0 // pred_check
    _
  $region47: #{joint_forward.7} parent=0 // pred_check_branch
    %476 = sbr.rel (0) target = $region49
  $region48: #{joint_forward.7} parent=0 // pred_region
    _
  $region49: #{joint_forward.7} parent=0 // pred_fallthru
    _
  // Predicated region
  $region50: #{joint_forward.7} parent=0 // pred_check
    _
  $region51: #{joint_forward.7} parent=0 // pred_check_branch
    %478 = sbr.rel (0) target = $region53
  $region52: #{joint_forward.7} parent=0 // pred_region
    _
  $region53: #{joint_forward.7} parent=0 // pred_fallthru
    _

</llo_original>
